<compile_context>
chip_gen: v7x
topology: tpu7x:2x2x1
jax: 0.10.0
libtpu: 0.0.40
codegen_flags: <defaults>
</compile_context>

<pallas_src>
import functools

import jax
import jax.numpy as jnp
import numpy as np
from jax.experimental import pallas as pl
from jax.experimental.pallas import tpu as pltpu

_EPS = 1e-5
_LANE = 128


# ------------------------------ small helpers ---------------------------------

def _ceil_to(x, m):
    return ((x + m - 1) // m) * m


def _pad_channels(x, cpad):
    c = x.shape[-1]
    if c == cpad:
        return x
    return jnp.pad(x, [(0, 0)] * (x.ndim - 1) + [(0, cpad - c)])


def _pad_vec(v, cpad):
    return jnp.pad(v.astype(jnp.float32), (0, cpad - v.shape[0])).reshape(1, cpad)


def _pick_tile(m, cap=512):
    # largest row-tile (multiple of 8, <= cap) that divides m; m itself is always
    # a legal fallback (full-extent blocks are exempt from the (8,128) rule).
    for t in (512, 256, 128, 64, 32, 16, 8):
        if t <= cap and m % t == 0:
            return t
    return m


def _pick_th(ho, wo, cap_rows=512):
    # output-row tile height: th | Ho, th*Wo a multiple of 8, th*Wo <= cap_rows
    start = max(1, min(ho, cap_rows // max(wo, 1)))
    for th in range(start, 0, -1):
        if ho % th == 0 and (th * wo) % 8 == 0:
            return th
    raise NotImplementedError("need an output-row tile with th*wo % 8 == 0")


# --------------------------- conv (3x3) kernel ---------------------------------

def _make_conv3x3_kernel(stride, th, wo):
    """3x3/pad-1 conv as 9 shifted matmuls over a halo'd, phase-split row tile.

    Emits per-tile partial BN statistics (sum / sum-of-squares per channel) so
    training-mode batch norm needs no extra full pass over the conv output.
    """
    s = stride

    def kernel(xt_ref, w_ref, y_ref, s0_ref, s1_ref):
        tm, tn = y_ref.shape
        acc = jnp.zeros((tm, tn), jnp.float32)
        for kh in range(3):
            for kw in range(3):
                phase = (kh % s) * s + (kw % s)
                dh, dw = kh // s, kw // s
                patch = xt_ref[0, phase, dh:dh + th, dw:dw + wo, :]
                patch = patch.reshape(th * wo, patch.shape[-1])
                acc = acc + jnp.dot(patch, w_ref[kh * 3 + kw],
                                    preferred_element_type=jnp.float32)
        y_ref[...] = acc
        s0_ref[...] = jnp.sum(acc, axis=0, keepdims=True).reshape(1, 1, tn)
        s1_ref[...] = jnp.sum(acc * acc, axis=0, keepdims=True).reshape(1, 1, tn)

    return kernel


def _phase_tiles(x_nhwc, stride, th, ho, wo, cpad, dtype):
    """(N,H,W,C) -> (N*T, s*s, th+d, wo+d, cpad) halo'd row tiles, d = 2//stride.

    Phase (space-to-depth) splitting makes every tap of a strided conv a
    unit-stride slice inside the kernel; the only duplication is the d-row halo.
    """
    s = stride
    n, h, w, _ = x_nhwc.shape
    x = _pad_channels(x_nhwc, cpad).astype(dtype)
    d = 2 // s
    hq, wq = ho + d, wo + d
    xp = jnp.pad(x, ((0, 0), (1, s * hq - h - 1), (1, s * wq - w - 1), (0, 0)))
    phases = [xp[:, ph::s, pw::s, :] for ph in range(s) for pw in range(s)]
    xph = jnp.stack(phases, axis=1)                      # (N, s*s, hq, wq, cpad)
    t_cnt = ho // th
    tiles = [xph[:, :, t * th:t * th + th + d, :, :] for t in range(t_cnt)]
    xt = jnp.stack(tiles, axis=1)                        # (N, T, s*s, th+d, wq, cpad)
    return xt.reshape(n * t_cnt, s * s, th + d, wq, cpad)


def _prep_w3x3(w_oihw, cpad_in, cpad_out, dtype):
    # [Cout, Cin, 3, 3] -> [9, cpad_in, cpad_out]  (tap index = kh*3+kw)
    co, ci, kh, kw = w_oihw.shape
    wt = jnp.transpose(w_oihw, (2, 3, 1, 0)).reshape(kh * kw, ci, co)
    wt = jnp.pad(wt, ((0, 0), (0, cpad_in - ci), (0, cpad_out - co)))
    return wt.astype(dtype)


def _conv3x3_stats(x_nhwc, w_oihw, stride, cpad_in, cpad_out, compute_dtype):
    n, h, w, _ = x_nhwc.shape
    ho = (h + 2 - 3) // stride + 1
    wo = (w + 2 - 3) // stride + 1
    th = _pick_th(ho, wo)
    xt = _phase_tiles(x_nhwc, stride, th, ho, wo, cpad_in, compute_dtype)
    wt = _prep_w3x3(w_oihw, cpad_in, cpad_out, compute_dtype)
    nt, s2, thin, wq, _ = xt.shape
    tm = th * wo                        # rows per tile (multiple of 8)
    tn = min(cpad_out, _LANE)           # lane-dense output tile
    m = nt * tm                         # = N * Ho * Wo exactly (no padded rows)

    y, s0, s1 = pl.pallas_call(
        _make_conv3x3_kernel(stride, th, wo),
        out_shape=(jax.ShapeDtypeStruct((m, cpad_out), jnp.float32),
                   jax.ShapeDtypeStruct((nt, 1, cpad_out), jnp.float32),
                   jax.ShapeDtypeStruct((nt, 1, cpad_out), jnp.float32)),
        grid=(nt, cpad_out // tn),
        in_specs=[pl.BlockSpec((1, s2, thin, wq, cpad_in),
                               lambda i, j: (i, 0, 0, 0, 0)),
                  pl.BlockSpec((9, cpad_in, tn), lambda i, j: (0, 0, j))],
        out_specs=(pl.BlockSpec((tm, tn), lambda i, j: (i, j)),
                   pl.BlockSpec((1, 1, tn), lambda i, j: (i, 0, j)),
                   pl.BlockSpec((1, 1, tn), lambda i, j: (i, 0, j))),
        compiler_params=pltpu.CompilerParams(
            dimension_semantics=("parallel", "parallel")),
    )(xt, wt)

    # tiny cross-tile reduction of the per-tile partial statistics
    mean = jnp.sum(s0[:, 0, :], axis=0) / m
    var = jnp.maximum(jnp.sum(s1[:, 0, :], axis=0) / m - mean * mean, 0.0)
    return y, mean, var, (ho, wo)


# -------------------------- BN / residual epilogues ----------------------------

def _bn_relu_kernel(y_ref, sc_ref, sh_ref, o_ref):
    o_ref[...] = jnp.maximum(y_ref[...] * sc_ref[...] + sh_ref[...],
                             0.0).astype(o_ref.dtype)


def _bn_add_relu_kernel(y_ref, sc_ref, sh_ref, skip_ref, o_ref):
    z = y_ref[...] * sc_ref[...] + sh_ref[...] + skip_ref[...]
    o_ref[...] = jnp.maximum(z, 0.0).astype(o_ref.dtype)


def _bn_proj_add_relu_kernel(y_ref, sc_ref, sh_ref, xs_ref, wsk_ref, bsk_ref, o_ref):
    # fused 1x1 strided projection shortcut (no HBM round trip for skip)
    proj = jnp.dot(xs_ref[...], wsk_ref[...],
                   preferred_element_type=jnp.float32) + bsk_ref[...]
    z = y_ref[...] * sc_ref[...] + sh_ref[...] + proj
    o_ref[...] = jnp.maximum(z, 0.0).astype(o_ref.dtype)


def _bn_epilogue(y, scale, shift, *, out_dtype, skip=None, proj=None):
    m, cpad_out = y.shape
    tm = _pick_tile(m)
    tn = min(cpad_out, _LANE)
    grid = (m // tm, cpad_out // tn)
    tile = pl.BlockSpec((tm, tn), lambda i, j: (i, j))
    vec = pl.BlockSpec((1, tn), lambda i, j: (0, j))
    cp = pltpu.CompilerParams(dimension_semantics=("parallel", "parallel"))
    out_shape = jax.ShapeDtypeStruct((m, cpad_out), out_dtype)

    if proj is not None:
        xs, wsk, bsk = proj
        cpi = xs.shape[1]
        return pl.pallas_call(
            _bn_proj_add_relu_kernel, out_shape=out_shape, grid=grid,
            in_specs=[tile, vec, vec,
                      pl.BlockSpec((tm, cpi), lambda i, j: (i, 0)),
                      pl.BlockSpec((cpi, tn), lambda i, j: (0, j)),
                      vec],
            out_specs=tile, compiler_params=cp,
        )(y, scale, shift, xs, wsk, bsk)
    if skip is not None:
        return pl.pallas_call(
            _bn_add_relu_kernel, out_shape=out_shape, grid=grid,
            in_specs=[tile, vec, vec, tile],
            out_specs=tile, compiler_params=cp,
        )(y, scale, shift, skip)
    return pl.pallas_call(
        _bn_relu_kernel, out_shape=out_shape, grid=grid,
        in_specs=[tile, vec, vec],
        out_specs=tile, compiler_params=cp,
    )(y, scale, shift)


# --------------------------------- forward -------------------------------------

@functools.partial(jax.jit, static_argnames=("stride", "compute_dtype"))
def residual_forward(x_nchw, params, stride, compute_dtype=jnp.bfloat16):
    x = jnp.transpose(x_nchw, (0, 2, 3, 1)).astype(jnp.float32)      # NHWC
    n, h, w, cin = x.shape
    cout = params["w1"].shape[0]
    cpi = _ceil_to(cin, _LANE)      # lane-dense channel padding (multiple of 128)
    cpo = _ceil_to(cout, _LANE)

    # conv1 (3x3, stride) + per-tile BN stats.  b1 is dropped: a per-channel bias
    # before training-mode BN is exactly cancelled by the mean subtraction.
    y1, mean1, var1, (ho, wo) = _conv3x3_stats(x, params["w1"], stride,
                                               cpi, cpo, compute_dtype)
    scale1 = _pad_vec(params["g1"], cpo) * jax.lax.rsqrt(var1 + _EPS)
    shift1 = _pad_vec(params["bt1"], cpo) - scale1 * mean1
    h1 = _bn_epilogue(y1, scale1, shift1, out_dtype=compute_dtype)
    h1_nhwc = h1.reshape(n, ho, wo, cpo)

    # conv2 (3x3, stride 1) + BN stats (b2 dropped for the same reason).
    y2, mean2, var2, _ = _conv3x3_stats(h1_nhwc, params["w2"], 1,
                                        cpo, cpo, compute_dtype)
    scale2 = _pad_vec(params["g2"], cpo) * jax.lax.rsqrt(var2 + _EPS)
    shift2 = _pad_vec(params["bt2"], cpo) - scale2 * mean2

    m = n * ho * wo
    if stride == 1:
        skip = _pad_channels(x, cpi).reshape(m, cpi)         # identity (cin == cout)
        out = _bn_epilogue(y2, scale2, shift2, out_dtype=jnp.float32, skip=skip)
    else:
        xs = _pad_channels(x[:, ::stride, ::stride, :], cpi)
        xs = xs.astype(compute_dtype).reshape(m, cpi)
        wsk = jnp.pad(params["w_skip"][:, :, 0, 0].T,
                      ((0, cpi - cin), (0, cpo - cout))).astype(compute_dtype)
        bsk = _pad_vec(params["b_skip"], cpo)
        out = _bn_epilogue(y2, scale2, shift2, out_dtype=jnp.float32,
                           proj=(xs, wsk, bsk))

    out = out.reshape(n, ho, wo, cpo)[:, :, :, :cout]
    return jnp.transpose(out, (0, 3, 1, 2))                  # back to NCHW


# ---------------------------- pure-JAX reference --------------------------------

def residual_reference(x, params, stride, conv_dtype=jnp.float32):
    # conv_dtype=bf16 mirrors the kernel's MXU operand dtype (f32 accumulation).
    def conv(t, w_, b_, s, p):
        y = jax.lax.conv_general_dilated(
            t.astype(conv_dtype), w_.astype(conv_dtype),
            window_strides=(s, s), padding=((p, p), (p, p)),
            dimension_numbers=("NCHW", "OIHW", "NCHW"),
            preferred_element_type=jnp.float32)
        return y + b_[None, :, None, None]

    def bn(t, g, bt):
        mu = t.mean(axis=(0, 2, 3), keepdims=True)
        var = ((t - mu) ** 2).mean(axis=(0, 2, 3), keepdims=True)
        return (g[None, :, None, None] * (t - mu) / jnp.sqrt(var + _EPS)
                + bt[None, :, None, None])

    h = jax.nn.relu(bn(conv(x, params["w1"], params["b1"], stride, 1),
                       params["g1"], params["bt1"]))
    h = bn(conv(h, params["w2"], params["b2"], 1, 1), params["g2"], params["bt2"])
    skip = x if stride == 1 else conv(x, params["w_skip"], params["b_skip"], stride, 0)
    return jax.nn.relu(h + skip)


# ----------------------------------- main ---------------------------------------

def _make_params(key, cin, cout, stride):
    ks = jax.random.split(key, 10)
    p = {
        "w1":  0.1 * jax.random.normal(ks[0], (cout, cin, 3, 3), jnp.float32),
        "b1":  0.1 * jax.random.normal(ks[1], (cout,), jnp.float32),
        "g1":  1.0 + 0.1 * jax.random.normal(ks[2], (cout,), jnp.float32),
        "bt1": 0.1 * jax.random.normal(ks[3], (cout,), jnp.float32),
        "w2":  0.1 * jax.random.normal(ks[4], (cout, cout, 3, 3), jnp.float32),
        "b2":  0.1 * jax.random.normal(ks[5], (cout,), jnp.float32),
        "g2":  1.0 + 0.1 * jax.random.normal(ks[6], (cout,), jnp.float32),
        "bt2": 0.1 * jax.random.normal(ks[7], (cout,), jnp.float32),
    }
    if stride > 1:
        p["w_skip"] = 0.1 * jax.random.normal(ks[8], (cout, cin, 1, 1), jnp.float32)
        p["b_skip"] = 0.1 * jax.random.normal(ks[9], (cout,), jnp.float32)
    return p


if __name__ == "__main__":
    key = jax.random.PRNGKey(0)
    kx, kp1, kp2 = jax.random.split(key, 3)
    x = jax.random.normal(kx, (2, 4, 16, 16), jnp.float32)            # NCHW

    # case 1: stride=1 identity shortcut (in_channel == out_channel), bf16 MXU path
    params1 = _make_params(kp1, 4, 4, stride=1)
    out1 = jax.block_until_ready(residual_forward(x, params1, stride=1,
                                                  compute_dtype=jnp.bfloat16))
    ref1 = residual_reference(x, params1, 1, conv_dtype=jnp.bfloat16)
    assert out1.shape == (2, 4, 16, 16)
    # bf16 operand quantization downstream of BN1 gives ~1e-3-level deviations
    assert np.allclose(np.asarray(out1), np.asarray(ref1), atol=1e-2, rtol=1e-2)

    # same case in f32 compute: matches the pure-f32 (PyTorch-semantics) reference
    out1f = jax.block_until_ready(residual_forward(x, params1, stride=1,
                                                   compute_dtype=jnp.float32))
    ref1f = residual_reference(x, params1, 1, conv_dtype=jnp.float32)
    assert np.allclose(np.asarray(out1f), np.asarray(ref1f), atol=5e-4, rtol=5e-4)

    # case 2: stride=2 with the 1x1 projection shortcut fused into the epilogue
    params2 = _make_params(kp2, 4, 8, stride=2)
    out2 = jax.block_until_ready(residual_forward(x, params2, stride=2,
                                                  compute_dtype=jnp.bfloat16))
    ref2 = residual_reference(x, params2, 2, conv_dtype=jnp.bfloat16)
    assert out2.shape == (2, 8, 8, 8)
    assert np.allclose(np.asarray(out2), np.asarray(ref2), atol=1e-2, rtol=1e-2)

    print("KERNEL_OK")
</pallas_src>

<mosaic_0001>
module attributes {stable_mosaic.version = 11 : i64} {
  func.func @kernel(%arg0: i32, %arg1: i32, %arg2: memref<1x1x18x18x128xbf16, #tpu.memory_space<vmem>>, %arg3: memref<9x128x128xbf16, #tpu.memory_space<vmem>>, %arg4: memref<256x128xf32, #tpu.memory_space<vmem>>, %arg5: memref<1x1x128xf32, #tpu.memory_space<vmem>>, %arg6: memref<1x1x128xf32, #tpu.memory_space<vmem>>) attributes {dimension_semantics = [#tpu.dimension_semantics<parallel>, #tpu.dimension_semantics<parallel>], iteration_bounds = array<i64: 2, 1>, scalar_prefetch = 0 : i64, scratch_operands = 0 : i64, tpu.core_type = #tpu.core_type<tc>, window_params = [{transform_indices = @transform_0, window_bounds = array<i64: 1, 1, 18, 18, 128>}, {transform_indices = @transform_1, window_bounds = array<i64: 9, 128, 128>}, {transform_indices = @transform_2, window_bounds = array<i64: 256, 128>}, {transform_indices = @transform_3, window_bounds = array<i64: 1, 1, 128>}, {transform_indices = @transform_4, window_bounds = array<i64: 1, 1, 128>}]} {
    %cst = arith.constant 0.000000e+00 : f32
    %0 = vector.broadcast %cst : f32 to vector<256x128xf32>
    %c0 = arith.constant 0 : index
    %c0_0 = arith.constant 0 : index
    %c0_1 = arith.constant 0 : index
    %c0_2 = arith.constant 0 : index
    %c0_3 = arith.constant 0 : index
    %1 = vector.load %arg2[%c0, %c0_0, %c0_1, %c0_2, %c0_3] : memref<1x1x18x18x128xbf16, #tpu.memory_space<vmem>>, vector<1x1x16x16x128xbf16>
    %2 = vector.shape_cast %1 : vector<1x1x16x16x128xbf16> to vector<16x16x128xbf16>
    %3 = vector.shape_cast %2 : vector<16x16x128xbf16> to vector<256x128xbf16>
    %c0_4 = arith.constant 0 : index
    %c0_5 = arith.constant 0 : index
    %c0_6 = arith.constant 0 : index
    %4 = vector.load %arg3[%c0_4, %c0_5, %c0_6] : memref<9x128x128xbf16, #tpu.memory_space<vmem>>, vector<1x128x128xbf16>
    %5 = vector.shape_cast %4 : vector<1x128x128xbf16> to vector<128x128xbf16>
    %cst_7 = arith.constant dense<0.000000e+00> : vector<256x128xf32>
    %6 = tpu.matmul %3, %5, %cst_7 {dimension_numbers = #tpu.dot_dimension_numbers<[1], [0], [0], [1], [0, 0, 1, 1], [], []>} : vector<256x128xbf16>, vector<128x128xbf16>, vector<256x128xf32> -> vector<256x128xf32>
    %7 = arith.addf %0, %6 : vector<256x128xf32>
    %c0_8 = arith.constant 0 : index
    %c0_9 = arith.constant 0 : index
    %c0_10 = arith.constant 0 : index
    %c1 = arith.constant 1 : index
    %c0_11 = arith.constant 0 : index
    %8 = vector.load %arg2[%c0_8, %c0_9, %c0_10, %c1, %c0_11] : memref<1x1x18x18x128xbf16, #tpu.memory_space<vmem>>, vector<1x1x16x16x128xbf16>
    %9 = vector.shape_cast %8 : vector<1x1x16x16x128xbf16> to vector<16x16x128xbf16>
    %10 = vector.shape_cast %9 : vector<16x16x128xbf16> to vector<256x128xbf16>
    %c1_12 = arith.constant 1 : index
    %c0_13 = arith.constant 0 : index
    %c0_14 = arith.constant 0 : index
    %11 = vector.load %arg3[%c1_12, %c0_13, %c0_14] : memref<9x128x128xbf16, #tpu.memory_space<vmem>>, vector<1x128x128xbf16>
    %12 = vector.shape_cast %11 : vector<1x128x128xbf16> to vector<128x128xbf16>
    %cst_15 = arith.constant dense<0.000000e+00> : vector<256x128xf32>
    %13 = tpu.matmul %10, %12, %cst_15 {dimension_numbers = #tpu.dot_dimension_numbers<[1], [0], [0], [1], [0, 0, 1, 1], [], []>} : vector<256x128xbf16>, vector<128x128xbf16>, vector<256x128xf32> -> vector<256x128xf32>
    %14 = arith.addf %7, %13 : vector<256x128xf32>
    %c0_16 = arith.constant 0 : index
    %c0_17 = arith.constant 0 : index
    %c0_18 = arith.constant 0 : index
    %c2 = arith.constant 2 : index
    %c0_19 = arith.constant 0 : index
    %15 = vector.load %arg2[%c0_16, %c0_17, %c0_18, %c2, %c0_19] : memref<1x1x18x18x128xbf16, #tpu.memory_space<vmem>>, vector<1x1x16x16x128xbf16>
    %16 = vector.shape_cast %15 : vector<1x1x16x16x128xbf16> to vector<16x16x128xbf16>
    %17 = vector.shape_cast %16 : vector<16x16x128xbf16> to vector<256x128xbf16>
    %c2_20 = arith.constant 2 : index
    %c0_21 = arith.constant 0 : index
    %c0_22 = arith.constant 0 : index
    %18 = vector.load %arg3[%c2_20, %c0_21, %c0_22] : memref<9x128x128xbf16, #tpu.memory_space<vmem>>, vector<1x128x128xbf16>
    %19 = vector.shape_cast %18 : vector<1x128x128xbf16> to vector<128x128xbf16>
    %cst_23 = arith.constant dense<0.000000e+00> : vector<256x128xf32>
    %20 = tpu.matmul %17, %19, %cst_23 {dimension_numbers = #tpu.dot_dimension_numbers<[1], [0], [0], [1], [0, 0, 1, 1], [], []>} : vector<256x128xbf16>, vector<128x128xbf16>, vector<256x128xf32> -> vector<256x128xf32>
    %21 = arith.addf %14, %20 : vector<256x128xf32>
    %c0_24 = arith.constant 0 : index
    %c0_25 = arith.constant 0 : index
    %c1_26 = arith.constant 1 : index
    %c0_27 = arith.constant 0 : index
    %c0_28 = arith.constant 0 : index
    %22 = vector.load %arg2[%c0_24, %c0_25, %c1_26, %c0_27, %c0_28] : memref<1x1x18x18x128xbf16, #tpu.memory_space<vmem>>, vector<1x1x16x16x128xbf16>
    %23 = vector.shape_cast %22 : vector<1x1x16x16x128xbf16> to vector<16x16x128xbf16>
    %24 = vector.shape_cast %23 : vector<16x16x128xbf16> to vector<256x128xbf16>
    %c3 = arith.constant 3 : index
    %c0_29 = arith.constant 0 : index
    %c0_30 = arith.constant 0 : index
    %25 = vector.load %arg3[%c3, %c0_29, %c0_30] : memref<9x128x128xbf16, #tpu.memory_space<vmem>>, vector<1x128x128xbf16>
    %26 = vector.shape_cast %25 : vector<1x128x128xbf16> to vector<128x128xbf16>
    %cst_31 = arith.constant dense<0.000000e+00> : vector<256x128xf32>
    %27 = tpu.matmul %24, %26, %cst_31 {dimension_numbers = #tpu.dot_dimension_numbers<[1], [0], [0], [1], [0, 0, 1, 1], [], []>} : vector<256x128xbf16>, vector<128x128xbf16>, vector<256x128xf32> -> vector<256x128xf32>
    %28 = arith.addf %21, %27 : vector<256x128xf32>
    %c0_32 = arith.constant 0 : index
    %c0_33 = arith.constant 0 : index
    %c1_34 = arith.constant 1 : index
    %c1_35 = arith.constant 1 : index
    %c0_36 = arith.constant 0 : index
    %29 = vector.load %arg2[%c0_32, %c0_33, %c1_34, %c1_35, %c0_36] : memref<1x1x18x18x128xbf16, #tpu.memory_space<vmem>>, vector<1x1x16x16x128xbf16>
    %30 = vector.shape_cast %29 : vector<1x1x16x16x128xbf16> to vector<16x16x128xbf16>
    %31 = vector.shape_cast %30 : vector<16x16x128xbf16> to vector<256x128xbf16>
    %c4 = arith.constant 4 : index
    %c0_37 = arith.constant 0 : index
    %c0_38 = arith.constant 0 : index
    %32 = vector.load %arg3[%c4, %c0_37, %c0_38] : memref<9x128x128xbf16, #tpu.memory_space<vmem>>, vector<1x128x128xbf16>
    %33 = vector.shape_cast %32 : vector<1x128x128xbf16> to vector<128x128xbf16>
    %cst_39 = arith.constant dense<0.000000e+00> : vector<256x128xf32>
    %34 = tpu.matmul %31, %33, %cst_39 {dimension_numbers = #tpu.dot_dimension_numbers<[1], [0], [0], [1], [0, 0, 1, 1], [], []>} : vector<256x128xbf16>, vector<128x128xbf16>, vector<256x128xf32> -> vector<256x128xf32>
    %35 = arith.addf %28, %34 : vector<256x128xf32>
    %c0_40 = arith.constant 0 : index
    %c0_41 = arith.constant 0 : index
    %c1_42 = arith.constant 1 : index
    %c2_43 = arith.constant 2 : index
    %c0_44 = arith.constant 0 : index
    %36 = vector.load %arg2[%c0_40, %c0_41, %c1_42, %c2_43, %c0_44] : memref<1x1x18x18x128xbf16, #tpu.memory_space<vmem>>, vector<1x1x16x16x128xbf16>
    %37 = vector.shape_cast %36 : vector<1x1x16x16x128xbf16> to vector<16x16x128xbf16>
    %38 = vector.shape_cast %37 : vector<16x16x128xbf16> to vector<256x128xbf16>
    %c5 = arith.constant 5 : index
    %c0_45 = arith.constant 0 : index
    %c0_46 = arith.constant 0 : index
    %39 = vector.load %arg3[%c5, %c0_45, %c0_46] : memref<9x128x128xbf16, #tpu.memory_space<vmem>>, vector<1x128x128xbf16>
    %40 = vector.shape_cast %39 : vector<1x128x128xbf16> to vector<128x128xbf16>
    %cst_47 = arith.constant dense<0.000000e+00> : vector<256x128xf32>
    %41 = tpu.matmul %38, %40, %cst_47 {dimension_numbers = #tpu.dot_dimension_numbers<[1], [0], [0], [1], [0, 0, 1, 1], [], []>} : vector<256x128xbf16>, vector<128x128xbf16>, vector<256x128xf32> -> vector<256x128xf32>
    %42 = arith.addf %35, %41 : vector<256x128xf32>
    %c0_48 = arith.constant 0 : index
    %c0_49 = arith.constant 0 : index
    %c2_50 = arith.constant 2 : index
    %c0_51 = arith.constant 0 : index
    %c0_52 = arith.constant 0 : index
    %43 = vector.load %arg2[%c0_48, %c0_49, %c2_50, %c0_51, %c0_52] : memref<1x1x18x18x128xbf16, #tpu.memory_space<vmem>>, vector<1x1x16x16x128xbf16>
    %44 = vector.shape_cast %43 : vector<1x1x16x16x128xbf16> to vector<16x16x128xbf16>
    %45 = vector.shape_cast %44 : vector<16x16x128xbf16> to vector<256x128xbf16>
    %c6 = arith.constant 6 : index
    %c0_53 = arith.constant 0 : index
    %c0_54 = arith.constant 0 : index
    %46 = vector.load %arg3[%c6, %c0_53, %c0_54] : memref<9x128x128xbf16, #tpu.memory_space<vmem>>, vector<1x128x128xbf16>
    %47 = vector.shape_cast %46 : vector<1x128x128xbf16> to vector<128x128xbf16>
    %cst_55 = arith.constant dense<0.000000e+00> : vector<256x128xf32>
    %48 = tpu.matmul %45, %47, %cst_55 {dimension_numbers = #tpu.dot_dimension_numbers<[1], [0], [0], [1], [0, 0, 1, 1], [], []>} : vector<256x128xbf16>, vector<128x128xbf16>, vector<256x128xf32> -> vector<256x128xf32>
    %49 = arith.addf %42, %48 : vector<256x128xf32>
    %c0_56 = arith.constant 0 : index
    %c0_57 = arith.constant 0 : index
    %c2_58 = arith.constant 2 : index
    %c1_59 = arith.constant 1 : index
    %c0_60 = arith.constant 0 : index
    %50 = vector.load %arg2[%c0_56, %c0_57, %c2_58, %c1_59, %c0_60] : memref<1x1x18x18x128xbf16, #tpu.memory_space<vmem>>, vector<1x1x16x16x128xbf16>
    %51 = vector.shape_cast %50 : vector<1x1x16x16x128xbf16> to vector<16x16x128xbf16>
    %52 = vector.shape_cast %51 : vector<16x16x128xbf16> to vector<256x128xbf16>
    %c7 = arith.constant 7 : index
    %c0_61 = arith.constant 0 : index
    %c0_62 = arith.constant 0 : index
    %53 = vector.load %arg3[%c7, %c0_61, %c0_62] : memref<9x128x128xbf16, #tpu.memory_space<vmem>>, vector<1x128x128xbf16>
    %54 = vector.shape_cast %53 : vector<1x128x128xbf16> to vector<128x128xbf16>
    %cst_63 = arith.constant dense<0.000000e+00> : vector<256x128xf32>
    %55 = tpu.matmul %52, %54, %cst_63 {dimension_numbers = #tpu.dot_dimension_numbers<[1], [0], [0], [1], [0, 0, 1, 1], [], []>} : vector<256x128xbf16>, vector<128x128xbf16>, vector<256x128xf32> -> vector<256x128xf32>
    %56 = arith.addf %49, %55 : vector<256x128xf32>
    %c0_64 = arith.constant 0 : index
    %c0_65 = arith.constant 0 : index
    %c2_66 = arith.constant 2 : index
    %c2_67 = arith.constant 2 : index
    %c0_68 = arith.constant 0 : index
    %57 = vector.load %arg2[%c0_64, %c0_65, %c2_66, %c2_67, %c0_68] : memref<1x1x18x18x128xbf16, #tpu.memory_space<vmem>>, vector<1x1x16x16x128xbf16>
    %58 = vector.shape_cast %57 : vector<1x1x16x16x128xbf16> to vector<16x16x128xbf16>
    %59 = vector.shape_cast %58 : vector<16x16x128xbf16> to vector<256x128xbf16>
    %c8 = arith.constant 8 : index
    %c0_69 = arith.constant 0 : index
    %c0_70 = arith.constant 0 : index
    %60 = vector.load %arg3[%c8, %c0_69, %c0_70] : memref<9x128x128xbf16, #tpu.memory_space<vmem>>, vector<1x128x128xbf16>
    %61 = vector.shape_cast %60 : vector<1x128x128xbf16> to vector<128x128xbf16>
    %cst_71 = arith.constant dense<0.000000e+00> : vector<256x128xf32>
    %62 = tpu.matmul %59, %61, %cst_71 {dimension_numbers = #tpu.dot_dimension_numbers<[1], [0], [0], [1], [0, 0, 1, 1], [], []>} : vector<256x128xbf16>, vector<128x128xbf16>, vector<256x128xf32> -> vector<256x128xf32>
    %63 = arith.addf %56, %62 : vector<256x128xf32>
    %c0_72 = arith.constant 0 : index
    %c0_73 = arith.constant 0 : index
    %64 = vector.load %arg4[%c0_72, %c0_73] : memref<256x128xf32, #tpu.memory_space<vmem>>, vector<256x128xf32>
    tpu.vector_store %arg4[%c0_72, %c0_73], %63 {strides = array<i32>} : memref<256x128xf32, #tpu.memory_space<vmem>>, vector<256x128xf32>,
    %cst_74 = arith.constant dense<0.000000e+00> : vector<128xf32>
    %65 = vector.multi_reduction <add>, %63, %cst_74 [0] : vector<256x128xf32> to vector<128xf32>
    %66 = vector.shape_cast %65 : vector<128xf32> to vector<1x128xf32>
    %67 = vector.shape_cast %66 : vector<1x128xf32> to vector<1x1x128xf32>
    %c0_75 = arith.constant 0 : index
    %c0_76 = arith.constant 0 : index
    %c0_77 = arith.constant 0 : index
    %68 = vector.load %arg5[%c0_75, %c0_76, %c0_77] : memref<1x1x128xf32, #tpu.memory_space<vmem>>, vector<1x1x128xf32>
    tpu.vector_store %arg5[%c0_75, %c0_76, %c0_77], %67 {strides = array<i32>} : memref<1x1x128xf32, #tpu.memory_space<vmem>>, vector<1x1x128xf32>,
    %69 = arith.mulf %63, %63 : vector<256x128xf32>
    %cst_78 = arith.constant dense<0.000000e+00> : vector<128xf32>
    %70 = vector.multi_reduction <add>, %69, %cst_78 [0] : vector<256x128xf32> to vector<128xf32>
    %71 = vector.shape_cast %70 : vector<128xf32> to vector<1x128xf32>
    %72 = vector.shape_cast %71 : vector<1x128xf32> to vector<1x1x128xf32>
    %c0_79 = arith.constant 0 : index
    %c0_80 = arith.constant 0 : index
    %c0_81 = arith.constant 0 : index
    %73 = vector.load %arg6[%c0_79, %c0_80, %c0_81] : memref<1x1x128xf32, #tpu.memory_space<vmem>>, vector<1x1x128xf32>
    tpu.vector_store %arg6[%c0_79, %c0_80, %c0_81], %72 {strides = array<i32>} : memref<1x1x128xf32, #tpu.memory_space<vmem>>, vector<1x1x128xf32>,
    return
  }
  func.func @transform_0(%arg0: i32, %arg1: i32) -> (i32, i32, i32, i32, i32) {
    %c0_i32 = arith.constant 0 : i32
    %c0_i32_0 = arith.constant 0 : i32
    %c0_i32_1 = arith.constant 0 : i32
    %c0_i32_2 = arith.constant 0 : i32
    %c0_i32_3 = arith.constant 0 : i32
    return %arg0, %c0_i32, %c0_i32_0, %c0_i32_1, %c0_i32_2 : i32, i32, i32, i32, i32
  }
  func.func @transform_1(%arg0: i32, %arg1: i32) -> (i32, i32, i32) {
    %c0_i32 = arith.constant 0 : i32
    %c0_i32_0 = arith.constant 0 : i32
    %c0_i32_1 = arith.constant 0 : i32
    return %c0_i32, %c0_i32_0, %arg1 : i32, i32, i32
  }
  func.func @transform_2(%arg0: i32, %arg1: i32) -> (i32, i32) {
    %c0_i32 = arith.constant 0 : i32
    return %arg0, %arg1 : i32, i32
  }
  func.func @transform_3(%arg0: i32, %arg1: i32) -> (i32, i32, i32) {
    %c0_i32 = arith.constant 0 : i32
    %c0_i32_0 = arith.constant 0 : i32
    return %arg0, %c0_i32, %arg1 : i32, i32, i32
  }
  func.func @transform_4(%arg0: i32, %arg1: i32) -> (i32, i32, i32) {
    %c0_i32 = arith.constant 0 : i32
    %c0_i32_0 = arith.constant 0 : i32
    return %arg0, %c0_i32, %arg1 : i32, i32, i32
  }
}

module attributes {stable_mosaic.version = 11 : i64} {
  func.func @_bn_relu_kernel(%arg0: i32, %arg1: i32, %arg2: memref<512x128xf32, #tpu.memory_space<vmem>>, %arg3: memref<1x128xf32, #tpu.memory_space<vmem>>, %arg4: memref<1x128xf32, #tpu.memory_space<vmem>>, %arg5: memref<512x128xbf16, #tpu.memory_space<vmem>>) attributes {dimension_semantics = [#tpu.dimension_semantics<parallel>, #tpu.dimension_semantics<parallel>], iteration_bounds = array<i64: 1, 1>, scalar_prefetch = 0 : i64, scratch_operands = 0 : i64, tpu.core_type = #tpu.core_type<tc>, window_params = [{transform_indices = @transform_0, window_bounds = array<i64: 512, 128>}, {transform_indices = @transform_1, window_bounds = array<i64: 1, 128>}, {transform_indices = @transform_2, window_bounds = array<i64: 1, 128>}, {transform_indices = @transform_3, window_bounds = array<i64: 512, 128>}]} {
    %c0 = arith.constant 0 : index
    %c0_0 = arith.constant 0 : index
    %0 = vector.load %arg2[%c0, %c0_0] : memref<512x128xf32, #tpu.memory_space<vmem>>, vector<512x128xf32>
    %c0_1 = arith.constant 0 : index
    %c0_2 = arith.constant 0 : index
    %1 = vector.load %arg3[%c0_1, %c0_2] : memref<1x128xf32, #tpu.memory_space<vmem>>, vector<1x128xf32>
    %2 = vector.broadcast %1 : vector<1x128xf32> to vector<512x128xf32>
    %3 = arith.mulf %0, %2 : vector<512x128xf32>
    %c0_3 = arith.constant 0 : index
    %c0_4 = arith.constant 0 : index
    %4 = vector.load %arg4[%c0_3, %c0_4] : memref<1x128xf32, #tpu.memory_space<vmem>>, vector<1x128xf32>
    %5 = vector.broadcast %4 : vector<1x128xf32> to vector<512x128xf32>
    %6 = arith.addf %3, %5 : vector<512x128xf32>
    %cst = arith.constant 0.000000e+00 : f32
    %7 = vector.broadcast %cst : f32 to vector<512x128xf32>
    %8 = arith.maximumf %6, %7 : vector<512x128xf32>
    %9 = arith.truncf %8 : vector<512x128xf32> to vector<512x128xbf16>
    %c0_5 = arith.constant 0 : index
    %c0_6 = arith.constant 0 : index
    %10 = vector.load %arg5[%c0_5, %c0_6] : memref<512x128xbf16, #tpu.memory_space<vmem>>, vector<512x128xbf16>
    tpu.vector_store %arg5[%c0_5, %c0_6], %9 {strides = array<i32>} : memref<512x128xbf16, #tpu.memory_space<vmem>>, vector<512x128xbf16>,
    return
  }
  func.func @transform_0(%arg0: i32, %arg1: i32) -> (i32, i32) {
    %c0_i32 = arith.constant 0 : i32
    return %arg0, %arg1 : i32, i32
  }
  func.func @transform_1(%arg0: i32, %arg1: i32) -> (i32, i32) {
    %c0_i32 = arith.constant 0 : i32
    %c0_i32_0 = arith.constant 0 : i32
    return %c0_i32, %arg1 : i32, i32
  }
  func.func @transform_2(%arg0: i32, %arg1: i32) -> (i32, i32) {
    %c0_i32 = arith.constant 0 : i32
    %c0_i32_0 = arith.constant 0 : i32
    return %c0_i32, %arg1 : i32, i32
  }
  func.func @transform_3(%arg0: i32, %arg1: i32) -> (i32, i32) {
    %c0_i32 = arith.constant 0 : i32
    return %arg0, %arg1 : i32, i32
  }
}

module attributes {stable_mosaic.version = 11 : i64} {
  func.func @_bn_add_relu_kernel(%arg0: i32, %arg1: i32, %arg2: memref<512x128xf32, #tpu.memory_space<vmem>>, %arg3: memref<1x128xf32, #tpu.memory_space<vmem>>, %arg4: memref<1x128xf32, #tpu.memory_space<vmem>>, %arg5: memref<512x128xf32, #tpu.memory_space<vmem>>, %arg6: memref<512x128xf32, #tpu.memory_space<vmem>>) attributes {dimension_semantics = [#tpu.dimension_semantics<parallel>, #tpu.dimension_semantics<parallel>], iteration_bounds = array<i64: 1, 1>, scalar_prefetch = 0 : i64, scratch_operands = 0 : i64, tpu.core_type = #tpu.core_type<tc>, window_params = [{transform_indices = @transform_0, window_bounds = array<i64: 512, 128>}, {transform_indices = @transform_1, window_bounds = array<i64: 1, 128>}, {transform_indices = @transform_2, window_bounds = array<i64: 1, 128>}, {transform_indices = @transform_3, window_bounds = array<i64: 512, 128>}, {transform_indices = @transform_4, window_bounds = array<i64: 512, 128>}]} {
    %c0 = arith.constant 0 : index
    %c0_0 = arith.constant 0 : index
    %0 = vector.load %arg2[%c0, %c0_0] : memref<512x128xf32, #tpu.memory_space<vmem>>, vector<512x128xf32>
    %c0_1 = arith.constant 0 : index
    %c0_2 = arith.constant 0 : index
    %1 = vector.load %arg3[%c0_1, %c0_2] : memref<1x128xf32, #tpu.memory_space<vmem>>, vector<1x128xf32>
    %2 = vector.broadcast %1 : vector<1x128xf32> to vector<512x128xf32>
    %3 = arith.mulf %0, %2 : vector<512x128xf32>
    %c0_3 = arith.constant 0 : index
    %c0_4 = arith.constant 0 : index
    %4 = vector.load %arg4[%c0_3, %c0_4] : memref<1x128xf32, #tpu.memory_space<vmem>>, vector<1x128xf32>
    %5 = vector.broadcast %4 : vector<1x128xf32> to vector<512x128xf32>
    %6 = arith.addf %3, %5 : vector<512x128xf32>
    %c0_5 = arith.constant 0 : index
    %c0_6 = arith.constant 0 : index
    %7 = vector.load %arg5[%c0_5, %c0_6] : memref<512x128xf32, #tpu.memory_space<vmem>>, vector<512x128xf32>
    %8 = arith.addf %6, %7 : vector<512x128xf32>
    %cst = arith.constant 0.000000e+00 : f32
    %9 = vector.broadcast %cst : f32 to vector<512x128xf32>
    %10 = arith.maximumf %8, %9 : vector<512x128xf32>
    %c0_7 = arith.constant 0 : index
    %c0_8 = arith.constant 0 : index
    %11 = vector.load %arg6[%c0_7, %c0_8] : memref<512x128xf32, #tpu.memory_space<vmem>>, vector<512x128xf32>
    tpu.vector_store %arg6[%c0_7, %c0_8], %10 {strides = array<i32>} : memref<512x128xf32, #tpu.memory_space<vmem>>, vector<512x128xf32>,
    return
  }
  func.func @transform_0(%arg0: i32, %arg1: i32) -> (i32, i32) {
    %c0_i32 = arith.constant 0 : i32
    return %arg0, %arg1 : i32, i32
  }
  func.func @transform_1(%arg0: i32, %arg1: i32) -> (i32, i32) {
    %c0_i32 = arith.constant 0 : i32
    %c0_i32_0 = arith.constant 0 : i32
    return %c0_i32, %arg1 : i32, i32
  }
  func.func @transform_2(%arg0: i32, %arg1: i32) -> (i32, i32) {
    %c0_i32 = arith.constant 0 : i32
    %c0_i32_0 = arith.constant 0 : i32
    return %c0_i32, %arg1 : i32, i32
  }
  func.func @transform_3(%arg0: i32, %arg1: i32) -> (i32, i32) {
    %c0_i32 = arith.constant 0 : i32
    return %arg0, %arg1 : i32, i32
  }
  func.func @transform_4(%arg0: i32, %arg1: i32) -> (i32, i32) {
    %c0_i32 = arith.constant 0 : i32
    return %arg0, %arg1 : i32, i32
  }
}

</mosaic_0001>

<llo_original>
// kernel: residual_forward.7
$region0: #{residual_forward.7}
  #allocation0 [shape = 'u32[]', space=smem, size = 0x4, offset = 0x4, fixed_abs, tag = 'smem constant byte address 0x4 - core index']
  #allocation1 [shape = 'u32[144,128]{1,0:T(1,128)}', space=vmem, size = 0x12000, scoped, tag = 'internal scratch']
  %s0 = inlined_call_operand.vmem [shape: f32[512,128], index: 0, kind: input, shape index: {}]
  %s1 = inlined_call_operand.vmem [shape: f32[1,128], index: 1, kind: input, shape index: {}]
  %s2 = inlined_call_operand.vmem [shape: f32[1,128], index: 2, kind: input, shape index: {}]
  %s3 = inlined_call_operand.vmem [shape: f32[512,128], index: 3, kind: input, shape index: {}]
  %s4 = inlined_call_operand.vmem [shape: f32[512,128], index: 4, kind: output, shape index: {}]
  %s5 = sld [smem:[#allocation0]]
  $region26: #{residual_forward.7} parent=0
    _
  %s7 = ssub.s32 1, %s5
  %s8 = scalar_select 0, %s7, %s5
  // Predicated region
  $region2: #{residual_forward.7} parent=0 // pred_check
    _
  $region3: #{residual_forward.7} parent=0 // pred_check_branch
    %10 = sbr.rel (0) target = $region5
  $region4: #{residual_forward.7} parent=0 // pred_region
    _
  $region5: #{residual_forward.7} parent=0 // pred_fallthru
    _
  // Predicated region
  $region6: #{residual_forward.7} parent=0 // pred_check
    _
  $region7: #{residual_forward.7} parent=0 // pred_check_branch
    %12 = sbr.rel (0) target = $region9
  $region8: #{residual_forward.7} parent=0 // pred_region
    _
  $region9: #{residual_forward.7} parent=0 // pred_fallthru
    _
  // Predicated region
  $region10: #{residual_forward.7} parent=0 // pred_check
    _
  $region11: #{residual_forward.7} parent=0 // pred_check_branch
    %14 = sbr.rel (0) target = $region13
  $region12: #{residual_forward.7} parent=0 // pred_region
    _
  $region13: #{residual_forward.7} parent=0 // pred_fallthru
    _
  // Predicated region
  $region14: #{residual_forward.7} parent=0 // pred_check
    _
  $region15: #{residual_forward.7} parent=0 // pred_check_branch
    %16 = sbr.rel (0) target = $region17
  $region16: #{residual_forward.7} parent=0 // pred_region
    _
  $region17: #{residual_forward.7} parent=0 // pred_fallthru
    _
  %v17 = vld [vmem:[%s0] sm:$0xff]
  %v18 = vld [vmem:[%s0 + $0x8] sm:$0xff]
  %v19 = vld [vmem:[%s0 + $0x10] sm:$0xff]
  %v20 = vld [vmem:[%s0 + $0x18] sm:$0xff]
  %v21 = vld [vmem:[%s0 + $0x20] sm:$0xff]
  %v22 = vld [vmem:[%s0 + $0x28] sm:$0xff]
  %v23 = vld [vmem:[%s0 + $0x30] sm:$0xff]
  %v24 = vld [vmem:[%s0 + $0x38] sm:$0xff]
  %v25 = vld [vmem:[%s0 + $0x40] sm:$0xff]
  %v26 = vld [vmem:[%s0 + $0x48] sm:$0xff]
  %v27 = vld [vmem:[%s0 + $0x50] sm:$0xff]
  %v28 = vld [vmem:[%s0 + $0x58] sm:$0xff]
  %v29 = vld [vmem:[%s0 + $0x60] sm:$0xff]
  %v30 = vld [vmem:[%s0 + $0x68] sm:$0xff]
  %v31 = vld [vmem:[%s0 + $0x70] sm:$0xff]
  %v32 = vld [vmem:[%s0 + $0x78] sm:$0xff]
  %v33 = vld [vmem:[%s0 + $0x80] sm:$0xff]
  %v34 = vld [vmem:[%s0 + $0x88] sm:$0xff]
  %v35 = vld [vmem:[%s0 + $0x90] sm:$0xff]
  %v36 = vld [vmem:[%s0 + $0x98] sm:$0xff]
  %v37 = vld [vmem:[%s0 + $0xa0] sm:$0xff]
  %v38 = vld [vmem:[%s0 + $0xa8] sm:$0xff]
  %v39 = vld [vmem:[%s0 + $0xb0] sm:$0xff]
  %v40 = vld [vmem:[%s0 + $0xb8] sm:$0xff]
  %v41 = vld [vmem:[%s0 + $0xc0] sm:$0xff]
  %v42 = vld [vmem:[%s0 + $0xc8] sm:$0xff]
  %v43 = vld [vmem:[%s0 + $0xd0] sm:$0xff]
  %v44 = vld [vmem:[%s0 + $0xd8] sm:$0xff]
  %v45 = vld [vmem:[%s0 + $0xe0] sm:$0xff]
  %v46 = vld [vmem:[%s0 + $0xe8] sm:$0xff]
  %v47 = vld [vmem:[%s0 + $0xf0] sm:$0xff]
  %v48 = vld [vmem:[%s0 + $0xf8] sm:$0xff]
  %v49 = vld [vmem:[%s0 + $0x100] sm:$0xff]
  %v50 = vld [vmem:[%s0 + $0x108] sm:$0xff]
  %v51 = vld [vmem:[%s0 + $0x110] sm:$0xff]
  %v52 = vld [vmem:[%s0 + $0x118] sm:$0xff]
  %v53 = vld [vmem:[%s0 + $0x120] sm:$0xff]
  %v54 = vld [vmem:[%s0 + $0x128] sm:$0xff]
  %v55 = vld [vmem:[%s0 + $0x130] sm:$0xff]
  %v56 = vld [vmem:[%s0 + $0x138] sm:$0xff]
  %v57 = vld [vmem:[%s0 + $0x140] sm:$0xff]
  %v58 = vld [vmem:[%s0 + $0x148] sm:$0xff]
  %v59 = vld [vmem:[%s0 + $0x150] sm:$0xff]
  %v60 = vld [vmem:[%s0 + $0x158] sm:$0xff]
  %v61 = vld [vmem:[%s0 + $0x160] sm:$0xff]
  %v62 = vld [vmem:[%s0 + $0x168] sm:$0xff]
  %v63 = vld [vmem:[%s0 + $0x170] sm:$0xff]
  %v64 = vld [vmem:[%s0 + $0x178] sm:$0xff]
  %v65 = vld [vmem:[%s0 + $0x180] sm:$0xff]
  %v66 = vld [vmem:[%s0 + $0x188] sm:$0xff]
  %v67 = vld [vmem:[%s0 + $0x190] sm:$0xff]
  %v68 = vld [vmem:[%s0 + $0x198] sm:$0xff]
  %v69 = vld [vmem:[%s0 + $0x1a0] sm:$0xff]
  %v70 = vld [vmem:[%s0 + $0x1a8] sm:$0xff]
  %v71 = vld [vmem:[%s0 + $0x1b0] sm:$0xff]
  %v72 = vld [vmem:[%s0 + $0x1b8] sm:$0xff]
  %v73 = vld [vmem:[%s0 + $0x1c0] sm:$0xff]
  %v74 = vld [vmem:[%s0 + $0x1c8] sm:$0xff]
  %v75 = vld [vmem:[%s0 + $0x1d0] sm:$0xff]
  %v76 = vld [vmem:[%s0 + $0x1d8] sm:$0xff]
  %v77 = vld [vmem:[%s0 + $0x1e0] sm:$0xff]
  %v78 = vld [vmem:[%s0 + $0x1e8] sm:$0xff]
  %v79 = vld [vmem:[%s0 + $0x1f0] sm:$0xff]
  %v80 = vld [vmem:[%s0 + $0x1f8] sm:$0xff]
  %v81 = vld [vmem:[%s1] sm:$0x1]
  %v83 = vlaneseq
  %v84 = vshrl.u32 %v83, 7
  %v85 = vsub.s32 0, %v84
  %v86 = vrot.slane %v81, %v85
  %v88 = vmul.f32 %v17, %v86
  %v89 = vmul.f32 %v18, %v86
  %v90 = vmul.f32 %v19, %v86
  %v91 = vmul.f32 %v20, %v86
  %v92 = vmul.f32 %v21, %v86
  %v93 = vmul.f32 %v22, %v86
  %v94 = vmul.f32 %v23, %v86
  %v95 = vmul.f32 %v24, %v86
  %v96 = vmul.f32 %v25, %v86
  %v97 = vmul.f32 %v26, %v86
  %v98 = vmul.f32 %v27, %v86
  %v99 = vmul.f32 %v28, %v86
  %v100 = vmul.f32 %v29, %v86
  %v101 = vmul.f32 %v30, %v86
  %v102 = vmul.f32 %v31, %v86
  %v103 = vmul.f32 %v32, %v86
  %v104 = vmul.f32 %v33, %v86
  %v105 = vmul.f32 %v34, %v86
  %v106 = vmul.f32 %v35, %v86
  %v107 = vmul.f32 %v36, %v86
  %v108 = vmul.f32 %v37, %v86
  %v109 = vmul.f32 %v38, %v86
  %v110 = vmul.f32 %v39, %v86
  %v111 = vmul.f32 %v40, %v86
  %v112 = vmul.f32 %v41, %v86
  %v113 = vmul.f32 %v42, %v86
  %v114 = vmul.f32 %v43, %v86
  %v115 = vmul.f32 %v44, %v86
  %v116 = vmul.f32 %v45, %v86
  %v117 = vmul.f32 %v46, %v86
  %v118 = vmul.f32 %v47, %v86
  %v119 = vmul.f32 %v48, %v86
  %v120 = vmul.f32 %v49, %v86
  %v121 = vmul.f32 %v50, %v86
  %v122 = vmul.f32 %v51, %v86
  %v123 = vmul.f32 %v52, %v86
  %v124 = vmul.f32 %v53, %v86
  %v125 = vmul.f32 %v54, %v86
  %v126 = vmul.f32 %v55, %v86
  %v127 = vmul.f32 %v56, %v86
  %v128 = vmul.f32 %v57, %v86
  %v129 = vmul.f32 %v58, %v86
  %v130 = vmul.f32 %v59, %v86
  %v131 = vmul.f32 %v60, %v86
  %v132 = vmul.f32 %v61, %v86
  %v133 = vmul.f32 %v62, %v86
  %v134 = vmul.f32 %v63, %v86
  %v135 = vmul.f32 %v64, %v86
  %v136 = vmul.f32 %v65, %v86
  %v137 = vmul.f32 %v66, %v86
  %v138 = vmul.f32 %v67, %v86
  %v139 = vmul.f32 %v68, %v86
  %v140 = vmul.f32 %v69, %v86
  %v141 = vmul.f32 %v70, %v86
  %v142 = vmul.f32 %v71, %v86
  %v143 = vmul.f32 %v72, %v86
  %v144 = vmul.f32 %v73, %v86
  %v145 = vmul.f32 %v74, %v86
  %v146 = vmul.f32 %v75, %v86
  %v147 = vmul.f32 %v76, %v86
  %v148 = vmul.f32 %v77, %v86
  %v149 = vmul.f32 %v78, %v86
  %v150 = vmul.f32 %v79, %v86
  %v151 = vmul.f32 %v80, %v86
  %v152 = vld [vmem:[%s2] sm:$0x1]
  %v154 = vlaneseq
  %v155 = vshrl.u32 %v154, 7
  %v156 = vsub.s32 0, %v155
  %v157 = vrot.slane %v152, %v156
  %v159 = vadd.f32 %v88, %v157
  %v160 = vadd.f32 %v89, %v157
  %v161 = vadd.f32 %v90, %v157
  %v162 = vadd.f32 %v91, %v157
  %v163 = vadd.f32 %v92, %v157
  %v164 = vadd.f32 %v93, %v157
  %v165 = vadd.f32 %v94, %v157
  %v166 = vadd.f32 %v95, %v157
  %v167 = vadd.f32 %v96, %v157
  %v168 = vadd.f32 %v97, %v157
  %v169 = vadd.f32 %v98, %v157
  %v170 = vadd.f32 %v99, %v157
  %v171 = vadd.f32 %v100, %v157
  %v172 = vadd.f32 %v101, %v157
  %v173 = vadd.f32 %v102, %v157
  %v174 = vadd.f32 %v103, %v157
  %v175 = vadd.f32 %v104, %v157
  %v176 = vadd.f32 %v105, %v157
  %v177 = vadd.f32 %v106, %v157
  %v178 = vadd.f32 %v107, %v157
  %v179 = vadd.f32 %v108, %v157
  %v180 = vadd.f32 %v109, %v157
  %v181 = vadd.f32 %v110, %v157
  %v182 = vadd.f32 %v111, %v157
  %v183 = vadd.f32 %v112, %v157
  %v184 = vadd.f32 %v113, %v157
  %v185 = vadd.f32 %v114, %v157
  %v186 = vadd.f32 %v115, %v157
  %v187 = vadd.f32 %v116, %v157
  %v188 = vadd.f32 %v117, %v157
  %v189 = vadd.f32 %v118, %v157
  %v190 = vadd.f32 %v119, %v157
  %v191 = vadd.f32 %v120, %v157
  %v192 = vadd.f32 %v121, %v157
  %v193 = vadd.f32 %v122, %v157
  %v194 = vadd.f32 %v123, %v157
  %v195 = vadd.f32 %v124, %v157
  %v196 = vadd.f32 %v125, %v157
  %v197 = vadd.f32 %v126, %v157
  %v198 = vadd.f32 %v127, %v157
  %v199 = vadd.f32 %v128, %v157
  %v200 = vadd.f32 %v129, %v157
  %v201 = vadd.f32 %v130, %v157
  %v202 = vadd.f32 %v131, %v157
  %v203 = vadd.f32 %v132, %v157
  %v204 = vadd.f32 %v133, %v157
  %v205 = vadd.f32 %v134, %v157
  %v206 = vadd.f32 %v135, %v157
  %v207 = vadd.f32 %v136, %v157
  %v208 = vadd.f32 %v137, %v157
  %v209 = vadd.f32 %v138, %v157
  %v210 = vadd.f32 %v139, %v157
  %v211 = vadd.f32 %v140, %v157
  %v212 = vadd.f32 %v141, %v157
  %v213 = vadd.f32 %v142, %v157
  %v214 = vadd.f32 %v143, %v157
  %v215 = vadd.f32 %v144, %v157
  %v216 = vadd.f32 %v145, %v157
  %v217 = vadd.f32 %v146, %v157
  %v218 = vadd.f32 %v147, %v157
  %v219 = vadd.f32 %v148, %v157
  %v220 = vadd.f32 %v149, %v157
  %v221 = vadd.f32 %v150, %v157
  %v222 = vadd.f32 %v151, %v157
  %v223 = vld [vmem:[%s3] sm:$0xff]
  %v224 = vld [vmem:[%s3 + $0x8] sm:$0xff]
  %v225 = vld [vmem:[%s3 + $0x10] sm:$0xff]
  %v226 = vld [vmem:[%s3 + $0x18] sm:$0xff]
  %v227 = vld [vmem:[%s3 + $0x20] sm:$0xff]
  %v228 = vld [vmem:[%s3 + $0x28] sm:$0xff]
  %v229 = vld [vmem:[%s3 + $0x30] sm:$0xff]
  %v230 = vld [vmem:[%s3 + $0x38] sm:$0xff]
  %v231 = vld [vmem:[%s3 + $0x40] sm:$0xff]
  %v232 = vld [vmem:[%s3 + $0x48] sm:$0xff]
  %v233 = vld [vmem:[%s3 + $0x50] sm:$0xff]
  %v234 = vld [vmem:[%s3 + $0x58] sm:$0xff]
  %v235 = vld [vmem:[%s3 + $0x60] sm:$0xff]
  %v236 = vld [vmem:[%s3 + $0x68] sm:$0xff]
  %v237 = vld [vmem:[%s3 + $0x70] sm:$0xff]
  %v238 = vld [vmem:[%s3 + $0x78] sm:$0xff]
  %v239 = vld [vmem:[%s3 + $0x80] sm:$0xff]
  %v240 = vld [vmem:[%s3 + $0x88] sm:$0xff]
  %v241 = vld [vmem:[%s3 + $0x90] sm:$0xff]
  %v242 = vld [vmem:[%s3 + $0x98] sm:$0xff]
  %v243 = vld [vmem:[%s3 + $0xa0] sm:$0xff]
  %v244 = vld [vmem:[%s3 + $0xa8] sm:$0xff]
  %v245 = vld [vmem:[%s3 + $0xb0] sm:$0xff]
  %v246 = vld [vmem:[%s3 + $0xb8] sm:$0xff]
  %v247 = vld [vmem:[%s3 + $0xc0] sm:$0xff]
  %v248 = vld [vmem:[%s3 + $0xc8] sm:$0xff]
  %v249 = vld [vmem:[%s3 + $0xd0] sm:$0xff]
  %v250 = vld [vmem:[%s3 + $0xd8] sm:$0xff]
  %v251 = vld [vmem:[%s3 + $0xe0] sm:$0xff]
  %v252 = vld [vmem:[%s3 + $0xe8] sm:$0xff]
  %v253 = vld [vmem:[%s3 + $0xf0] sm:$0xff]
  %v254 = vld [vmem:[%s3 + $0xf8] sm:$0xff]
  %v255 = vld [vmem:[%s3 + $0x100] sm:$0xff]
  %v256 = vld [vmem:[%s3 + $0x108] sm:$0xff]
  %v257 = vld [vmem:[%s3 + $0x110] sm:$0xff]
  %v258 = vld [vmem:[%s3 + $0x118] sm:$0xff]
  %v259 = vld [vmem:[%s3 + $0x120] sm:$0xff]
  %v260 = vld [vmem:[%s3 + $0x128] sm:$0xff]
  %v261 = vld [vmem:[%s3 + $0x130] sm:$0xff]
  %v262 = vld [vmem:[%s3 + $0x138] sm:$0xff]
  %v263 = vld [vmem:[%s3 + $0x140] sm:$0xff]
  %v264 = vld [vmem:[%s3 + $0x148] sm:$0xff]
  %v265 = vld [vmem:[%s3 + $0x150] sm:$0xff]
  %v266 = vld [vmem:[%s3 + $0x158] sm:$0xff]
  %v267 = vld [vmem:[%s3 + $0x160] sm:$0xff]
  %v268 = vld [vmem:[%s3 + $0x168] sm:$0xff]
  %v269 = vld [vmem:[%s3 + $0x170] sm:$0xff]
  %v270 = vld [vmem:[%s3 + $0x178] sm:$0xff]
  %v271 = vld [vmem:[%s3 + $0x180] sm:$0xff]
  %v272 = vld [vmem:[%s3 + $0x188] sm:$0xff]
  %v273 = vld [vmem:[%s3 + $0x190] sm:$0xff]
  %v274 = vld [vmem:[%s3 + $0x198] sm:$0xff]
  %v275 = vld [vmem:[%s3 + $0x1a0] sm:$0xff]
  %v276 = vld [vmem:[%s3 + $0x1a8] sm:$0xff]
  %v277 = vld [vmem:[%s3 + $0x1b0] sm:$0xff]
  %v278 = vld [vmem:[%s3 + $0x1b8] sm:$0xff]
  %v279 = vld [vmem:[%s3 + $0x1c0] sm:$0xff]
  %v280 = vld [vmem:[%s3 + $0x1c8] sm:$0xff]
  %v281 = vld [vmem:[%s3 + $0x1d0] sm:$0xff]
  %v282 = vld [vmem:[%s3 + $0x1d8] sm:$0xff]
  %v283 = vld [vmem:[%s3 + $0x1e0] sm:$0xff]
  %v284 = vld [vmem:[%s3 + $0x1e8] sm:$0xff]
  %v285 = vld [vmem:[%s3 + $0x1f0] sm:$0xff]
  %v286 = vld [vmem:[%s3 + $0x1f8] sm:$0xff]
  %v287 = vadd.f32 %v159, %v223
  %v288 = vadd.f32 %v160, %v224
  %v289 = vadd.f32 %v161, %v225
  %v290 = vadd.f32 %v162, %v226
  %v291 = vadd.f32 %v163, %v227
  %v292 = vadd.f32 %v164, %v228
  %v293 = vadd.f32 %v165, %v229
  %v294 = vadd.f32 %v166, %v230
  %v295 = vadd.f32 %v167, %v231
  %v296 = vadd.f32 %v168, %v232
  %v297 = vadd.f32 %v169, %v233
  %v298 = vadd.f32 %v170, %v234
  %v299 = vadd.f32 %v171, %v235
  %v300 = vadd.f32 %v172, %v236
  %v301 = vadd.f32 %v173, %v237
  %v302 = vadd.f32 %v174, %v238
  %v303 = vadd.f32 %v175, %v239
  %v304 = vadd.f32 %v176, %v240
  %v305 = vadd.f32 %v177, %v241
  %v306 = vadd.f32 %v178, %v242
  %v307 = vadd.f32 %v179, %v243
  %v308 = vadd.f32 %v180, %v244
  %v309 = vadd.f32 %v181, %v245
  %v310 = vadd.f32 %v182, %v246
  %v311 = vadd.f32 %v183, %v247
  %v312 = vadd.f32 %v184, %v248
  %v313 = vadd.f32 %v185, %v249
  %v314 = vadd.f32 %v186, %v250
  %v315 = vadd.f32 %v187, %v251
  %v316 = vadd.f32 %v188, %v252
  %v317 = vadd.f32 %v189, %v253
  %v318 = vadd.f32 %v190, %v254
  %v319 = vadd.f32 %v191, %v255
  %v320 = vadd.f32 %v192, %v256
  %v321 = vadd.f32 %v193, %v257
  %v322 = vadd.f32 %v194, %v258
  %v323 = vadd.f32 %v195, %v259
  %v324 = vadd.f32 %v196, %v260
  %v325 = vadd.f32 %v197, %v261
  %v326 = vadd.f32 %v198, %v262
  %v327 = vadd.f32 %v199, %v263
  %v328 = vadd.f32 %v200, %v264
  %v329 = vadd.f32 %v201, %v265
  %v330 = vadd.f32 %v202, %v266
  %v331 = vadd.f32 %v203, %v267
  %v332 = vadd.f32 %v204, %v268
  %v333 = vadd.f32 %v205, %v269
  %v334 = vadd.f32 %v206, %v270
  %v335 = vadd.f32 %v207, %v271
  %v336 = vadd.f32 %v208, %v272
  %v337 = vadd.f32 %v209, %v273
  %v338 = vadd.f32 %v210, %v274
  %v339 = vadd.f32 %v211, %v275
  %v340 = vadd.f32 %v212, %v276
  %v341 = vadd.f32 %v213, %v277
  %v342 = vadd.f32 %v214, %v278
  %v343 = vadd.f32 %v215, %v279
  %v344 = vadd.f32 %v216, %v280
  %v345 = vadd.f32 %v217, %v281
  %v346 = vadd.f32 %v218, %v282
  %v347 = vadd.f32 %v219, %v283
  %v348 = vadd.f32 %v220, %v284
  %v349 = vadd.f32 %v221, %v285
  %v350 = vadd.f32 %v222, %v286
  %v351 = vmax.f32 %v287, 0.0
  %v352 = vmax.f32 %v288, 0.0
  %v353 = vmax.f32 %v289, 0.0
  %v354 = vmax.f32 %v290, 0.0
  %v355 = vmax.f32 %v291, 0.0
  %v356 = vmax.f32 %v292, 0.0
  %v357 = vmax.f32 %v293, 0.0
  %v358 = vmax.f32 %v294, 0.0
  %v359 = vmax.f32 %v295, 0.0
  %v360 = vmax.f32 %v296, 0.0
  %v361 = vmax.f32 %v297, 0.0
  %v362 = vmax.f32 %v298, 0.0
  %v363 = vmax.f32 %v299, 0.0
  %v364 = vmax.f32 %v300, 0.0
  %v365 = vmax.f32 %v301, 0.0
  %v366 = vmax.f32 %v302, 0.0
  %v367 = vmax.f32 %v303, 0.0
  %v368 = vmax.f32 %v304, 0.0
  %v369 = vmax.f32 %v305, 0.0
  %v370 = vmax.f32 %v306, 0.0
  %v371 = vmax.f32 %v307, 0.0
  %v372 = vmax.f32 %v308, 0.0
  %v373 = vmax.f32 %v309, 0.0
  %v374 = vmax.f32 %v310, 0.0
  %v375 = vmax.f32 %v311, 0.0
  %v376 = vmax.f32 %v312, 0.0
  %v377 = vmax.f32 %v313, 0.0
  %v378 = vmax.f32 %v314, 0.0
  %v379 = vmax.f32 %v315, 0.0
  %v380 = vmax.f32 %v316, 0.0
  %v381 = vmax.f32 %v317, 0.0
  %v382 = vmax.f32 %v318, 0.0
  %v383 = vmax.f32 %v319, 0.0
  %v384 = vmax.f32 %v320, 0.0
  %v385 = vmax.f32 %v321, 0.0
  %v386 = vmax.f32 %v322, 0.0
  %v387 = vmax.f32 %v323, 0.0
  %v388 = vmax.f32 %v324, 0.0
  %v389 = vmax.f32 %v325, 0.0
  %v390 = vmax.f32 %v326, 0.0
  %v391 = vmax.f32 %v327, 0.0
  %v392 = vmax.f32 %v328, 0.0
  %v393 = vmax.f32 %v329, 0.0
  %v394 = vmax.f32 %v330, 0.0
  %v395 = vmax.f32 %v331, 0.0
  %v396 = vmax.f32 %v332, 0.0
  %v397 = vmax.f32 %v333, 0.0
  %v398 = vmax.f32 %v334, 0.0
  %v399 = vmax.f32 %v335, 0.0
  %v400 = vmax.f32 %v336, 0.0
  %v401 = vmax.f32 %v337, 0.0
  %v402 = vmax.f32 %v338, 0.0
  %v403 = vmax.f32 %v339, 0.0
  %v404 = vmax.f32 %v340, 0.0
  %v405 = vmax.f32 %v341, 0.0
  %v406 = vmax.f32 %v342, 0.0
  %v407 = vmax.f32 %v343, 0.0
  %v408 = vmax.f32 %v344, 0.0
  %v409 = vmax.f32 %v345, 0.0
  %v410 = vmax.f32 %v346, 0.0
  %v411 = vmax.f32 %v347, 0.0
  %v412 = vmax.f32 %v348, 0.0
  %v413 = vmax.f32 %v349, 0.0
  %v414 = vmax.f32 %v350, 0.0
  %415 = vst [vmem:[%s4] sm:$0xff] %v351
  %416 = vst [vmem:[%s4 + $0x8] sm:$0xff] %v352
  %417 = vst [vmem:[%s4 + $0x10] sm:$0xff] %v353
  %418 = vst [vmem:[%s4 + $0x18] sm:$0xff] %v354
  %419 = vst [vmem:[%s4 + $0x20] sm:$0xff] %v355
  %420 = vst [vmem:[%s4 + $0x28] sm:$0xff] %v356
  %421 = vst [vmem:[%s4 + $0x30] sm:$0xff] %v357
  %422 = vst [vmem:[%s4 + $0x38] sm:$0xff] %v358
  %423 = vst [vmem:[%s4 + $0x40] sm:$0xff] %v359
  %424 = vst [vmem:[%s4 + $0x48] sm:$0xff] %v360
  %425 = vst [vmem:[%s4 + $0x50] sm:$0xff] %v361
  %426 = vst [vmem:[%s4 + $0x58] sm:$0xff] %v362
  %427 = vst [vmem:[%s4 + $0x60] sm:$0xff] %v363
  %428 = vst [vmem:[%s4 + $0x68] sm:$0xff] %v364
  %429 = vst [vmem:[%s4 + $0x70] sm:$0xff] %v365
  %430 = vst [vmem:[%s4 + $0x78] sm:$0xff] %v366
  %431 = vst [vmem:[%s4 + $0x80] sm:$0xff] %v367
  %432 = vst [vmem:[%s4 + $0x88] sm:$0xff] %v368
  %433 = vst [vmem:[%s4 + $0x90] sm:$0xff] %v369
  %434 = vst [vmem:[%s4 + $0x98] sm:$0xff] %v370
  %435 = vst [vmem:[%s4 + $0xa0] sm:$0xff] %v371
  %436 = vst [vmem:[%s4 + $0xa8] sm:$0xff] %v372
  %437 = vst [vmem:[%s4 + $0xb0] sm:$0xff] %v373
  %438 = vst [vmem:[%s4 + $0xb8] sm:$0xff] %v374
  %439 = vst [vmem:[%s4 + $0xc0] sm:$0xff] %v375
  %440 = vst [vmem:[%s4 + $0xc8] sm:$0xff] %v376
  %441 = vst [vmem:[%s4 + $0xd0] sm:$0xff] %v377
  %442 = vst [vmem:[%s4 + $0xd8] sm:$0xff] %v378
  %443 = vst [vmem:[%s4 + $0xe0] sm:$0xff] %v379
  %444 = vst [vmem:[%s4 + $0xe8] sm:$0xff] %v380
  %445 = vst [vmem:[%s4 + $0xf0] sm:$0xff] %v381
  %446 = vst [vmem:[%s4 + $0xf8] sm:$0xff] %v382
  %447 = vst [vmem:[%s4 + $0x100] sm:$0xff] %v383
  %448 = vst [vmem:[%s4 + $0x108] sm:$0xff] %v384
  %449 = vst [vmem:[%s4 + $0x110] sm:$0xff] %v385
  %450 = vst [vmem:[%s4 + $0x118] sm:$0xff] %v386
  %451 = vst [vmem:[%s4 + $0x120] sm:$0xff] %v387
  %452 = vst [vmem:[%s4 + $0x128] sm:$0xff] %v388
  %453 = vst [vmem:[%s4 + $0x130] sm:$0xff] %v389
  %454 = vst [vmem:[%s4 + $0x138] sm:$0xff] %v390
  %455 = vst [vmem:[%s4 + $0x140] sm:$0xff] %v391
  %456 = vst [vmem:[%s4 + $0x148] sm:$0xff] %v392
  %457 = vst [vmem:[%s4 + $0x150] sm:$0xff] %v393
  %458 = vst [vmem:[%s4 + $0x158] sm:$0xff] %v394
  %459 = vst [vmem:[%s4 + $0x160] sm:$0xff] %v395
  %460 = vst [vmem:[%s4 + $0x168] sm:$0xff] %v396
  %461 = vst [vmem:[%s4 + $0x170] sm:$0xff] %v397
  %462 = vst [vmem:[%s4 + $0x178] sm:$0xff] %v398
  %463 = vst [vmem:[%s4 + $0x180] sm:$0xff] %v399
  %464 = vst [vmem:[%s4 + $0x188] sm:$0xff] %v400
  %465 = vst [vmem:[%s4 + $0x190] sm:$0xff] %v401
  %466 = vst [vmem:[%s4 + $0x198] sm:$0xff] %v402
  %467 = vst [vmem:[%s4 + $0x1a0] sm:$0xff] %v403
  %468 = vst [vmem:[%s4 + $0x1a8] sm:$0xff] %v404
  %469 = vst [vmem:[%s4 + $0x1b0] sm:$0xff] %v405
  %470 = vst [vmem:[%s4 + $0x1b8] sm:$0xff] %v406
  %471 = vst [vmem:[%s4 + $0x1c0] sm:$0xff] %v407
  %472 = vst [vmem:[%s4 + $0x1c8] sm:$0xff] %v408
  %473 = vst [vmem:[%s4 + $0x1d0] sm:$0xff] %v409
  %474 = vst [vmem:[%s4 + $0x1d8] sm:$0xff] %v410
  %475 = vst [vmem:[%s4 + $0x1e0] sm:$0xff] %v411
  %476 = vst [vmem:[%s4 + $0x1e8] sm:$0xff] %v412
  %477 = vst [vmem:[%s4 + $0x1f0] sm:$0xff] %v413
  %478 = vst [vmem:[%s4 + $0x1f8] sm:$0xff] %v414
  // Predicated region
  $region18: #{residual_forward.7} parent=0 // pred_check
    _
  $region19: #{residual_forward.7} parent=0 // pred_check_branch
    %480 = sbr.rel (0) target = $region21
  $region20: #{residual_forward.7} parent=0 // pred_region
    _
  $region21: #{residual_forward.7} parent=0 // pred_fallthru
    _
  // Predicated region
  $region22: #{residual_forward.7} parent=0 // pred_check
    _
  $region23: #{residual_forward.7} parent=0 // pred_check_branch
    %482 = sbr.rel (0) target = $region25
  $region24: #{residual_forward.7} parent=0 // pred_region
    _
  $region25: #{residual_forward.7} parent=0 // pred_fallthru
    _

// kernel: residual_forward.5
$region0: #{residual_forward.5}
  #allocation0 [shape = 'u32[]', space=smem, size = 0x4, offset = 0x4, fixed_abs, tag = 'smem constant byte address 0x4 - core index']
  #allocation1 [shape = 'u32[144,128]{1,0:T(1,128)}', space=vmem, size = 0x12000, scoped, tag = 'internal scratch']
  %s0 = inlined_call_operand.vmem [shape: f32[512,128], index: 0, kind: input, shape index: {}]
  %s1 = inlined_call_operand.vmem [shape: f32[1,128], index: 1, kind: input, shape index: {}]
  %s2 = inlined_call_operand.vmem [shape: f32[1,128], index: 2, kind: input, shape index: {}]
  %s3 = inlined_call_operand.vmem [shape: bf16[512,128], index: 3, kind: output, shape index: {}]
  %s4 = sld [smem:[#allocation0]]
  $region22: #{residual_forward.5} parent=0
    _
  %s6 = ssub.s32 1, %s4
  %s7 = scalar_select 0, %s6, %s4
  // Predicated region
  $region2: #{residual_forward.5} parent=0 // pred_check
    _
  $region3: #{residual_forward.5} parent=0 // pred_check_branch
    %9 = sbr.rel (0) target = $region5
  $region4: #{residual_forward.5} parent=0 // pred_region
    _
  $region5: #{residual_forward.5} parent=0 // pred_fallthru
    _
  // Predicated region
  $region6: #{residual_forward.5} parent=0 // pred_check
    _
  $region7: #{residual_forward.5} parent=0 // pred_check_branch
    %11 = sbr.rel (0) target = $region9
  $region8: #{residual_forward.5} parent=0 // pred_region
    _
  $region9: #{residual_forward.5} parent=0 // pred_fallthru
    _
  // Predicated region
  $region10: #{residual_forward.5} parent=0 // pred_check
    _
  $region11: #{residual_forward.5} parent=0 // pred_check_branch
    %13 = sbr.rel (0) target = $region13
  $region12: #{residual_forward.5} parent=0 // pred_region
    _
  $region13: #{residual_forward.5} parent=0 // pred_fallthru
    _
  %v14 = vld [vmem:[%s0] sm:$0xff]
  %v15 = vld [vmem:[%s0 + $0x8] sm:$0xff]
  %v16 = vld [vmem:[%s0 + $0x10] sm:$0xff]
  %v17 = vld [vmem:[%s0 + $0x18] sm:$0xff]
  %v18 = vld [vmem:[%s0 + $0x20] sm:$0xff]
  %v19 = vld [vmem:[%s0 + $0x28] sm:$0xff]
  %v20 = vld [vmem:[%s0 + $0x30] sm:$0xff]
  %v21 = vld [vmem:[%s0 + $0x38] sm:$0xff]
  %v22 = vld [vmem:[%s0 + $0x40] sm:$0xff]
  %v23 = vld [vmem:[%s0 + $0x48] sm:$0xff]
  %v24 = vld [vmem:[%s0 + $0x50] sm:$0xff]
  %v25 = vld [vmem:[%s0 + $0x58] sm:$0xff]
  %v26 = vld [vmem:[%s0 + $0x60] sm:$0xff]
  %v27 = vld [vmem:[%s0 + $0x68] sm:$0xff]
  %v28 = vld [vmem:[%s0 + $0x70] sm:$0xff]
  %v29 = vld [vmem:[%s0 + $0x78] sm:$0xff]
  %v30 = vld [vmem:[%s0 + $0x80] sm:$0xff]
  %v31 = vld [vmem:[%s0 + $0x88] sm:$0xff]
  %v32 = vld [vmem:[%s0 + $0x90] sm:$0xff]
  %v33 = vld [vmem:[%s0 + $0x98] sm:$0xff]
  %v34 = vld [vmem:[%s0 + $0xa0] sm:$0xff]
  %v35 = vld [vmem:[%s0 + $0xa8] sm:$0xff]
  %v36 = vld [vmem:[%s0 + $0xb0] sm:$0xff]
  %v37 = vld [vmem:[%s0 + $0xb8] sm:$0xff]
  %v38 = vld [vmem:[%s0 + $0xc0] sm:$0xff]
  %v39 = vld [vmem:[%s0 + $0xc8] sm:$0xff]
  %v40 = vld [vmem:[%s0 + $0xd0] sm:$0xff]
  %v41 = vld [vmem:[%s0 + $0xd8] sm:$0xff]
  %v42 = vld [vmem:[%s0 + $0xe0] sm:$0xff]
  %v43 = vld [vmem:[%s0 + $0xe8] sm:$0xff]
  %v44 = vld [vmem:[%s0 + $0xf0] sm:$0xff]
  %v45 = vld [vmem:[%s0 + $0xf8] sm:$0xff]
  %v46 = vld [vmem:[%s0 + $0x100] sm:$0xff]
  %v47 = vld [vmem:[%s0 + $0x108] sm:$0xff]
  %v48 = vld [vmem:[%s0 + $0x110] sm:$0xff]
  %v49 = vld [vmem:[%s0 + $0x118] sm:$0xff]
  %v50 = vld [vmem:[%s0 + $0x120] sm:$0xff]
  %v51 = vld [vmem:[%s0 + $0x128] sm:$0xff]
  %v52 = vld [vmem:[%s0 + $0x130] sm:$0xff]
  %v53 = vld [vmem:[%s0 + $0x138] sm:$0xff]
  %v54 = vld [vmem:[%s0 + $0x140] sm:$0xff]
  %v55 = vld [vmem:[%s0 + $0x148] sm:$0xff]
  %v56 = vld [vmem:[%s0 + $0x150] sm:$0xff]
  %v57 = vld [vmem:[%s0 + $0x158] sm:$0xff]
  %v58 = vld [vmem:[%s0 + $0x160] sm:$0xff]
  %v59 = vld [vmem:[%s0 + $0x168] sm:$0xff]
  %v60 = vld [vmem:[%s0 + $0x170] sm:$0xff]
  %v61 = vld [vmem:[%s0 + $0x178] sm:$0xff]
  %v62 = vld [vmem:[%s0 + $0x180] sm:$0xff]
  %v63 = vld [vmem:[%s0 + $0x188] sm:$0xff]
  %v64 = vld [vmem:[%s0 + $0x190] sm:$0xff]
  %v65 = vld [vmem:[%s0 + $0x198] sm:$0xff]
  %v66 = vld [vmem:[%s0 + $0x1a0] sm:$0xff]
  %v67 = vld [vmem:[%s0 + $0x1a8] sm:$0xff]
  %v68 = vld [vmem:[%s0 + $0x1b0] sm:$0xff]
  %v69 = vld [vmem:[%s0 + $0x1b8] sm:$0xff]
  %v70 = vld [vmem:[%s0 + $0x1c0] sm:$0xff]
  %v71 = vld [vmem:[%s0 + $0x1c8] sm:$0xff]
  %v72 = vld [vmem:[%s0 + $0x1d0] sm:$0xff]
  %v73 = vld [vmem:[%s0 + $0x1d8] sm:$0xff]
  %v74 = vld [vmem:[%s0 + $0x1e0] sm:$0xff]
  %v75 = vld [vmem:[%s0 + $0x1e8] sm:$0xff]
  %v76 = vld [vmem:[%s0 + $0x1f0] sm:$0xff]
  %v77 = vld [vmem:[%s0 + $0x1f8] sm:$0xff]
  %v78 = vld [vmem:[%s1] sm:$0x1]
  %v80 = vlaneseq
  %v81 = vshrl.u32 %v80, 7
  %v82 = vsub.s32 0, %v81
  %v83 = vrot.slane %v78, %v82
  %v85 = vmul.f32 %v14, %v83
  %v86 = vmul.f32 %v15, %v83
  %v87 = vmul.f32 %v16, %v83
  %v88 = vmul.f32 %v17, %v83
  %v89 = vmul.f32 %v18, %v83
  %v90 = vmul.f32 %v19, %v83
  %v91 = vmul.f32 %v20, %v83
  %v92 = vmul.f32 %v21, %v83
  %v93 = vmul.f32 %v22, %v83
  %v94 = vmul.f32 %v23, %v83
  %v95 = vmul.f32 %v24, %v83
  %v96 = vmul.f32 %v25, %v83
  %v97 = vmul.f32 %v26, %v83
  %v98 = vmul.f32 %v27, %v83
  %v99 = vmul.f32 %v28, %v83
  %v100 = vmul.f32 %v29, %v83
  %v101 = vmul.f32 %v30, %v83
  %v102 = vmul.f32 %v31, %v83
  %v103 = vmul.f32 %v32, %v83
  %v104 = vmul.f32 %v33, %v83
  %v105 = vmul.f32 %v34, %v83
  %v106 = vmul.f32 %v35, %v83
  %v107 = vmul.f32 %v36, %v83
  %v108 = vmul.f32 %v37, %v83
  %v109 = vmul.f32 %v38, %v83
  %v110 = vmul.f32 %v39, %v83
  %v111 = vmul.f32 %v40, %v83
  %v112 = vmul.f32 %v41, %v83
  %v113 = vmul.f32 %v42, %v83
  %v114 = vmul.f32 %v43, %v83
  %v115 = vmul.f32 %v44, %v83
  %v116 = vmul.f32 %v45, %v83
  %v117 = vmul.f32 %v46, %v83
  %v118 = vmul.f32 %v47, %v83
  %v119 = vmul.f32 %v48, %v83
  %v120 = vmul.f32 %v49, %v83
  %v121 = vmul.f32 %v50, %v83
  %v122 = vmul.f32 %v51, %v83
  %v123 = vmul.f32 %v52, %v83
  %v124 = vmul.f32 %v53, %v83
  %v125 = vmul.f32 %v54, %v83
  %v126 = vmul.f32 %v55, %v83
  %v127 = vmul.f32 %v56, %v83
  %v128 = vmul.f32 %v57, %v83
  %v129 = vmul.f32 %v58, %v83
  %v130 = vmul.f32 %v59, %v83
  %v131 = vmul.f32 %v60, %v83
  %v132 = vmul.f32 %v61, %v83
  %v133 = vmul.f32 %v62, %v83
  %v134 = vmul.f32 %v63, %v83
  %v135 = vmul.f32 %v64, %v83
  %v136 = vmul.f32 %v65, %v83
  %v137 = vmul.f32 %v66, %v83
  %v138 = vmul.f32 %v67, %v83
  %v139 = vmul.f32 %v68, %v83
  %v140 = vmul.f32 %v69, %v83
  %v141 = vmul.f32 %v70, %v83
  %v142 = vmul.f32 %v71, %v83
  %v143 = vmul.f32 %v72, %v83
  %v144 = vmul.f32 %v73, %v83
  %v145 = vmul.f32 %v74, %v83
  %v146 = vmul.f32 %v75, %v83
  %v147 = vmul.f32 %v76, %v83
  %v148 = vmul.f32 %v77, %v83
  %v149 = vld [vmem:[%s2] sm:$0x1]
  %v151 = vlaneseq
  %v152 = vshrl.u32 %v151, 7
  %v153 = vsub.s32 0, %v152
  %v154 = vrot.slane %v149, %v153
  %v156 = vadd.f32 %v85, %v154
  %v157 = vadd.f32 %v86, %v154
  %v158 = vadd.f32 %v87, %v154
  %v159 = vadd.f32 %v88, %v154
  %v160 = vadd.f32 %v89, %v154
  %v161 = vadd.f32 %v90, %v154
  %v162 = vadd.f32 %v91, %v154
  %v163 = vadd.f32 %v92, %v154
  %v164 = vadd.f32 %v93, %v154
  %v165 = vadd.f32 %v94, %v154
  %v166 = vadd.f32 %v95, %v154
  %v167 = vadd.f32 %v96, %v154
  %v168 = vadd.f32 %v97, %v154
  %v169 = vadd.f32 %v98, %v154
  %v170 = vadd.f32 %v99, %v154
  %v171 = vadd.f32 %v100, %v154
  %v172 = vadd.f32 %v101, %v154
  %v173 = vadd.f32 %v102, %v154
  %v174 = vadd.f32 %v103, %v154
  %v175 = vadd.f32 %v104, %v154
  %v176 = vadd.f32 %v105, %v154
  %v177 = vadd.f32 %v106, %v154
  %v178 = vadd.f32 %v107, %v154
  %v179 = vadd.f32 %v108, %v154
  %v180 = vadd.f32 %v109, %v154
  %v181 = vadd.f32 %v110, %v154
  %v182 = vadd.f32 %v111, %v154
  %v183 = vadd.f32 %v112, %v154
  %v184 = vadd.f32 %v113, %v154
  %v185 = vadd.f32 %v114, %v154
  %v186 = vadd.f32 %v115, %v154
  %v187 = vadd.f32 %v116, %v154
  %v188 = vadd.f32 %v117, %v154
  %v189 = vadd.f32 %v118, %v154
  %v190 = vadd.f32 %v119, %v154
  %v191 = vadd.f32 %v120, %v154
  %v192 = vadd.f32 %v121, %v154
  %v193 = vadd.f32 %v122, %v154
  %v194 = vadd.f32 %v123, %v154
  %v195 = vadd.f32 %v124, %v154
  %v196 = vadd.f32 %v125, %v154
  %v197 = vadd.f32 %v126, %v154
  %v198 = vadd.f32 %v127, %v154
  %v199 = vadd.f32 %v128, %v154
  %v200 = vadd.f32 %v129, %v154
  %v201 = vadd.f32 %v130, %v154
  %v202 = vadd.f32 %v131, %v154
  %v203 = vadd.f32 %v132, %v154
  %v204 = vadd.f32 %v133, %v154
  %v205 = vadd.f32 %v134, %v154
  %v206 = vadd.f32 %v135, %v154
  %v207 = vadd.f32 %v136, %v154
  %v208 = vadd.f32 %v137, %v154
  %v209 = vadd.f32 %v138, %v154
  %v210 = vadd.f32 %v139, %v154
  %v211 = vadd.f32 %v140, %v154
  %v212 = vadd.f32 %v141, %v154
  %v213 = vadd.f32 %v142, %v154
  %v214 = vadd.f32 %v143, %v154
  %v215 = vadd.f32 %v144, %v154
  %v216 = vadd.f32 %v145, %v154
  %v217 = vadd.f32 %v146, %v154
  %v218 = vadd.f32 %v147, %v154
  %v219 = vadd.f32 %v148, %v154
  %v220 = vmax.f32 %v156, 0.0
  %v221 = vmax.f32 %v157, 0.0
  %v222 = vmax.f32 %v158, 0.0
  %v223 = vmax.f32 %v159, 0.0
  %v224 = vmax.f32 %v160, 0.0
  %v225 = vmax.f32 %v161, 0.0
  %v226 = vmax.f32 %v162, 0.0
  %v227 = vmax.f32 %v163, 0.0
  %v228 = vmax.f32 %v164, 0.0
  %v229 = vmax.f32 %v165, 0.0
  %v230 = vmax.f32 %v166, 0.0
  %v231 = vmax.f32 %v167, 0.0
  %v232 = vmax.f32 %v168, 0.0
  %v233 = vmax.f32 %v169, 0.0
  %v234 = vmax.f32 %v170, 0.0
  %v235 = vmax.f32 %v171, 0.0
  %v236 = vmax.f32 %v172, 0.0
  %v237 = vmax.f32 %v173, 0.0
  %v238 = vmax.f32 %v174, 0.0
  %v239 = vmax.f32 %v175, 0.0
  %v240 = vmax.f32 %v176, 0.0
  %v241 = vmax.f32 %v177, 0.0
  %v242 = vmax.f32 %v178, 0.0
  %v243 = vmax.f32 %v179, 0.0
  %v244 = vmax.f32 %v180, 0.0
  %v245 = vmax.f32 %v181, 0.0
  %v246 = vmax.f32 %v182, 0.0
  %v247 = vmax.f32 %v183, 0.0
  %v248 = vmax.f32 %v184, 0.0
  %v249 = vmax.f32 %v185, 0.0
  %v250 = vmax.f32 %v186, 0.0
  %v251 = vmax.f32 %v187, 0.0
  %v252 = vmax.f32 %v188, 0.0
  %v253 = vmax.f32 %v189, 0.0
  %v254 = vmax.f32 %v190, 0.0
  %v255 = vmax.f32 %v191, 0.0
  %v256 = vmax.f32 %v192, 0.0
  %v257 = vmax.f32 %v193, 0.0
  %v258 = vmax.f32 %v194, 0.0
  %v259 = vmax.f32 %v195, 0.0
  %v260 = vmax.f32 %v196, 0.0
  %v261 = vmax.f32 %v197, 0.0
  %v262 = vmax.f32 %v198, 0.0
  %v263 = vmax.f32 %v199, 0.0
  %v264 = vmax.f32 %v200, 0.0
  %v265 = vmax.f32 %v201, 0.0
  %v266 = vmax.f32 %v202, 0.0
  %v267 = vmax.f32 %v203, 0.0
  %v268 = vmax.f32 %v204, 0.0
  %v269 = vmax.f32 %v205, 0.0
  %v270 = vmax.f32 %v206, 0.0
  %v271 = vmax.f32 %v207, 0.0
  %v272 = vmax.f32 %v208, 0.0
  %v273 = vmax.f32 %v209, 0.0
  %v274 = vmax.f32 %v210, 0.0
  %v275 = vmax.f32 %v211, 0.0
  %v276 = vmax.f32 %v212, 0.0
  %v277 = vmax.f32 %v213, 0.0
  %v278 = vmax.f32 %v214, 0.0
  %v279 = vmax.f32 %v215, 0.0
  %v280 = vmax.f32 %v216, 0.0
  %v281 = vmax.f32 %v217, 0.0
  %v282 = vmax.f32 %v218, 0.0
  %v283 = vmax.f32 %v219, 0.0
  %v284 = vpack.c.bf16 %v221, %v220
  %v285 = vpack.c.bf16 %v223, %v222
  %v286 = vpack.c.bf16 %v225, %v224
  %v287 = vpack.c.bf16 %v227, %v226
  %v288 = vpack.c.bf16 %v229, %v228
  %v289 = vpack.c.bf16 %v231, %v230
  %v290 = vpack.c.bf16 %v233, %v232
  %v291 = vpack.c.bf16 %v235, %v234
  %v292 = vpack.c.bf16 %v237, %v236
  %v293 = vpack.c.bf16 %v239, %v238
  %v294 = vpack.c.bf16 %v241, %v240
  %v295 = vpack.c.bf16 %v243, %v242
  %v296 = vpack.c.bf16 %v245, %v244
  %v297 = vpack.c.bf16 %v247, %v246
  %v298 = vpack.c.bf16 %v249, %v248
  %v299 = vpack.c.bf16 %v251, %v250
  %v300 = vpack.c.bf16 %v253, %v252
  %v301 = vpack.c.bf16 %v255, %v254
  %v302 = vpack.c.bf16 %v257, %v256
  %v303 = vpack.c.bf16 %v259, %v258
  %v304 = vpack.c.bf16 %v261, %v260
  %v305 = vpack.c.bf16 %v263, %v262
  %v306 = vpack.c.bf16 %v265, %v264
  %v307 = vpack.c.bf16 %v267, %v266
  %v308 = vpack.c.bf16 %v269, %v268
  %v309 = vpack.c.bf16 %v271, %v270
  %v310 = vpack.c.bf16 %v273, %v272
  %v311 = vpack.c.bf16 %v275, %v274
  %v312 = vpack.c.bf16 %v277, %v276
  %v313 = vpack.c.bf16 %v279, %v278
  %v314 = vpack.c.bf16 %v281, %v280
  %v315 = vpack.c.bf16 %v283, %v282
  %v348 = vunpack.c.l.b16 %v284
  %v349 = vunpack.c.h.b16 %v284
  %v350 = vunpack.c.l.b16 %v285
  %v351 = vunpack.c.h.b16 %v285
  %v352 = vunpack.c.l.b16 %v286
  %v353 = vunpack.c.h.b16 %v286
  %v354 = vunpack.c.l.b16 %v287
  %v355 = vunpack.c.h.b16 %v287
  %v356 = vunpack.c.l.b16 %v288
  %v357 = vunpack.c.h.b16 %v288
  %v358 = vunpack.c.l.b16 %v289
  %v359 = vunpack.c.h.b16 %v289
  %v360 = vunpack.c.l.b16 %v290
  %v361 = vunpack.c.h.b16 %v290
  %v362 = vunpack.c.l.b16 %v291
  %v363 = vunpack.c.h.b16 %v291
  %v364 = vunpack.c.l.b16 %v292
  %v365 = vunpack.c.h.b16 %v292
  %v366 = vunpack.c.l.b16 %v293
  %v367 = vunpack.c.h.b16 %v293
  %v368 = vunpack.c.l.b16 %v294
  %v369 = vunpack.c.h.b16 %v294
  %v370 = vunpack.c.l.b16 %v295
  %v371 = vunpack.c.h.b16 %v295
  %v372 = vunpack.c.l.b16 %v296
  %v373 = vunpack.c.h.b16 %v296
  %v374 = vunpack.c.l.b16 %v297
  %v375 = vunpack.c.h.b16 %v297
  %v376 = vunpack.c.l.b16 %v298
  %v377 = vunpack.c.h.b16 %v298
  %v378 = vunpack.c.l.b16 %v299
  %v379 = vunpack.c.h.b16 %v299
  %v380 = vunpack.c.l.b16 %v300
  %v381 = vunpack.c.h.b16 %v300
  %v382 = vunpack.c.l.b16 %v301
  %v383 = vunpack.c.h.b16 %v301
  %v384 = vunpack.c.l.b16 %v302
  %v385 = vunpack.c.h.b16 %v302
  %v386 = vunpack.c.l.b16 %v303
  %v387 = vunpack.c.h.b16 %v303
  %v388 = vunpack.c.l.b16 %v304
  %v389 = vunpack.c.h.b16 %v304
  %v390 = vunpack.c.l.b16 %v305
  %v391 = vunpack.c.h.b16 %v305
  %v392 = vunpack.c.l.b16 %v306
  %v393 = vunpack.c.h.b16 %v306
  %v394 = vunpack.c.l.b16 %v307
  %v395 = vunpack.c.h.b16 %v307
  %v396 = vunpack.c.l.b16 %v308
  %v397 = vunpack.c.h.b16 %v308
  %v398 = vunpack.c.l.b16 %v309
  %v399 = vunpack.c.h.b16 %v309
  %v400 = vunpack.c.l.b16 %v310
  %v401 = vunpack.c.h.b16 %v310
  %v402 = vunpack.c.l.b16 %v311
  %v403 = vunpack.c.h.b16 %v311
  %v404 = vunpack.c.l.b16 %v312
  %v405 = vunpack.c.h.b16 %v312
  %v406 = vunpack.c.l.b16 %v313
  %v407 = vunpack.c.h.b16 %v313
  %v408 = vunpack.c.l.b16 %v314
  %v409 = vunpack.c.h.b16 %v314
  %v410 = vunpack.c.l.b16 %v315
  %v411 = vunpack.c.h.b16 %v315
  %v412 = vpack.c.b16 %v348, %v348
  %v413 = vpack.c.b16 %v349, %v349
  %v414 = vpack.c.b16 %v350, %v350
  %v415 = vpack.c.b16 %v351, %v351
  %v416 = vpack.c.b16 %v352, %v352
  %v417 = vpack.c.b16 %v353, %v353
  %v418 = vpack.c.b16 %v354, %v354
  %v419 = vpack.c.b16 %v355, %v355
  %v420 = vpack.c.b16 %v356, %v356
  %v421 = vpack.c.b16 %v357, %v357
  %v422 = vpack.c.b16 %v358, %v358
  %v423 = vpack.c.b16 %v359, %v359
  %v424 = vpack.c.b16 %v360, %v360
  %v425 = vpack.c.b16 %v361, %v361
  %v426 = vpack.c.b16 %v362, %v362
  %v427 = vpack.c.b16 %v363, %v363
  %v428 = vpack.c.b16 %v364, %v364
  %v429 = vpack.c.b16 %v365, %v365
  %v430 = vpack.c.b16 %v366, %v366
  %v431 = vpack.c.b16 %v367, %v367
  %v432 = vpack.c.b16 %v368, %v368
  %v433 = vpack.c.b16 %v369, %v369
  %v434 = vpack.c.b16 %v370, %v370
  %v435 = vpack.c.b16 %v371, %v371
  %v436 = vpack.c.b16 %v372, %v372
  %v437 = vpack.c.b16 %v373, %v373
  %v438 = vpack.c.b16 %v374, %v374
  %v439 = vpack.c.b16 %v375, %v375
  %v440 = vpack.c.b16 %v376, %v376
  %v441 = vpack.c.b16 %v377, %v377
  %v442 = vpack.c.b16 %v378, %v378
  %v443 = vpack.c.b16 %v379, %v379
  %v444 = vpack.c.b16 %v380, %v380
  %v445 = vpack.c.b16 %v381, %v381
  %v446 = vpack.c.b16 %v382, %v382
  %v447 = vpack.c.b16 %v383, %v383
  %v448 = vpack.c.b16 %v384, %v384
  %v449 = vpack.c.b16 %v385, %v385
  %v450 = vpack.c.b16 %v386, %v386
  %v451 = vpack.c.b16 %v387, %v387
  %v452 = vpack.c.b16 %v388, %v388
  %v453 = vpack.c.b16 %v389, %v389
  %v454 = vpack.c.b16 %v390, %v390
  %v455 = vpack.c.b16 %v391, %v391
  %v456 = vpack.c.b16 %v392, %v392
  %v457 = vpack.c.b16 %v393, %v393
  %v458 = vpack.c.b16 %v394, %v394
  %v459 = vpack.c.b16 %v395, %v395
  %v460 = vpack.c.b16 %v396, %v396
  %v461 = vpack.c.b16 %v397, %v397
  %v462 = vpack.c.b16 %v398, %v398
  %v463 = vpack.c.b16 %v399, %v399
  %v464 = vpack.c.b16 %v400, %v400
  %v465 = vpack.c.b16 %v401, %v401
  %v466 = vpack.c.b16 %v402, %v402
  %v467 = vpack.c.b16 %v403, %v403
  %v468 = vpack.c.b16 %v404, %v404
  %v469 = vpack.c.b16 %v405, %v405
  %v470 = vpack.c.b16 %v406, %v406
  %v471 = vpack.c.b16 %v407, %v407
  %v472 = vpack.c.b16 %v408, %v408
  %v473 = vpack.c.b16 %v409, %v409
  %v474 = vpack.c.b16 %v410, %v410
  %v475 = vpack.c.b16 %v411, %v411
  %540 = vst [vmem:[%s3] sm:$0xf] %v412
  %541 = vst [vmem:[%s3 + $0x4] sm:$0xf] %v413
  %542 = vst [vmem:[%s3 + $0x8] sm:$0xf] %v414
  %543 = vst [vmem:[%s3 + $0xc] sm:$0xf] %v415
  %544 = vst [vmem:[%s3 + $0x10] sm:$0xf] %v416
  %545 = vst [vmem:[%s3 + $0x14] sm:$0xf] %v417
  %546 = vst [vmem:[%s3 + $0x18] sm:$0xf] %v418
  %547 = vst [vmem:[%s3 + $0x1c] sm:$0xf] %v419
  %548 = vst [vmem:[%s3 + $0x20] sm:$0xf] %v420
  %549 = vst [vmem:[%s3 + $0x24] sm:$0xf] %v421
  %550 = vst [vmem:[%s3 + $0x28] sm:$0xf] %v422
  %551 = vst [vmem:[%s3 + $0x2c] sm:$0xf] %v423
  %552 = vst [vmem:[%s3 + $0x30] sm:$0xf] %v424
  %553 = vst [vmem:[%s3 + $0x34] sm:$0xf] %v425
  %554 = vst [vmem:[%s3 + $0x38] sm:$0xf] %v426
  %555 = vst [vmem:[%s3 + $0x3c] sm:$0xf] %v427
  %556 = vst [vmem:[%s3 + $0x40] sm:$0xf] %v428
  %557 = vst [vmem:[%s3 + $0x44] sm:$0xf] %v429
  %558 = vst [vmem:[%s3 + $0x48] sm:$0xf] %v430
  %559 = vst [vmem:[%s3 + $0x4c] sm:$0xf] %v431
  %560 = vst [vmem:[%s3 + $0x50] sm:$0xf] %v432
  %561 = vst [vmem:[%s3 + $0x54] sm:$0xf] %v433
  %562 = vst [vmem:[%s3 + $0x58] sm:$0xf] %v434
  %563 = vst [vmem:[%s3 + $0x5c] sm:$0xf] %v435
  %564 = vst [vmem:[%s3 + $0x60] sm:$0xf] %v436
  %565 = vst [vmem:[%s3 + $0x64] sm:$0xf] %v437
  %566 = vst [vmem:[%s3 + $0x68] sm:$0xf] %v438
  %567 = vst [vmem:[%s3 + $0x6c] sm:$0xf] %v439
  %568 = vst [vmem:[%s3 + $0x70] sm:$0xf] %v440
  %569 = vst [vmem:[%s3 + $0x74] sm:$0xf] %v441
  %570 = vst [vmem:[%s3 + $0x78] sm:$0xf] %v442
  %571 = vst [vmem:[%s3 + $0x7c] sm:$0xf] %v443
  %572 = vst [vmem:[%s3 + $0x80] sm:$0xf] %v444
  %573 = vst [vmem:[%s3 + $0x84] sm:$0xf] %v445
  %574 = vst [vmem:[%s3 + $0x88] sm:$0xf] %v446
  %575 = vst [vmem:[%s3 + $0x8c] sm:$0xf] %v447
  %576 = vst [vmem:[%s3 + $0x90] sm:$0xf] %v448
  %577 = vst [vmem:[%s3 + $0x94] sm:$0xf] %v449
  %578 = vst [vmem:[%s3 + $0x98] sm:$0xf] %v450
  %579 = vst [vmem:[%s3 + $0x9c] sm:$0xf] %v451
  %580 = vst [vmem:[%s3 + $0xa0] sm:$0xf] %v452
  %581 = vst [vmem:[%s3 + $0xa4] sm:$0xf] %v453
  %582 = vst [vmem:[%s3 + $0xa8] sm:$0xf] %v454
  %583 = vst [vmem:[%s3 + $0xac] sm:$0xf] %v455
  %584 = vst [vmem:[%s3 + $0xb0] sm:$0xf] %v456
  %585 = vst [vmem:[%s3 + $0xb4] sm:$0xf] %v457
  %586 = vst [vmem:[%s3 + $0xb8] sm:$0xf] %v458
  %587 = vst [vmem:[%s3 + $0xbc] sm:$0xf] %v459
  %588 = vst [vmem:[%s3 + $0xc0] sm:$0xf] %v460
  %589 = vst [vmem:[%s3 + $0xc4] sm:$0xf] %v461
  %590 = vst [vmem:[%s3 + $0xc8] sm:$0xf] %v462
  %591 = vst [vmem:[%s3 + $0xcc] sm:$0xf] %v463
  %592 = vst [vmem:[%s3 + $0xd0] sm:$0xf] %v464
  %593 = vst [vmem:[%s3 + $0xd4] sm:$0xf] %v465
  %594 = vst [vmem:[%s3 + $0xd8] sm:$0xf] %v466
  %595 = vst [vmem:[%s3 + $0xdc] sm:$0xf] %v467
  %596 = vst [vmem:[%s3 + $0xe0] sm:$0xf] %v468
  %597 = vst [vmem:[%s3 + $0xe4] sm:$0xf] %v469
  %598 = vst [vmem:[%s3 + $0xe8] sm:$0xf] %v470
  %599 = vst [vmem:[%s3 + $0xec] sm:$0xf] %v471
  %600 = vst [vmem:[%s3 + $0xf0] sm:$0xf] %v472
  %601 = vst [vmem:[%s3 + $0xf4] sm:$0xf] %v473
  %602 = vst [vmem:[%s3 + $0xf8] sm:$0xf] %v474
  %603 = vst [vmem:[%s3 + $0xfc] sm:$0xf] %v475
  // Predicated region
  $region14: #{residual_forward.5} parent=0 // pred_check
    _
  $region15: #{residual_forward.5} parent=0 // pred_check_branch
    %605 = sbr.rel (0) target = $region17
  $region16: #{residual_forward.5} parent=0 // pred_region
    _
  $region17: #{residual_forward.5} parent=0 // pred_fallthru
    _
  // Predicated region
  $region18: #{residual_forward.5} parent=0 // pred_check
    _
  $region19: #{residual_forward.5} parent=0 // pred_check_branch
    %607 = sbr.rel (0) target = $region21
  $region20: #{residual_forward.5} parent=0 // pred_region
    _
  $region21: #{residual_forward.5} parent=0 // pred_fallthru
    _

// kernel: residual_forward.4
$region0: #{residual_forward.4}
  #allocation0 [shape = 'u32[]', space=smem, size = 0x4, offset = 0x4, fixed_abs, tag = 'smem constant byte address 0x4 - core index']
  #allocation1 [shape = 'u32[144,128]{1,0:T(1,128)}', space=vmem, size = 0x12000, scoped, tag = 'internal scratch']
  %s0 = inlined_call_operand.vmem [shape: bf16[2,1,18,18,128], index: 0, kind: input, shape index: {}]
  %s1 = inlined_call_operand.vmem [shape: bf16[9,128,128], index: 1, kind: input, shape index: {}]
  %s2 = inlined_call_operand.vmem [shape: f32[512,128], index: 2, kind: output, shape index: {0}]
  %s3 = inlined_call_operand.vmem [shape: f32[2,1,128], index: 3, kind: output, shape index: {1}]
  %s4 = inlined_call_operand.vmem [shape: f32[2,1,128], index: 4, kind: output, shape index: {2}]
  %5 = xla_tuple %s2, %s3, %s4
  %s6 = sld [smem:[#allocation0]]
  $region57: #{residual_forward.4} parent=0
    _
  %s8 = ssub.s32 1, %s6
  %s9 = scalar_select 0, %s8, %s6
  loop: start=0, step=1, limit=4
  $region2: #{residual_forward.4} parent=0 // loop_pre_header
    _
  $region3: #{residual_forward.4} parent=0 // loop_header
    %s11 = sphi 0, %s15
    %p12 = scmp.ge.s32.totalorder %s11, 4
    %s18 = sphi 0, %s30
    %s19 = sphi 0, %s26
    %s20 = sphi 0, %s18
    %s21 = sphi 0, %s19
    %s22 = sphi 0, %s20
    %s23 = sphi 0, %s21
    %s33 = sphi 0, %s35
    %s36 = sphi 0, %s33
    %s37 = sphi 0, %s36
    %s53 = sphi 0, %s37
    %s59 = sphi 0, %s61
    %s62 = sphi 0, %s59
    %s63 = sphi 0, %s62
    %s79 = sphi 0, %s63
    %s87 = sphi 0, %s89
    %s90 = sphi 0, %s87
    %s91 = sphi 0, %s90
    %s107 = sphi 0, %s91
    %s115 = sphi 0, %s117
    %s118 = sphi 0, %s115
    %s119 = sphi 0, %s118
    %s135 = sphi 0, %s119
    %s143 = sphi 0, %s145
    %s146 = sphi 0, %s143
    %s147 = sphi 0, %s146
    %s163 = sphi 0, %s147
  $region4: #{residual_forward.4} parent=0 // loop_header_branch
    %14 = sbr.rel (%p12) target = $region8
  $region5: #{residual_forward.4} parent=0 // loop_body
    %s16 = ssub.s32 %s11, 1
    %s17 = ssub.s32 %s11, 2
    %s24 = sadd.s32 1, %s19
    %p25 = scmp.ge.s32.totalorder %s24, 1
    %s26 = scalar_select %p25, 0, %s24
    %s27 = sadd.s32 1, %s18
    %s28 = scalar_select %p25, %s27, %s18
    %p29 = scmp.ge.s32.totalorder %s28, 2
    %s30 = scalar_select %p29, 0, %s28
    %s31 = ssub.s32 %s18, %s30
    %p32 = scmp.eq.s32.totalorder %s31, 0
    %s34 = sadd.s32 %s33, 1
    %s35 = scalar_select %p32, %s33, %s34
    %p38 = pneg %p32
    %p39 = scmp.eq.s32.totalorder %s11, 1
    %p40 = por %p38, %p39
    %p41 = scmp.ne.s32.totalorder %s33, %s36
    %p42 = scmp.eq.s32.totalorder %s11, 0
    %p43 = por %p41, %p42
    %p44 = scmp.ne.s32.totalorder %s33, %s36
    %p45 = scmp.eq.s32.totalorder %s16, 1
    %p46 = por %p44, %p45
    %p47 = scmp.ne.s32.totalorder %s36, %s37
    %p48 = scmp.eq.s32.totalorder %s16, 0
    %p49 = por %p47, %p48
    %p50 = scmp.ne.s32.totalorder %s36, %s37
    %p51 = scmp.eq.s32.totalorder %s17, 1
    %p52 = por %p50, %p51
    %p54 = scmp.ne.s32.totalorder %s37, %s53
    %p55 = scmp.eq.s32.totalorder %s17, 0
    %p56 = por %p54, %p55
    %s57 = ssub.s32 %s19, %s26
    %p58 = scmp.eq.s32.totalorder %s57, 0
    %s60 = sadd.s32 %s59, 1
    %s61 = scalar_select %p58, %s59, %s60
    %p64 = pneg %p58
    %p65 = scmp.eq.s32.totalorder %s11, 1
    %p66 = por %p64, %p65
    %p67 = scmp.ne.s32.totalorder %s59, %s62
    %p68 = scmp.eq.s32.totalorder %s11, 0
    %p69 = por %p67, %p68
    %p70 = scmp.ne.s32.totalorder %s59, %s62
    %p71 = scmp.eq.s32.totalorder %s16, 1
    %p72 = por %p70, %p71
    %p73 = scmp.ne.s32.totalorder %s62, %s63
    %p74 = scmp.eq.s32.totalorder %s16, 0
    %p75 = por %p73, %p74
    %p76 = scmp.ne.s32.totalorder %s62, %s63
    %p77 = scmp.eq.s32.totalorder %s17, 1
    %p78 = por %p76, %p77
    %p80 = scmp.ne.s32.totalorder %s63, %s79
    %p81 = scmp.eq.s32.totalorder %s17, 0
    %p82 = por %p80, %p81
    %s83 = ssub.s32 %s18, %s30
    %s84 = ssub.s32 %s19, %s26
    %s85 = sor.u32 %s83, %s84
    %p86 = scmp.eq.s32.totalorder %s85, 0
    %s88 = sadd.s32 %s87, 1
    %s89 = scalar_select %p86, %s87, %s88
    %p92 = pneg %p86
    %p93 = scmp.eq.s32.totalorder %s11, 1
    %p94 = por %p92, %p93
    %p95 = scmp.ne.s32.totalorder %s87, %s90
    %p96 = scmp.eq.s32.totalorder %s11, 0
    %p97 = por %p95, %p96
    %p98 = scmp.ne.s32.totalorder %s87, %s90
    %p99 = scmp.eq.s32.totalorder %s16, 1
    %p100 = por %p98, %p99
    %p101 = scmp.ne.s32.totalorder %s90, %s91
    %p102 = scmp.eq.s32.totalorder %s16, 0
    %p103 = por %p101, %p102
    %p104 = scmp.ne.s32.totalorder %s90, %s91
    %p105 = scmp.eq.s32.totalorder %s17, 1
    %p106 = por %p104, %p105
    %p108 = scmp.ne.s32.totalorder %s91, %s107
    %p109 = scmp.eq.s32.totalorder %s17, 0
    %p110 = por %p108, %p109
    %s111 = ssub.s32 %s18, %s30
    %s112 = ssub.s32 %s19, %s26
    %s113 = sor.u32 %s111, %s112
    %p114 = scmp.eq.s32.totalorder %s113, 0
    %s116 = sadd.s32 %s115, 1
    %s117 = scalar_select %p114, %s115, %s116
    %p120 = pneg %p114
    %p121 = scmp.eq.s32.totalorder %s11, 1
    %p122 = por %p120, %p121
    %p123 = scmp.ne.s32.totalorder %s115, %s118
    %p124 = scmp.eq.s32.totalorder %s11, 0
    %p125 = por %p123, %p124
    %p126 = scmp.ne.s32.totalorder %s115, %s118
    %p127 = scmp.eq.s32.totalorder %s16, 1
    %p128 = por %p126, %p127
    %p129 = scmp.ne.s32.totalorder %s118, %s119
    %p130 = scmp.eq.s32.totalorder %s16, 0
    %p131 = por %p129, %p130
    %p132 = scmp.ne.s32.totalorder %s118, %s119
    %p133 = scmp.eq.s32.totalorder %s17, 1
    %p134 = por %p132, %p133
    %p136 = scmp.ne.s32.totalorder %s119, %s135
    %p137 = scmp.eq.s32.totalorder %s17, 0
    %p138 = por %p136, %p137
    %s139 = ssub.s32 %s18, %s30
    %s140 = ssub.s32 %s19, %s26
    %s141 = sor.u32 %s139, %s140
    %p142 = scmp.eq.s32.totalorder %s141, 0
    %s144 = sadd.s32 %s143, 1
    %s145 = scalar_select %p142, %s143, %s144
    %p148 = pneg %p142
    %p149 = scmp.eq.s32.totalorder %s11, 1
    %p150 = por %p148, %p149
    %p151 = scmp.ne.s32.totalorder %s143, %s146
    %p152 = scmp.eq.s32.totalorder %s11, 0
    %p153 = por %p151, %p152
    %p154 = scmp.ne.s32.totalorder %s143, %s146
    %p155 = scmp.eq.s32.totalorder %s16, 1
    %p156 = por %p154, %p155
    %p157 = scmp.ne.s32.totalorder %s146, %s147
    %p158 = scmp.eq.s32.totalorder %s16, 0
    %p159 = por %p157, %p158
    %p160 = scmp.ne.s32.totalorder %s146, %s147
    %p161 = scmp.eq.s32.totalorder %s17, 1
    %p162 = por %p160, %p161
    %p164 = scmp.ne.s32.totalorder %s147, %s163
    %p165 = scmp.eq.s32.totalorder %s17, 0
    %p166 = por %p164, %p165
    %p167 = scmp.le.s32.totalorder 1, %s11
    %p168 = scmp.lt.s32.totalorder %s11, 3
    %p169 = pnand %p167, %p168
    %p170 = pneg %p169
    // Predicated region
    $region9: #{residual_forward.4} parent=5 // pred_check
      _
    $region10: #{residual_forward.4} parent=5 // pred_check_branch
      %172 = sbr.rel (%p169) target = $region12
    $region11: #{residual_forward.4} parent=5 // pred_region
      %s173 = ssub.s32 %s11, 1
      // Predicated region
      $region13: #{residual_forward.4} parent=11 // pred_check
        %p174 = pneg %p75
      $region14: #{residual_forward.4} parent=11 // pred_check_branch
        %176 = sbr.rel (%p174) target = $region16
      $region15: #{residual_forward.4} parent=11 // pred_region
        %p177 = scmp.lt.s32.totalorder %s21, 0
        %s178 = scalar_select %p177, %s21, 0
        %s179 = smul.addr %s178, 4
        %s180 = scalar_lea.vmem %s1, %s179
      $region16: #{residual_forward.4} parent=11 // pred_fallthru
        _
    $region12: #{residual_forward.4} parent=5 // pred_fallthru
      _
    %p181 = scmp.lt.s32.totalorder %s11, 2
    // Predicated region
    $region17: #{residual_forward.4} parent=5 // pred_check
      %p182 = pneg %p181
    $region18: #{residual_forward.4} parent=5 // pred_check_branch
      %184 = sbr.rel (%p182) target = $region20
    $region19: #{residual_forward.4} parent=5 // pred_region
      // Predicated region
      $region21: #{residual_forward.4} parent=19 // pred_check
        %p185 = pneg %p43
      $region22: #{residual_forward.4} parent=19 // pred_check_branch
        %187 = sbr.rel (%p185) target = $region24
      $region23: #{residual_forward.4} parent=19 // pred_region
        %p188 = scmp.lt.s32.totalorder %s18, 1
        %s189 = scalar_select %p188, %s18, 1
        %s190 = smul.addr %s189, 54
        %s191 = smul.addr %s190, 4
        %s192 = scalar_lea.vmem %s0, %s191
      $region24: #{residual_forward.4} parent=19 // pred_fallthru
        _
    $region20: #{residual_forward.4} parent=5 // pred_fallthru
      _
    %p193 = scmp.le.s32.totalorder 1, %s11
    %p194 = scmp.lt.s32.totalorder %s11, 3
    %p195 = pnand %p193, %p194
    %p196 = pneg %p195
    // Predicated region
    $region25: #{residual_forward.4} parent=5 // pred_check
      _
    $region26: #{residual_forward.4} parent=5 // pred_check_branch
      %198 = sbr.rel (%p195) target = $region28
    $region27: #{residual_forward.4} parent=5 // pred_region
      %s199 = ssub.s32 %s11, 1
      %p200 = scmp.lt.s32.totalorder %s20, 1
      %s201 = scalar_select %p200, %s20, 1
      %s202 = smul.addr %s201, 54
      %s203 = smul.addr %s202, 4
      %s204 = scalar_lea.vmem %s0, %s203
      %p205 = pneg %p49
      %p206 = pneg %p46
      %p207 = scmp.lt.s32.totalorder %s21, 0
      %s208 = scalar_select %p207, %s21, 0
      %s209 = smul.addr %s208, 4
      %s210 = scalar_lea.vmem %s1, %s209
      %p211 = pneg %p75
      %p212 = pneg %p72
      %p213 = pneg %p103
      %p214 = pneg %p100
      %s215 = smul.u32 32, %s20
      %p216 = scmp.lt.s32.totalorder %s215, 63
      %s217 = scalar_select %p216, %s215, 63
      %p218 = scmp.lt.s32.totalorder %s21, 0
      %s219 = scalar_select %p218, %s21, 0
      %s220 = sadd.s32 %s219, %s217
      %s221 = smul.addr %s220, 8
      %s222 = scalar_lea.vmem %s2, %s221
      %p223 = pneg %p131
      %p224 = pneg %p128
      %p225 = scmp.lt.s32.totalorder %s20, 1
      %s226 = scalar_select %p225, %s20, 1
      %p227 = scmp.lt.s32.totalorder %s21, 0
      %s228 = scalar_select %p227, %s21, 0
      %s229 = sadd.s32 %s228, %s226
      %s230 = scalar_lea.vmem %s3, %s229
      %p231 = pneg %p159
      %p232 = pneg %p156
      %p233 = scmp.lt.s32.totalorder %s20, 1
      %s234 = scalar_select %p233, %s20, 1
      %p235 = scmp.lt.s32.totalorder %s21, 0
      %s236 = scalar_select %p235, %s21, 0
      %s237 = sadd.s32 %s236, %s234
      %s238 = scalar_lea.vmem %s4, %s237
      %p239 = scmp.lt.s32.totalorder %s20, 1
      %s240 = scalar_select %p239, %s20, 1
      %s241 = smul.addr %s240, 54
      %s242 = smul.addr %s241, 4
      %s243 = scalar_lea.vmem %s0, %s242
      %p244 = scmp.lt.s32.totalorder %s21, 0
      %s245 = scalar_select %p244, %s21, 0
      %s246 = smul.addr %s245, 4
      %s247 = scalar_lea.vmem %s1, %s246
      %s248 = smul.u32 32, %s20
      %p249 = scmp.lt.s32.totalorder %s248, 63
      %s250 = scalar_select %p249, %s248, 63
      %p251 = scmp.lt.s32.totalorder %s21, 0
      %s252 = scalar_select %p251, %s21, 0
      %s253 = sadd.s32 %s252, %s250
      %s254 = smul.addr %s253, 8
      %s255 = scalar_lea.vmem %s2, %s254
      %s256 = smul.u32 32, %s20
      %p257 = scmp.lt.s32.totalorder %s20, 1
      %s258 = scalar_select %p257, %s20, 1
      %p259 = scmp.lt.s32.totalorder %s21, 0
      %s260 = scalar_select %p259, %s21, 0
      %s261 = sadd.s32 %s260, %s258
      %s262 = scalar_lea.vmem %s3, %s261
      %p263 = scmp.lt.s32.totalorder %s20, 1
      %s264 = scalar_select %p263, %s20, 1
      %p265 = scmp.lt.s32.totalorder %s21, 0
      %s266 = scalar_select %p265, %s21, 0
      %s267 = sadd.s32 %s266, %s264
      %s268 = scalar_lea.vmem %s4, %s267
      %v270 = vld [vmem:[%s243] sm:$0xf]
      %v271 = vld [vmem:[%s243 + $0x4] sm:$0xf]
      %v272 = vld [vmem:[%s243 + $0xc] sm:$0xf]
      %v273 = vld [vmem:[%s243 + $0x10] sm:$0xf]
      %v274 = vld [vmem:[%s243 + $0x18] sm:$0xf]
      %v275 = vld [vmem:[%s243 + $0x1c] sm:$0xf]
      %v276 = vld [vmem:[%s243 + $0x24] sm:$0xf]
      %v277 = vld [vmem:[%s243 + $0x28] sm:$0xf]
      %v278 = vld [vmem:[%s243 + $0x30] sm:$0xf]
      %v279 = vld [vmem:[%s243 + $0x34] sm:$0xf]
      %v280 = vld [vmem:[%s243 + $0x3c] sm:$0xf]
      %v281 = vld [vmem:[%s243 + $0x40] sm:$0xf]
      %v282 = vld [vmem:[%s243 + $0x48] sm:$0xf]
      %v283 = vld [vmem:[%s243 + $0x4c] sm:$0xf]
      %v284 = vld [vmem:[%s243 + $0x54] sm:$0xf]
      %v285 = vld [vmem:[%s243 + $0x58] sm:$0xf]
      %v286 = vld [vmem:[%s243 + $0x60] sm:$0xf]
      %v287 = vld [vmem:[%s243 + $0x64] sm:$0xf]
      %v288 = vld [vmem:[%s243 + $0x6c] sm:$0xf]
      %v289 = vld [vmem:[%s243 + $0x70] sm:$0xf]
      %v290 = vld [vmem:[%s243 + $0x78] sm:$0xf]
      %v291 = vld [vmem:[%s243 + $0x7c] sm:$0xf]
      %v292 = vld [vmem:[%s243 + $0x84] sm:$0xf]
      %v293 = vld [vmem:[%s243 + $0x88] sm:$0xf]
      %v294 = vld [vmem:[%s243 + $0x90] sm:$0xf]
      %v295 = vld [vmem:[%s243 + $0x94] sm:$0xf]
      %v296 = vld [vmem:[%s243 + $0x9c] sm:$0xf]
      %v297 = vld [vmem:[%s243 + $0xa0] sm:$0xf]
      %v298 = vld [vmem:[%s243 + $0xa8] sm:$0xf]
      %v299 = vld [vmem:[%s243 + $0xac] sm:$0xf]
      %v300 = vld [vmem:[%s243 + $0xb4] sm:$0xf]
      %v301 = vld [vmem:[%s243 + $0xb8] sm:$0xf]
      %v302 = vld [vmem:[%s247] sm:$0xf]
      %v303 = vld [vmem:[%s247 + $0x4] sm:$0xf]
      %v304 = vld [vmem:[%s247 + $0x8] sm:$0xf]
      %v305 = vld [vmem:[%s247 + $0xc] sm:$0xf]
      %v306 = vld [vmem:[%s247 + $0x10] sm:$0xf]
      %v307 = vld [vmem:[%s247 + $0x14] sm:$0xf]
      %v308 = vld [vmem:[%s247 + $0x18] sm:$0xf]
      %v309 = vld [vmem:[%s247 + $0x1c] sm:$0xf]
      %v310 = vld [vmem:[%s247 + $0x20] sm:$0xf]
      %v311 = vld [vmem:[%s247 + $0x24] sm:$0xf]
      %v312 = vld [vmem:[%s247 + $0x28] sm:$0xf]
      %v313 = vld [vmem:[%s247 + $0x2c] sm:$0xf]
      %v314 = vld [vmem:[%s247 + $0x30] sm:$0xf]
      %v315 = vld [vmem:[%s247 + $0x34] sm:$0xf]
      %v316 = vld [vmem:[%s247 + $0x38] sm:$0xf]
      %v317 = vld [vmem:[%s247 + $0x3c] sm:$0xf]
      %v318 = vld [vmem:[%s243 + $0x8] sm:$0x1]
      %v319 = vld [vmem:[%s243 + $0x14] sm:$0x1]
      %v320 = vld [vmem:[%s243 + $0x20] sm:$0x1]
      %v321 = vld [vmem:[%s243 + $0x2c] sm:$0x1]
      %v322 = vld [vmem:[%s243 + $0x38] sm:$0x1]
      %v323 = vld [vmem:[%s243 + $0x44] sm:$0x1]
      %v324 = vld [vmem:[%s243 + $0x50] sm:$0x1]
      %v325 = vld [vmem:[%s243 + $0x5c] sm:$0x1]
      %v326 = vld [vmem:[%s243 + $0x68] sm:$0x1]
      %v327 = vld [vmem:[%s243 + $0x74] sm:$0x1]
      %v328 = vld [vmem:[%s243 + $0x80] sm:$0x1]
      %v329 = vld [vmem:[%s243 + $0x8c] sm:$0x1]
      %v330 = vld [vmem:[%s243 + $0x98] sm:$0x1]
      %v331 = vld [vmem:[%s243 + $0xa4] sm:$0x1]
      %v332 = vld [vmem:[%s243 + $0xb0] sm:$0x1]
      %v333 = vld [vmem:[%s243 + $0xbc] sm:$0x1]
      %vm334 = vsmask.f32 3328
      %vm335 = vsmask.f32 7440
      %vm336 = vmor %vm334, %vm335
      %v338 = vshrl.u32 %v270, 16
      %v340 = vrot.slane %v338, 4
      %v341 = vshll.u32 %v270, 16
      %v343 = vrot.slane %v341, 5
      %v344 = vor.u32 %v340, %v343
      %v345 = vrot.slane %v344, 4
      %v347 = vshll.u32 %v271, 16
      %v349 = vrot.slane %v347, 5
      %v350 = vsel %vm336, %v345, %v349
      %v351 = vshrl.u32 %v271, 16
      %v353 = vrot.slane %v351, 4
      %v354 = vor.u32 %v353, %v349
      %v355 = vrot.slane %v354, 4
      %v357 = vshll.u32 %v318, 16
      %v359 = vrot.slane %v357, 5
      %v360 = vsel %vm336, %v355, %v359
      %v362 = vshrl.u32 %v272, 16
      %v364 = vrot.slane %v362, 4
      %v365 = vshll.u32 %v272, 16
      %v367 = vrot.slane %v365, 5
      %v368 = vor.u32 %v364, %v367
      %v369 = vrot.slane %v368, 4
      %v371 = vshll.u32 %v273, 16
      %v373 = vrot.slane %v371, 5
      %v374 = vsel %vm336, %v369, %v373
      %v375 = vshrl.u32 %v273, 16
      %v377 = vrot.slane %v375, 4
      %v378 = vor.u32 %v377, %v373
      %v379 = vrot.slane %v378, 4
      %v381 = vshll.u32 %v319, 16
      %v383 = vrot.slane %v381, 5
      %v384 = vsel %vm336, %v379, %v383
      %v386 = vshrl.u32 %v274, 16
      %v388 = vrot.slane %v386, 4
      %v389 = vshll.u32 %v274, 16
      %v391 = vrot.slane %v389, 5
      %v392 = vor.u32 %v388, %v391
      %v393 = vrot.slane %v392, 4
      %v395 = vshll.u32 %v275, 16
      %v397 = vrot.slane %v395, 5
      %v398 = vsel %vm336, %v393, %v397
      %v399 = vshrl.u32 %v275, 16
      %v401 = vrot.slane %v399, 4
      %v402 = vor.u32 %v401, %v397
      %v403 = vrot.slane %v402, 4
      %v405 = vshll.u32 %v320, 16
      %v407 = vrot.slane %v405, 5
      %v408 = vsel %vm336, %v403, %v407
      %v410 = vshrl.u32 %v276, 16
      %v412 = vrot.slane %v410, 4
      %v413 = vshll.u32 %v276, 16
      %v415 = vrot.slane %v413, 5
      %v416 = vor.u32 %v412, %v415
      %v417 = vrot.slane %v416, 4
      %v419 = vshll.u32 %v277, 16
      %v421 = vrot.slane %v419, 5
      %v422 = vsel %vm336, %v417, %v421
      %v423 = vshrl.u32 %v277, 16
      %v425 = vrot.slane %v423, 4
      %v426 = vor.u32 %v425, %v421
      %v427 = vrot.slane %v426, 4
      %v429 = vshll.u32 %v321, 16
      %v431 = vrot.slane %v429, 5
      %v432 = vsel %vm336, %v427, %v431
      %v434 = vshrl.u32 %v278, 16
      %v436 = vrot.slane %v434, 4
      %v437 = vshll.u32 %v278, 16
      %v439 = vrot.slane %v437, 5
      %v440 = vor.u32 %v436, %v439
      %v441 = vrot.slane %v440, 4
      %v443 = vshll.u32 %v279, 16
      %v445 = vrot.slane %v443, 5
      %v446 = vsel %vm336, %v441, %v445
      %v447 = vshrl.u32 %v279, 16
      %v449 = vrot.slane %v447, 4
      %v450 = vor.u32 %v449, %v445
      %v451 = vrot.slane %v450, 4
      %v453 = vshll.u32 %v322, 16
      %v455 = vrot.slane %v453, 5
      %v456 = vsel %vm336, %v451, %v455
      %v458 = vshrl.u32 %v280, 16
      %v460 = vrot.slane %v458, 4
      %v461 = vshll.u32 %v280, 16
      %v463 = vrot.slane %v461, 5
      %v464 = vor.u32 %v460, %v463
      %v465 = vrot.slane %v464, 4
      %v467 = vshll.u32 %v281, 16
      %v469 = vrot.slane %v467, 5
      %v470 = vsel %vm336, %v465, %v469
      %v471 = vshrl.u32 %v281, 16
      %v473 = vrot.slane %v471, 4
      %v474 = vor.u32 %v473, %v469
      %v475 = vrot.slane %v474, 4
      %v477 = vshll.u32 %v323, 16
      %v479 = vrot.slane %v477, 5
      %v480 = vsel %vm336, %v475, %v479
      %v482 = vshrl.u32 %v282, 16
      %v484 = vrot.slane %v482, 4
      %v485 = vshll.u32 %v282, 16
      %v487 = vrot.slane %v485, 5
      %v488 = vor.u32 %v484, %v487
      %v489 = vrot.slane %v488, 4
      %v491 = vshll.u32 %v283, 16
      %v493 = vrot.slane %v491, 5
      %v494 = vsel %vm336, %v489, %v493
      %v495 = vshrl.u32 %v283, 16
      %v497 = vrot.slane %v495, 4
      %v498 = vor.u32 %v497, %v493
      %v499 = vrot.slane %v498, 4
      %v501 = vshll.u32 %v324, 16
      %v503 = vrot.slane %v501, 5
      %v504 = vsel %vm336, %v499, %v503
      %v506 = vshrl.u32 %v284, 16
      %v508 = vrot.slane %v506, 4
      %v509 = vshll.u32 %v284, 16
      %v511 = vrot.slane %v509, 5
      %v512 = vor.u32 %v508, %v511
      %v513 = vrot.slane %v512, 4
      %v515 = vshll.u32 %v285, 16
      %v517 = vrot.slane %v515, 5
      %v518 = vsel %vm336, %v513, %v517
      %v519 = vshrl.u32 %v285, 16
      %v521 = vrot.slane %v519, 4
      %v522 = vor.u32 %v521, %v517
      %v523 = vrot.slane %v522, 4
      %v525 = vshll.u32 %v325, 16
      %v527 = vrot.slane %v525, 5
      %v528 = vsel %vm336, %v523, %v527
      %v530 = vshrl.u32 %v286, 16
      %v532 = vrot.slane %v530, 4
      %v533 = vshll.u32 %v286, 16
      %v535 = vrot.slane %v533, 5
      %v536 = vor.u32 %v532, %v535
      %v537 = vrot.slane %v536, 4
      %v539 = vshll.u32 %v287, 16
      %v541 = vrot.slane %v539, 5
      %v542 = vsel %vm336, %v537, %v541
      %v543 = vshrl.u32 %v287, 16
      %v545 = vrot.slane %v543, 4
      %v546 = vor.u32 %v545, %v541
      %v547 = vrot.slane %v546, 4
      %v549 = vshll.u32 %v326, 16
      %v551 = vrot.slane %v549, 5
      %v552 = vsel %vm336, %v547, %v551
      %v554 = vshrl.u32 %v288, 16
      %v556 = vrot.slane %v554, 4
      %v557 = vshll.u32 %v288, 16
      %v559 = vrot.slane %v557, 5
      %v560 = vor.u32 %v556, %v559
      %v561 = vrot.slane %v560, 4
      %v563 = vshll.u32 %v289, 16
      %v565 = vrot.slane %v563, 5
      %v566 = vsel %vm336, %v561, %v565
      %v567 = vshrl.u32 %v289, 16
      %v569 = vrot.slane %v567, 4
      %v570 = vor.u32 %v569, %v565
      %v571 = vrot.slane %v570, 4
      %v573 = vshll.u32 %v327, 16
      %v575 = vrot.slane %v573, 5
      %v576 = vsel %vm336, %v571, %v575
      %v578 = vshrl.u32 %v290, 16
      %v580 = vrot.slane %v578, 4
      %v581 = vshll.u32 %v290, 16
      %v583 = vrot.slane %v581, 5
      %v584 = vor.u32 %v580, %v583
      %v585 = vrot.slane %v584, 4
      %v587 = vshll.u32 %v291, 16
      %v589 = vrot.slane %v587, 5
      %v590 = vsel %vm336, %v585, %v589
      %v591 = vshrl.u32 %v291, 16
      %v593 = vrot.slane %v591, 4
      %v594 = vor.u32 %v593, %v589
      %v595 = vrot.slane %v594, 4
      %v597 = vshll.u32 %v328, 16
      %v599 = vrot.slane %v597, 5
      %v600 = vsel %vm336, %v595, %v599
      %v602 = vshrl.u32 %v292, 16
      %v604 = vrot.slane %v602, 4
      %v605 = vshll.u32 %v292, 16
      %v607 = vrot.slane %v605, 5
      %v608 = vor.u32 %v604, %v607
      %v609 = vrot.slane %v608, 4
      %v611 = vshll.u32 %v293, 16
      %v613 = vrot.slane %v611, 5
      %v614 = vsel %vm336, %v609, %v613
      %v615 = vshrl.u32 %v293, 16
      %v617 = vrot.slane %v615, 4
      %v618 = vor.u32 %v617, %v613
      %v619 = vrot.slane %v618, 4
      %v621 = vshll.u32 %v329, 16
      %v623 = vrot.slane %v621, 5
      %v624 = vsel %vm336, %v619, %v623
      %v626 = vshrl.u32 %v294, 16
      %v628 = vrot.slane %v626, 4
      %v629 = vshll.u32 %v294, 16
      %v631 = vrot.slane %v629, 5
      %v632 = vor.u32 %v628, %v631
      %v633 = vrot.slane %v632, 4
      %v635 = vshll.u32 %v295, 16
      %v637 = vrot.slane %v635, 5
      %v638 = vsel %vm336, %v633, %v637
      %v639 = vshrl.u32 %v295, 16
      %v641 = vrot.slane %v639, 4
      %v642 = vor.u32 %v641, %v637
      %v643 = vrot.slane %v642, 4
      %v645 = vshll.u32 %v330, 16
      %v647 = vrot.slane %v645, 5
      %v648 = vsel %vm336, %v643, %v647
      %v650 = vshrl.u32 %v296, 16
      %v652 = vrot.slane %v650, 4
      %v653 = vshll.u32 %v296, 16
      %v655 = vrot.slane %v653, 5
      %v656 = vor.u32 %v652, %v655
      %v657 = vrot.slane %v656, 4
      %v659 = vshll.u32 %v297, 16
      %v661 = vrot.slane %v659, 5
      %v662 = vsel %vm336, %v657, %v661
      %v663 = vshrl.u32 %v297, 16
      %v665 = vrot.slane %v663, 4
      %v666 = vor.u32 %v665, %v661
      %v667 = vrot.slane %v666, 4
      %v669 = vshll.u32 %v331, 16
      %v671 = vrot.slane %v669, 5
      %v672 = vsel %vm336, %v667, %v671
      %v674 = vshrl.u32 %v298, 16
      %v676 = vrot.slane %v674, 4
      %v677 = vshll.u32 %v298, 16
      %v679 = vrot.slane %v677, 5
      %v680 = vor.u32 %v676, %v679
      %v681 = vrot.slane %v680, 4
      %v683 = vshll.u32 %v299, 16
      %v685 = vrot.slane %v683, 5
      %v686 = vsel %vm336, %v681, %v685
      %v687 = vshrl.u32 %v299, 16
      %v689 = vrot.slane %v687, 4
      %v690 = vor.u32 %v689, %v685
      %v691 = vrot.slane %v690, 4
      %v693 = vshll.u32 %v332, 16
      %v695 = vrot.slane %v693, 5
      %v696 = vsel %vm336, %v691, %v695
      %v698 = vshrl.u32 %v300, 16
      %v700 = vrot.slane %v698, 4
      %v701 = vshll.u32 %v300, 16
      %v703 = vrot.slane %v701, 5
      %v704 = vor.u32 %v700, %v703
      %v705 = vrot.slane %v704, 4
      %v707 = vshll.u32 %v301, 16
      %v709 = vrot.slane %v707, 5
      %v710 = vsel %vm336, %v705, %v709
      %v711 = vshrl.u32 %v301, 16
      %v713 = vrot.slane %v711, 4
      %v714 = vor.u32 %v713, %v709
      %v715 = vrot.slane %v714, 4
      %v717 = vshll.u32 %v333, 16
      %v719 = vrot.slane %v717, 5
      %v720 = vsel %vm336, %v715, %v719
      %s721 = scalar_lea.vmem %s247, 64
      %v722 = vld [vmem:[%s721] sm:$0xf]
      %v723 = vld [vmem:[%s721 + $0x4] sm:$0xf]
      %v724 = vld [vmem:[%s721 + $0x8] sm:$0xf]
      %v725 = vld [vmem:[%s721 + $0xc] sm:$0xf]
      %v726 = vld [vmem:[%s721 + $0x10] sm:$0xf]
      %v727 = vld [vmem:[%s721 + $0x14] sm:$0xf]
      %v728 = vld [vmem:[%s721 + $0x18] sm:$0xf]
      %v729 = vld [vmem:[%s721 + $0x1c] sm:$0xf]
      %v730 = vld [vmem:[%s721 + $0x20] sm:$0xf]
      %v731 = vld [vmem:[%s721 + $0x24] sm:$0xf]
      %v732 = vld [vmem:[%s721 + $0x28] sm:$0xf]
      %v733 = vld [vmem:[%s721 + $0x2c] sm:$0xf]
      %v734 = vld [vmem:[%s721 + $0x30] sm:$0xf]
      %v735 = vld [vmem:[%s721 + $0x34] sm:$0xf]
      %v736 = vld [vmem:[%s721 + $0x38] sm:$0xf]
      %v737 = vld [vmem:[%s721 + $0x3c] sm:$0xf]
      %v738 = vunpack.c.l.b16 %v350
      %v739 = vunpack.c.l.b16 %v360
      %v740 = vunpack.c.l.b16 %v374
      %v741 = vunpack.c.l.b16 %v384
      %v742 = vunpack.c.l.b16 %v398
      %v743 = vunpack.c.l.b16 %v408
      %v744 = vunpack.c.l.b16 %v422
      %v745 = vunpack.c.l.b16 %v432
      %v746 = vunpack.c.l.b16 %v446
      %v747 = vunpack.c.l.b16 %v456
      %v748 = vunpack.c.l.b16 %v470
      %v749 = vunpack.c.l.b16 %v480
      %v750 = vunpack.c.l.b16 %v494
      %v751 = vunpack.c.l.b16 %v504
      %v752 = vunpack.c.l.b16 %v518
      %v753 = vunpack.c.l.b16 %v528
      %v754 = vunpack.c.l.b16 %v542
      %v755 = vunpack.c.l.b16 %v552
      %v756 = vunpack.c.l.b16 %v566
      %v757 = vunpack.c.l.b16 %v576
      %v758 = vunpack.c.l.b16 %v590
      %v759 = vunpack.c.l.b16 %v600
      %v760 = vunpack.c.l.b16 %v614
      %v761 = vunpack.c.l.b16 %v624
      %v762 = vunpack.c.l.b16 %v638
      %v763 = vunpack.c.l.b16 %v648
      %v764 = vunpack.c.l.b16 %v662
      %v765 = vunpack.c.l.b16 %v672
      %v766 = vunpack.c.l.b16 %v686
      %v767 = vunpack.c.l.b16 %v696
      %v768 = vunpack.c.l.b16 %v710
      %v769 = vunpack.c.l.b16 %v720
      %v770 = vpack.c.b16 %v739, %v738
      %v771 = vpack.c.b16 %v741, %v740
      %v772 = vpack.c.b16 %v743, %v742
      %v773 = vpack.c.b16 %v745, %v744
      %v774 = vpack.c.b16 %v747, %v746
      %v775 = vpack.c.b16 %v749, %v748
      %v776 = vpack.c.b16 %v751, %v750
      %v777 = vpack.c.b16 %v753, %v752
      %v778 = vpack.c.b16 %v755, %v754
      %v779 = vpack.c.b16 %v757, %v756
      %v780 = vpack.c.b16 %v759, %v758
      %v781 = vpack.c.b16 %v761, %v760
      %v782 = vpack.c.b16 %v763, %v762
      %v783 = vpack.c.b16 %v765, %v764
      %v784 = vpack.c.b16 %v767, %v766
      %v785 = vpack.c.b16 %v769, %v768
      %v818 = vunpack.c.l.b16 %v722
      %v819 = vunpack.c.l.b16 %v723
      %v820 = vunpack.c.l.b16 %v724
      %v821 = vunpack.c.l.b16 %v725
      %v822 = vunpack.c.l.b16 %v726
      %v823 = vunpack.c.l.b16 %v727
      %v824 = vunpack.c.l.b16 %v728
      %v825 = vunpack.c.l.b16 %v729
      %v826 = vunpack.c.l.b16 %v730
      %v827 = vunpack.c.l.b16 %v731
      %v828 = vunpack.c.l.b16 %v732
      %v829 = vunpack.c.l.b16 %v733
      %v830 = vunpack.c.l.b16 %v734
      %v831 = vunpack.c.l.b16 %v735
      %v832 = vunpack.c.l.b16 %v736
      %v833 = vunpack.c.l.b16 %v737
      %v834 = vpack.c.b16 %v819, %v818
      %v835 = vpack.c.b16 %v821, %v820
      %v836 = vpack.c.b16 %v823, %v822
      %v837 = vpack.c.b16 %v825, %v824
      %v838 = vpack.c.b16 %v827, %v826
      %v839 = vpack.c.b16 %v829, %v828
      %v840 = vpack.c.b16 %v831, %v830
      %v841 = vpack.c.b16 %v833, %v832
      %850 = vmatprep.subr.bf16.mxu0 0
      %851 = vmatpush1.bf16.msra.mxu0 %v834
      %852 = vmatprep.subr.bf16.mxu0 0
      %853 = vmatpush1.bf16.msra.mxu0 %v835
      %854 = vmatprep.subr.bf16.mxu0 0
      %855 = vmatpush1.bf16.msra.mxu0 %v836
      %856 = vmatprep.subr.bf16.mxu0 0
      %857 = vmatpush1.bf16.msra.mxu0 %v837
      %858 = vmatprep.subr.bf16.mxu0 0
      %859 = vmatpush1.bf16.msra.mxu0 %v838
      %860 = vmatprep.subr.bf16.mxu0 0
      %861 = vmatpush1.bf16.msra.mxu0 %v839
      %862 = vmatprep.subr.bf16.mxu0 0
      %863 = vmatpush1.bf16.msra.mxu0 %v840
      %864 = vmatprep.subr.bf16.mxu0 0
      %865 = vmatpush1.bf16.msra.mxu0 %v841
      %866 = vmatprep.subr.bf16.mxu0 0
      %867 = vmatpush1.bf16.msra.mxu0 0
      %868 = vmatprep.subr.bf16.mxu0 0
      %869 = vmatpush1.bf16.msra.mxu0 0
      %870 = vmatprep.subr.bf16.mxu0 0
      %871 = vmatpush1.bf16.msra.mxu0 0
      %872 = vmatprep.subr.bf16.mxu0 0
      %873 = vmatpush1.bf16.msra.mxu0 0
      %874 = vmatprep.subr.bf16.mxu0 0
      %875 = vmatpush1.bf16.msra.mxu0 0
      %876 = vmatprep.subr.bf16.mxu0 0
      %877 = vmatpush1.bf16.msra.mxu0 0
      %878 = vmatprep.subr.bf16.mxu0 0
      %879 = vmatpush1.bf16.msra.mxu0 0
      %880 = vmatprep.subr.bf16.mxu0 0
      %881 = vmatpush1.bf16.msra.mxu0 0
      %882 = vmatprep.mubr.bf16.mxu0 0
      %883 = vmatmul.mubr.bf16.gmra.mrb[0].mxu0 %v770
      %v884 = vpop.f32.mrb[0].mxu0
      %v885 = vadd.f32 0.0, %v884
      %v886 = vpop.f32.mrb[0].mxu0
      %v887 = vpop.f32.mrb[0].mxu0
      %v888 = vadd.f32 0.0, %v887
      %v889 = vpop.f32.mrb[0].mxu0
      %890 = vmatprep.mubr.bf16.mxu0 0
      %891 = vmatmul.mubr.bf16.gmra.mrb[0].mxu0 %v771
      %v892 = vpop.f32.mrb[0].mxu0
      %v893 = vadd.f32 0.0, %v892
      %v894 = vpop.f32.mrb[0].mxu0
      %v895 = vpop.f32.mrb[0].mxu0
      %v896 = vadd.f32 0.0, %v895
      %v897 = vpop.f32.mrb[0].mxu0
      %898 = vmatprep.mubr.bf16.mxu0 0
      %899 = vmatmul.mubr.bf16.gmra.mrb[0].mxu0 %v772
      %v900 = vpop.f32.mrb[0].mxu0
      %v901 = vadd.f32 0.0, %v900
      %v902 = vpop.f32.mrb[0].mxu0
      %v903 = vpop.f32.mrb[0].mxu0
      %v904 = vadd.f32 0.0, %v903
      %v905 = vpop.f32.mrb[0].mxu0
      %906 = vmatprep.mubr.bf16.mxu0 0
      %907 = vmatmul.mubr.bf16.gmra.mrb[0].mxu0 %v773
      %v908 = vpop.f32.mrb[0].mxu0
      %v909 = vadd.f32 0.0, %v908
      %v910 = vpop.f32.mrb[0].mxu0
      %v911 = vpop.f32.mrb[0].mxu0
      %v912 = vadd.f32 0.0, %v911
      %v913 = vpop.f32.mrb[0].mxu0
      %914 = vmatprep.mubr.bf16.mxu0 0
      %915 = vmatmul.mubr.bf16.gmra.mrb[0].mxu0 %v774
      %v916 = vpop.f32.mrb[0].mxu0
      %v917 = vadd.f32 0.0, %v916
      %v918 = vpop.f32.mrb[0].mxu0
      %v919 = vpop.f32.mrb[0].mxu0
      %v920 = vadd.f32 0.0, %v919
      %v921 = vpop.f32.mrb[0].mxu0
      %922 = vmatprep.mubr.bf16.mxu0 0
      %923 = vmatmul.mubr.bf16.gmra.mrb[0].mxu0 %v775
      %v924 = vpop.f32.mrb[0].mxu0
      %v925 = vadd.f32 0.0, %v924
      %v926 = vpop.f32.mrb[0].mxu0
      %v927 = vpop.f32.mrb[0].mxu0
      %v928 = vadd.f32 0.0, %v927
      %v929 = vpop.f32.mrb[0].mxu0
      %930 = vmatprep.mubr.bf16.mxu0 0
      %931 = vmatmul.mubr.bf16.gmra.mrb[0].mxu0 %v776
      %v932 = vpop.f32.mrb[0].mxu0
      %v933 = vadd.f32 0.0, %v932
      %v934 = vpop.f32.mrb[0].mxu0
      %v935 = vpop.f32.mrb[0].mxu0
      %v936 = vadd.f32 0.0, %v935
      %v937 = vpop.f32.mrb[0].mxu0
      %938 = vmatprep.mubr.bf16.mxu0 0
      %939 = vmatmul.mubr.bf16.gmra.mrb[0].mxu0 %v777
      %v940 = vpop.f32.mrb[0].mxu0
      %v941 = vadd.f32 0.0, %v940
      %v942 = vpop.f32.mrb[0].mxu0
      %v943 = vpop.f32.mrb[0].mxu0
      %v944 = vadd.f32 0.0, %v943
      %v945 = vpop.f32.mrb[0].mxu0
      %946 = vmatprep.mubr.bf16.mxu0 0
      %947 = vmatmul.mubr.bf16.gmra.mrb[0].mxu0 %v778
      %v948 = vpop.f32.mrb[0].mxu0
      %v949 = vadd.f32 0.0, %v948
      %v950 = vpop.f32.mrb[0].mxu0
      %v951 = vpop.f32.mrb[0].mxu0
      %v952 = vadd.f32 0.0, %v951
      %v953 = vpop.f32.mrb[0].mxu0
      %954 = vmatprep.mubr.bf16.mxu0 0
      %955 = vmatmul.mubr.bf16.gmra.mrb[0].mxu0 %v779
      %v956 = vpop.f32.mrb[0].mxu0
      %v957 = vadd.f32 0.0, %v956
      %v958 = vpop.f32.mrb[0].mxu0
      %v959 = vpop.f32.mrb[0].mxu0
      %v960 = vadd.f32 0.0, %v959
      %v961 = vpop.f32.mrb[0].mxu0
      %962 = vmatprep.mubr.bf16.mxu0 0
      %963 = vmatmul.mubr.bf16.gmra.mrb[0].mxu0 %v780
      %v964 = vpop.f32.mrb[0].mxu0
      %v965 = vadd.f32 0.0, %v964
      %v966 = vpop.f32.mrb[0].mxu0
      %v967 = vpop.f32.mrb[0].mxu0
      %v968 = vadd.f32 0.0, %v967
      %v969 = vpop.f32.mrb[0].mxu0
      %970 = vmatprep.mubr.bf16.mxu0 0
      %971 = vmatmul.mubr.bf16.gmra.mrb[0].mxu0 %v781
      %v972 = vpop.f32.mrb[0].mxu0
      %v973 = vadd.f32 0.0, %v972
      %v974 = vpop.f32.mrb[0].mxu0
      %v975 = vpop.f32.mrb[0].mxu0
      %v976 = vadd.f32 0.0, %v975
      %v977 = vpop.f32.mrb[0].mxu0
      %978 = vmatprep.mubr.bf16.mxu0 0
      %979 = vmatmul.mubr.bf16.gmra.mrb[0].mxu0 %v782
      %v980 = vpop.f32.mrb[0].mxu0
      %v981 = vadd.f32 0.0, %v980
      %v982 = vpop.f32.mrb[0].mxu0
      %v983 = vpop.f32.mrb[0].mxu0
      %v984 = vadd.f32 0.0, %v983
      %v985 = vpop.f32.mrb[0].mxu0
      %986 = vmatprep.mubr.bf16.mxu0 0
      %987 = vmatmul.mubr.bf16.gmra.mrb[0].mxu0 %v783
      %v988 = vpop.f32.mrb[0].mxu0
      %v989 = vadd.f32 0.0, %v988
      %v990 = vpop.f32.mrb[0].mxu0
      %v991 = vpop.f32.mrb[0].mxu0
      %v992 = vadd.f32 0.0, %v991
      %v993 = vpop.f32.mrb[0].mxu0
      %994 = vmatprep.mubr.bf16.mxu0 0
      %995 = vmatmul.mubr.bf16.gmra.mrb[0].mxu0 %v784
      %v996 = vpop.f32.mrb[0].mxu0
      %v997 = vadd.f32 0.0, %v996
      %v998 = vpop.f32.mrb[0].mxu0
      %v999 = vpop.f32.mrb[0].mxu0
      %v1000 = vadd.f32 0.0, %v999
      %v1001 = vpop.f32.mrb[0].mxu0
      %1002 = vmatprep.mubr.bf16.mxu0 0
      %1003 = vmatmul.mubr.bf16.gmra.mrb[0].mxu0 %v785
      %v1004 = vpop.f32.mrb[0].mxu0
      %v1005 = vadd.f32 0.0, %v1004
      %v1006 = vpop.f32.mrb[0].mxu0
      %v1007 = vpop.f32.mrb[0].mxu0
      %v1008 = vadd.f32 0.0, %v1007
      %v1009 = vpop.f32.mrb[0].mxu0
      %1010 = vdwg.mxu0
      %v1043 = vunpack.c.l.b16 %v270
      %v1044 = vunpack.c.l.b16 %v271
      %v1045 = vunpack.c.l.b16 %v272
      %v1046 = vunpack.c.l.b16 %v273
      %v1047 = vunpack.c.l.b16 %v274
      %v1048 = vunpack.c.l.b16 %v275
      %v1049 = vunpack.c.l.b16 %v276
      %v1050 = vunpack.c.l.b16 %v277
      %v1051 = vunpack.c.l.b16 %v278
      %v1052 = vunpack.c.l.b16 %v279
      %v1053 = vunpack.c.l.b16 %v280
      %v1054 = vunpack.c.l.b16 %v281
      %v1055 = vunpack.c.l.b16 %v282
      %v1056 = vunpack.c.l.b16 %v283
      %v1057 = vunpack.c.l.b16 %v284
      %v1058 = vunpack.c.l.b16 %v285
      %v1059 = vunpack.c.l.b16 %v286
      %v1060 = vunpack.c.l.b16 %v287
      %v1061 = vunpack.c.l.b16 %v288
      %v1062 = vunpack.c.l.b16 %v289
      %v1063 = vunpack.c.l.b16 %v290
      %v1064 = vunpack.c.l.b16 %v291
      %v1065 = vunpack.c.l.b16 %v292
      %v1066 = vunpack.c.l.b16 %v293
      %v1067 = vunpack.c.l.b16 %v294
      %v1068 = vunpack.c.l.b16 %v295
      %v1069 = vunpack.c.l.b16 %v296
      %v1070 = vunpack.c.l.b16 %v297
      %v1071 = vunpack.c.l.b16 %v298
      %v1072 = vunpack.c.l.b16 %v299
      %v1073 = vunpack.c.l.b16 %v300
      %v1074 = vunpack.c.l.b16 %v301
      %v1075 = vpack.c.b16 %v1044, %v1043
      %v1076 = vpack.c.b16 %v1046, %v1045
      %v1077 = vpack.c.b16 %v1048, %v1047
      %v1078 = vpack.c.b16 %v1050, %v1049
      %v1079 = vpack.c.b16 %v1052, %v1051
      %v1080 = vpack.c.b16 %v1054, %v1053
      %v1081 = vpack.c.b16 %v1056, %v1055
      %v1082 = vpack.c.b16 %v1058, %v1057
      %v1083 = vpack.c.b16 %v1060, %v1059
      %v1084 = vpack.c.b16 %v1062, %v1061
      %v1085 = vpack.c.b16 %v1064, %v1063
      %v1086 = vpack.c.b16 %v1066, %v1065
      %v1087 = vpack.c.b16 %v1068, %v1067
      %v1088 = vpack.c.b16 %v1070, %v1069
      %v1089 = vpack.c.b16 %v1072, %v1071
      %v1090 = vpack.c.b16 %v1074, %v1073
      %v1123 = vunpack.c.l.b16 %v302
      %v1124 = vunpack.c.l.b16 %v303
      %v1125 = vunpack.c.l.b16 %v304
      %v1126 = vunpack.c.l.b16 %v305
      %v1127 = vunpack.c.l.b16 %v306
      %v1128 = vunpack.c.l.b16 %v307
      %v1129 = vunpack.c.l.b16 %v308
      %v1130 = vunpack.c.l.b16 %v309
      %v1131 = vunpack.c.l.b16 %v310
      %v1132 = vunpack.c.l.b16 %v311
      %v1133 = vunpack.c.l.b16 %v312
      %v1134 = vunpack.c.l.b16 %v313
      %v1135 = vunpack.c.l.b16 %v314
      %v1136 = vunpack.c.l.b16 %v315
      %v1137 = vunpack.c.l.b16 %v316
      %v1138 = vunpack.c.l.b16 %v317
      %v1139 = vpack.c.b16 %v1124, %v1123
      %v1140 = vpack.c.b16 %v1126, %v1125
      %v1141 = vpack.c.b16 %v1128, %v1127
      %v1142 = vpack.c.b16 %v1130, %v1129
      %v1143 = vpack.c.b16 %v1132, %v1131
      %v1144 = vpack.c.b16 %v1134, %v1133
      %v1145 = vpack.c.b16 %v1136, %v1135
      %v1146 = vpack.c.b16 %v1138, %v1137
      %1155 = vmatprep.subr.bf16.mxu0 0
      %1156 = vmatpush1.bf16.msra.mxu0 %v1139
      %1157 = vmatprep.subr.bf16.mxu0 0
      %1158 = vmatpush1.bf16.msra.mxu0 %v1140
      %1159 = vmatprep.subr.bf16.mxu0 0
      %1160 = vmatpush1.bf16.msra.mxu0 %v1141
      %1161 = vmatprep.subr.bf16.mxu0 0
      %1162 = vmatpush1.bf16.msra.mxu0 %v1142
      %1163 = vmatprep.subr.bf16.mxu0 0
      %1164 = vmatpush1.bf16.msra.mxu0 %v1143
      %1165 = vmatprep.subr.bf16.mxu0 0
      %1166 = vmatpush1.bf16.msra.mxu0 %v1144
      %1167 = vmatprep.subr.bf16.mxu0 0
      %1168 = vmatpush1.bf16.msra.mxu0 %v1145
      %1169 = vmatprep.subr.bf16.mxu0 0
      %1170 = vmatpush1.bf16.msra.mxu0 %v1146
      %1171 = vmatprep.subr.bf16.mxu0 0
      %1172 = vmatpush1.bf16.msra.mxu0 0
      %1173 = vmatprep.subr.bf16.mxu0 0
      %1174 = vmatpush1.bf16.msra.mxu0 0
      %1175 = vmatprep.subr.bf16.mxu0 0
      %1176 = vmatpush1.bf16.msra.mxu0 0
      %1177 = vmatprep.subr.bf16.mxu0 0
      %1178 = vmatpush1.bf16.msra.mxu0 0
      %1179 = vmatprep.subr.bf16.mxu0 0
      %1180 = vmatpush1.bf16.msra.mxu0 0
      %1181 = vmatprep.subr.bf16.mxu0 0
      %1182 = vmatpush1.bf16.msra.mxu0 0
      %1183 = vmatprep.subr.bf16.mxu0 0
      %1184 = vmatpush1.bf16.msra.mxu0 0
      %1185 = vmatprep.subr.bf16.mxu0 0
      %1186 = vmatpush1.bf16.msra.mxu0 0
      %1187 = vmatprep.mubr.bf16.mxu0 0
      %1188 = vmatmul.mubr.bf16.gmra.mrb[0].mxu0 %v1075
      %v1189 = vpop.f32.mrb[0].mxu0
      %v1190 = vadd.f32 %v885, %v1189
      %v1191 = vpop.f32.mrb[0].mxu0
      %v1192 = vpop.f32.mrb[0].mxu0
      %v1193 = vadd.f32 %v888, %v1192
      %v1194 = vpop.f32.mrb[0].mxu0
      %1195 = vmatprep.mubr.bf16.mxu0 0
      %1196 = vmatmul.mubr.bf16.gmra.mrb[0].mxu0 %v1076
      %v1197 = vpop.f32.mrb[0].mxu0
      %v1198 = vadd.f32 %v893, %v1197
      %v1199 = vpop.f32.mrb[0].mxu0
      %v1200 = vpop.f32.mrb[0].mxu0
      %v1201 = vadd.f32 %v896, %v1200
      %v1202 = vpop.f32.mrb[0].mxu0
      %1203 = vmatprep.mubr.bf16.mxu0 0
      %1204 = vmatmul.mubr.bf16.gmra.mrb[0].mxu0 %v1077
      %v1205 = vpop.f32.mrb[0].mxu0
      %v1206 = vadd.f32 %v901, %v1205
      %v1207 = vpop.f32.mrb[0].mxu0
      %v1208 = vpop.f32.mrb[0].mxu0
      %v1209 = vadd.f32 %v904, %v1208
      %v1210 = vpop.f32.mrb[0].mxu0
      %1211 = vmatprep.mubr.bf16.mxu0 0
      %1212 = vmatmul.mubr.bf16.gmra.mrb[0].mxu0 %v1078
      %v1213 = vpop.f32.mrb[0].mxu0
      %v1214 = vadd.f32 %v909, %v1213
      %v1215 = vpop.f32.mrb[0].mxu0
      %v1216 = vpop.f32.mrb[0].mxu0
      %v1217 = vadd.f32 %v912, %v1216
      %v1218 = vpop.f32.mrb[0].mxu0
      %1219 = vmatprep.mubr.bf16.mxu0 0
      %1220 = vmatmul.mubr.bf16.gmra.mrb[0].mxu0 %v1079
      %v1221 = vpop.f32.mrb[0].mxu0
      %v1222 = vadd.f32 %v917, %v1221
      %v1223 = vpop.f32.mrb[0].mxu0
      %v1224 = vpop.f32.mrb[0].mxu0
      %v1225 = vadd.f32 %v920, %v1224
      %v1226 = vpop.f32.mrb[0].mxu0
      %1227 = vmatprep.mubr.bf16.mxu0 0
      %1228 = vmatmul.mubr.bf16.gmra.mrb[0].mxu0 %v1080
      %v1229 = vpop.f32.mrb[0].mxu0
      %v1230 = vadd.f32 %v925, %v1229
      %v1231 = vpop.f32.mrb[0].mxu0
      %v1232 = vpop.f32.mrb[0].mxu0
      %v1233 = vadd.f32 %v928, %v1232
      %v1234 = vpop.f32.mrb[0].mxu0
      %1235 = vmatprep.mubr.bf16.mxu0 0
      %1236 = vmatmul.mubr.bf16.gmra.mrb[0].mxu0 %v1081
      %v1237 = vpop.f32.mrb[0].mxu0
      %v1238 = vadd.f32 %v933, %v1237
      %v1239 = vpop.f32.mrb[0].mxu0
      %v1240 = vpop.f32.mrb[0].mxu0
      %v1241 = vadd.f32 %v936, %v1240
      %v1242 = vpop.f32.mrb[0].mxu0
      %1243 = vmatprep.mubr.bf16.mxu0 0
      %1244 = vmatmul.mubr.bf16.gmra.mrb[0].mxu0 %v1082
      %v1245 = vpop.f32.mrb[0].mxu0
      %v1246 = vadd.f32 %v941, %v1245
      %v1247 = vpop.f32.mrb[0].mxu0
      %v1248 = vpop.f32.mrb[0].mxu0
      %v1249 = vadd.f32 %v944, %v1248
      %v1250 = vpop.f32.mrb[0].mxu0
      %1251 = vmatprep.mubr.bf16.mxu0 0
      %1252 = vmatmul.mubr.bf16.gmra.mrb[0].mxu0 %v1083
      %v1253 = vpop.f32.mrb[0].mxu0
      %v1254 = vadd.f32 %v949, %v1253
      %v1255 = vpop.f32.mrb[0].mxu0
      %v1256 = vpop.f32.mrb[0].mxu0
      %v1257 = vadd.f32 %v952, %v1256
      %v1258 = vpop.f32.mrb[0].mxu0
      %1259 = vmatprep.mubr.bf16.mxu0 0
      %1260 = vmatmul.mubr.bf16.gmra.mrb[0].mxu0 %v1084
      %v1261 = vpop.f32.mrb[0].mxu0
      %v1262 = vadd.f32 %v957, %v1261
      %v1263 = vpop.f32.mrb[0].mxu0
      %v1264 = vpop.f32.mrb[0].mxu0
      %v1265 = vadd.f32 %v960, %v1264
      %v1266 = vpop.f32.mrb[0].mxu0
      %1267 = vmatprep.mubr.bf16.mxu0 0
      %1268 = vmatmul.mubr.bf16.gmra.mrb[0].mxu0 %v1085
      %v1269 = vpop.f32.mrb[0].mxu0
      %v1270 = vadd.f32 %v965, %v1269
      %v1271 = vpop.f32.mrb[0].mxu0
      %v1272 = vpop.f32.mrb[0].mxu0
      %v1273 = vadd.f32 %v968, %v1272
      %v1274 = vpop.f32.mrb[0].mxu0
      %1275 = vmatprep.mubr.bf16.mxu0 0
      %1276 = vmatmul.mubr.bf16.gmra.mrb[0].mxu0 %v1086
      %v1277 = vpop.f32.mrb[0].mxu0
      %v1278 = vadd.f32 %v973, %v1277
      %v1279 = vpop.f32.mrb[0].mxu0
      %v1280 = vpop.f32.mrb[0].mxu0
      %v1281 = vadd.f32 %v976, %v1280
      %v1282 = vpop.f32.mrb[0].mxu0
      %1283 = vmatprep.mubr.bf16.mxu0 0
      %1284 = vmatmul.mubr.bf16.gmra.mrb[0].mxu0 %v1087
      %v1285 = vpop.f32.mrb[0].mxu0
      %v1286 = vadd.f32 %v981, %v1285
      %v1287 = vpop.f32.mrb[0].mxu0
      %v1288 = vpop.f32.mrb[0].mxu0
      %v1289 = vadd.f32 %v984, %v1288
      %v1290 = vpop.f32.mrb[0].mxu0
      %1291 = vmatprep.mubr.bf16.mxu0 0
      %1292 = vmatmul.mubr.bf16.gmra.mrb[0].mxu0 %v1088
      %v1293 = vpop.f32.mrb[0].mxu0
      %v1294 = vadd.f32 %v989, %v1293
      %v1295 = vpop.f32.mrb[0].mxu0
      %v1296 = vpop.f32.mrb[0].mxu0
      %v1297 = vadd.f32 %v992, %v1296
      %v1298 = vpop.f32.mrb[0].mxu0
      %1299 = vmatprep.mubr.bf16.mxu0 0
      %1300 = vmatmul.mubr.bf16.gmra.mrb[0].mxu0 %v1089
      %v1301 = vpop.f32.mrb[0].mxu0
      %v1302 = vadd.f32 %v997, %v1301
      %v1303 = vpop.f32.mrb[0].mxu0
      %v1304 = vpop.f32.mrb[0].mxu0
      %v1305 = vadd.f32 %v1000, %v1304
      %v1306 = vpop.f32.mrb[0].mxu0
      %1307 = vmatprep.mubr.bf16.mxu0 0
      %1308 = vmatmul.mubr.bf16.gmra.mrb[0].mxu0 %v1090
      %v1309 = vpop.f32.mrb[0].mxu0
      %v1310 = vadd.f32 %v1005, %v1309
      %v1311 = vpop.f32.mrb[0].mxu0
      %v1312 = vpop.f32.mrb[0].mxu0
      %v1313 = vadd.f32 %v1008, %v1312
      %v1314 = vpop.f32.mrb[0].mxu0
      %1315 = vdwg.mxu0
      %v1316 = vld [vmem:[%s243] sm:$0xe]
      %v1317 = vld [vmem:[%s243 + $0xc] sm:$0xe]
      %v1318 = vld [vmem:[%s243 + $0x18] sm:$0xe]
      %v1319 = vld [vmem:[%s243 + $0x24] sm:$0xe]
      %v1320 = vld [vmem:[%s243 + $0x30] sm:$0xe]
      %v1321 = vld [vmem:[%s243 + $0x3c] sm:$0xe]
      %v1322 = vld [vmem:[%s243 + $0x48] sm:$0xe]
      %v1323 = vld [vmem:[%s243 + $0x54] sm:$0xe]
      %v1324 = vld [vmem:[%s243 + $0x60] sm:$0xe]
      %v1325 = vld [vmem:[%s243 + $0x6c] sm:$0xe]
      %v1326 = vld [vmem:[%s243 + $0x78] sm:$0xe]
      %v1327 = vld [vmem:[%s243 + $0x84] sm:$0xe]
      %v1328 = vld [vmem:[%s243 + $0x90] sm:$0xe]
      %v1329 = vld [vmem:[%s243 + $0x9c] sm:$0xe]
      %v1330 = vld [vmem:[%s243 + $0xa8] sm:$0xe]
      %v1331 = vld [vmem:[%s243 + $0xb4] sm:$0xe]
      %vm1364 = vcmask 1042432
      %vm1365 = vcmask 1046532
      %vm1366 = vmor %vm1364, %vm1365
      %v1367 = vrot.slane %v1316, 5
      %v1368 = vrot.slane %v1367, 4
      %v1369 = vrot.slane %v271, 5
      %v1370 = vsel %vm1366, %v1368, %v1369
      %v1371 = vrot.slane %v1369, 4
      %v1372 = vrot.slane %v318, 5
      %v1373 = vsel %vm1366, %v1371, %v1372
      %v1374 = vrot.slane %v1317, 5
      %v1375 = vrot.slane %v1374, 4
      %v1376 = vrot.slane %v273, 5
      %v1377 = vsel %vm1366, %v1375, %v1376
      %v1378 = vrot.slane %v1376, 4
      %v1379 = vrot.slane %v319, 5
      %v1380 = vsel %vm1366, %v1378, %v1379
      %v1381 = vrot.slane %v1318, 5
      %v1382 = vrot.slane %v1381, 4
      %v1383 = vrot.slane %v275, 5
      %v1384 = vsel %vm1366, %v1382, %v1383
      %v1385 = vrot.slane %v1383, 4
      %v1386 = vrot.slane %v320, 5
      %v1387 = vsel %vm1366, %v1385, %v1386
      %v1388 = vrot.slane %v1319, 5
      %v1389 = vrot.slane %v1388, 4
      %v1390 = vrot.slane %v277, 5
      %v1391 = vsel %vm1366, %v1389, %v1390
      %v1392 = vrot.slane %v1390, 4
      %v1393 = vrot.slane %v321, 5
      %v1394 = vsel %vm1366, %v1392, %v1393
      %v1395 = vrot.slane %v1320, 5
      %v1396 = vrot.slane %v1395, 4
      %v1397 = vrot.slane %v279, 5
      %v1398 = vsel %vm1366, %v1396, %v1397
      %v1399 = vrot.slane %v1397, 4
      %v1400 = vrot.slane %v322, 5
      %v1401 = vsel %vm1366, %v1399, %v1400
      %v1402 = vrot.slane %v1321, 5
      %v1403 = vrot.slane %v1402, 4
      %v1404 = vrot.slane %v281, 5
      %v1405 = vsel %vm1366, %v1403, %v1404
      %v1406 = vrot.slane %v1404, 4
      %v1407 = vrot.slane %v323, 5
      %v1408 = vsel %vm1366, %v1406, %v1407
      %v1409 = vrot.slane %v1322, 5
      %v1410 = vrot.slane %v1409, 4
      %v1411 = vrot.slane %v283, 5
      %v1412 = vsel %vm1366, %v1410, %v1411
      %v1413 = vrot.slane %v1411, 4
      %v1414 = vrot.slane %v324, 5
      %v1415 = vsel %vm1366, %v1413, %v1414
      %v1416 = vrot.slane %v1323, 5
      %v1417 = vrot.slane %v1416, 4
      %v1418 = vrot.slane %v285, 5
      %v1419 = vsel %vm1366, %v1417, %v1418
      %v1420 = vrot.slane %v1418, 4
      %v1421 = vrot.slane %v325, 5
      %v1422 = vsel %vm1366, %v1420, %v1421
      %v1423 = vrot.slane %v1324, 5
      %v1424 = vrot.slane %v1423, 4
      %v1425 = vrot.slane %v287, 5
      %v1426 = vsel %vm1366, %v1424, %v1425
      %v1427 = vrot.slane %v1425, 4
      %v1428 = vrot.slane %v326, 5
      %v1429 = vsel %vm1366, %v1427, %v1428
      %v1430 = vrot.slane %v1325, 5
      %v1431 = vrot.slane %v1430, 4
      %v1432 = vrot.slane %v289, 5
      %v1433 = vsel %vm1366, %v1431, %v1432
      %v1434 = vrot.slane %v1432, 4
      %v1435 = vrot.slane %v327, 5
      %v1436 = vsel %vm1366, %v1434, %v1435
      %v1437 = vrot.slane %v1326, 5
      %v1438 = vrot.slane %v1437, 4
      %v1439 = vrot.slane %v291, 5
      %v1440 = vsel %vm1366, %v1438, %v1439
      %v1441 = vrot.slane %v1439, 4
      %v1442 = vrot.slane %v328, 5
      %v1443 = vsel %vm1366, %v1441, %v1442
      %v1444 = vrot.slane %v1327, 5
      %v1445 = vrot.slane %v1444, 4
      %v1446 = vrot.slane %v293, 5
      %v1447 = vsel %vm1366, %v1445, %v1446
      %v1448 = vrot.slane %v1446, 4
      %v1449 = vrot.slane %v329, 5
      %v1450 = vsel %vm1366, %v1448, %v1449
      %v1451 = vrot.slane %v1328, 5
      %v1452 = vrot.slane %v1451, 4
      %v1453 = vrot.slane %v295, 5
      %v1454 = vsel %vm1366, %v1452, %v1453
      %v1455 = vrot.slane %v1453, 4
      %v1456 = vrot.slane %v330, 5
      %v1457 = vsel %vm1366, %v1455, %v1456
      %v1458 = vrot.slane %v1329, 5
      %v1459 = vrot.slane %v1458, 4
      %v1460 = vrot.slane %v297, 5
      %v1461 = vsel %vm1366, %v1459, %v1460
      %v1462 = vrot.slane %v1460, 4
      %v1463 = vrot.slane %v331, 5
      %v1464 = vsel %vm1366, %v1462, %v1463
      %v1465 = vrot.slane %v1330, 5
      %v1466 = vrot.slane %v1465, 4
      %v1467 = vrot.slane %v299, 5
      %v1468 = vsel %vm1366, %v1466, %v1467
      %v1469 = vrot.slane %v1467, 4
      %v1470 = vrot.slane %v332, 5
      %v1471 = vsel %vm1366, %v1469, %v1470
      %v1472 = vrot.slane %v1331, 5
      %v1473 = vrot.slane %v1472, 4
      %v1474 = vrot.slane %v301, 5
      %v1475 = vsel %vm1366, %v1473, %v1474
      %v1476 = vrot.slane %v1474, 4
      %v1477 = vrot.slane %v333, 5
      %v1478 = vsel %vm1366, %v1476, %v1477
      %s1479 = scalar_lea.vmem %s247, 128
      %v1480 = vld [vmem:[%s1479] sm:$0xf]
      %v1481 = vld [vmem:[%s1479 + $0x4] sm:$0xf]
      %v1482 = vld [vmem:[%s1479 + $0x8] sm:$0xf]
      %v1483 = vld [vmem:[%s1479 + $0xc] sm:$0xf]
      %v1484 = vld [vmem:[%s1479 + $0x10] sm:$0xf]
      %v1485 = vld [vmem:[%s1479 + $0x14] sm:$0xf]
      %v1486 = vld [vmem:[%s1479 + $0x18] sm:$0xf]
      %v1487 = vld [vmem:[%s1479 + $0x1c] sm:$0xf]
      %v1488 = vld [vmem:[%s1479 + $0x20] sm:$0xf]
      %v1489 = vld [vmem:[%s1479 + $0x24] sm:$0xf]
      %v1490 = vld [vmem:[%s1479 + $0x28] sm:$0xf]
      %v1491 = vld [vmem:[%s1479 + $0x2c] sm:$0xf]
      %v1492 = vld [vmem:[%s1479 + $0x30] sm:$0xf]
      %v1493 = vld [vmem:[%s1479 + $0x34] sm:$0xf]
      %v1494 = vld [vmem:[%s1479 + $0x38] sm:$0xf]
      %v1495 = vld [vmem:[%s1479 + $0x3c] sm:$0xf]
      %v1496 = vunpack.c.l.b16 %v1370
      %v1497 = vunpack.c.l.b16 %v1373
      %v1498 = vunpack.c.l.b16 %v1377
      %v1499 = vunpack.c.l.b16 %v1380
      %v1500 = vunpack.c.l.b16 %v1384
      %v1501 = vunpack.c.l.b16 %v1387
      %v1502 = vunpack.c.l.b16 %v1391
      %v1503 = vunpack.c.l.b16 %v1394
      %v1504 = vunpack.c.l.b16 %v1398
      %v1505 = vunpack.c.l.b16 %v1401
      %v1506 = vunpack.c.l.b16 %v1405
      %v1507 = vunpack.c.l.b16 %v1408
      %v1508 = vunpack.c.l.b16 %v1412
      %v1509 = vunpack.c.l.b16 %v1415
      %v1510 = vunpack.c.l.b16 %v1419
      %v1511 = vunpack.c.l.b16 %v1422
      %v1512 = vunpack.c.l.b16 %v1426
      %v1513 = vunpack.c.l.b16 %v1429
      %v1514 = vunpack.c.l.b16 %v1433
      %v1515 = vunpack.c.l.b16 %v1436
      %v1516 = vunpack.c.l.b16 %v1440
      %v1517 = vunpack.c.l.b16 %v1443
      %v1518 = vunpack.c.l.b16 %v1447
      %v1519 = vunpack.c.l.b16 %v1450
      %v1520 = vunpack.c.l.b16 %v1454
      %v1521 = vunpack.c.l.b16 %v1457
      %v1522 = vunpack.c.l.b16 %v1461
      %v1523 = vunpack.c.l.b16 %v1464
      %v1524 = vunpack.c.l.b16 %v1468
      %v1525 = vunpack.c.l.b16 %v1471
      %v1526 = vunpack.c.l.b16 %v1475
      %v1527 = vunpack.c.l.b16 %v1478
      %v1528 = vpack.c.b16 %v1497, %v1496
      %v1529 = vpack.c.b16 %v1499, %v1498
      %v1530 = vpack.c.b16 %v1501, %v1500
      %v1531 = vpack.c.b16 %v1503, %v1502
      %v1532 = vpack.c.b16 %v1505, %v1504
      %v1533 = vpack.c.b16 %v1507, %v1506
      %v1534 = vpack.c.b16 %v1509, %v1508
      %v1535 = vpack.c.b16 %v1511, %v1510
      %v1536 = vpack.c.b16 %v1513, %v1512
      %v1537 = vpack.c.b16 %v1515, %v1514
      %v1538 = vpack.c.b16 %v1517, %v1516
      %v1539 = vpack.c.b16 %v1519, %v1518
      %v1540 = vpack.c.b16 %v1521, %v1520
      %v1541 = vpack.c.b16 %v1523, %v1522
      %v1542 = vpack.c.b16 %v1525, %v1524
      %v1543 = vpack.c.b16 %v1527, %v1526
      %v1576 = vunpack.c.l.b16 %v1480
      %v1577 = vunpack.c.l.b16 %v1481
      %v1578 = vunpack.c.l.b16 %v1482
      %v1579 = vunpack.c.l.b16 %v1483
      %v1580 = vunpack.c.l.b16 %v1484
      %v1581 = vunpack.c.l.b16 %v1485
      %v1582 = vunpack.c.l.b16 %v1486
      %v1583 = vunpack.c.l.b16 %v1487
      %v1584 = vunpack.c.l.b16 %v1488
      %v1585 = vunpack.c.l.b16 %v1489
      %v1586 = vunpack.c.l.b16 %v1490
      %v1587 = vunpack.c.l.b16 %v1491
      %v1588 = vunpack.c.l.b16 %v1492
      %v1589 = vunpack.c.l.b16 %v1493
      %v1590 = vunpack.c.l.b16 %v1494
      %v1591 = vunpack.c.l.b16 %v1495
      %v1592 = vpack.c.b16 %v1577, %v1576
      %v1593 = vpack.c.b16 %v1579, %v1578
      %v1594 = vpack.c.b16 %v1581, %v1580
      %v1595 = vpack.c.b16 %v1583, %v1582
      %v1596 = vpack.c.b16 %v1585, %v1584
      %v1597 = vpack.c.b16 %v1587, %v1586
      %v1598 = vpack.c.b16 %v1589, %v1588
      %v1599 = vpack.c.b16 %v1591, %v1590
      %1608 = vmatprep.subr.bf16.mxu0 0
      %1609 = vmatpush1.bf16.msra.mxu0 %v1592
      %1610 = vmatprep.subr.bf16.mxu0 0
      %1611 = vmatpush1.bf16.msra.mxu0 %v1593
      %1612 = vmatprep.subr.bf16.mxu0 0
      %1613 = vmatpush1.bf16.msra.mxu0 %v1594
      %1614 = vmatprep.subr.bf16.mxu0 0
      %1615 = vmatpush1.bf16.msra.mxu0 %v1595
      %1616 = vmatprep.subr.bf16.mxu0 0
      %1617 = vmatpush1.bf16.msra.mxu0 %v1596
      %1618 = vmatprep.subr.bf16.mxu0 0
      %1619 = vmatpush1.bf16.msra.mxu0 %v1597
      %1620 = vmatprep.subr.bf16.mxu0 0
      %1621 = vmatpush1.bf16.msra.mxu0 %v1598
      %1622 = vmatprep.subr.bf16.mxu0 0
      %1623 = vmatpush1.bf16.msra.mxu0 %v1599
      %1624 = vmatprep.subr.bf16.mxu0 0
      %1625 = vmatpush1.bf16.msra.mxu0 0
      %1626 = vmatprep.subr.bf16.mxu0 0
      %1627 = vmatpush1.bf16.msra.mxu0 0
      %1628 = vmatprep.subr.bf16.mxu0 0
      %1629 = vmatpush1.bf16.msra.mxu0 0
      %1630 = vmatprep.subr.bf16.mxu0 0
      %1631 = vmatpush1.bf16.msra.mxu0 0
      %1632 = vmatprep.subr.bf16.mxu0 0
      %1633 = vmatpush1.bf16.msra.mxu0 0
      %1634 = vmatprep.subr.bf16.mxu0 0
      %1635 = vmatpush1.bf16.msra.mxu0 0
      %1636 = vmatprep.subr.bf16.mxu0 0
      %1637 = vmatpush1.bf16.msra.mxu0 0
      %1638 = vmatprep.subr.bf16.mxu0 0
      %1639 = vmatpush1.bf16.msra.mxu0 0
      %1640 = vmatprep.mubr.bf16.mxu0 0
      %1641 = vmatmul.mubr.bf16.gmra.mrb[0].mxu0 %v1528
      %v1642 = vpop.f32.mrb[0].mxu0
      %v1643 = vadd.f32 0.0, %v1642
      %v1644 = vpop.f32.mrb[0].mxu0
      %v1645 = vpop.f32.mrb[0].mxu0
      %v1646 = vadd.f32 0.0, %v1645
      %v1647 = vpop.f32.mrb[0].mxu0
      %1648 = vmatprep.mubr.bf16.mxu0 0
      %1649 = vmatmul.mubr.bf16.gmra.mrb[0].mxu0 %v1529
      %v1650 = vpop.f32.mrb[0].mxu0
      %v1651 = vadd.f32 0.0, %v1650
      %v1652 = vpop.f32.mrb[0].mxu0
      %v1653 = vpop.f32.mrb[0].mxu0
      %v1654 = vadd.f32 0.0, %v1653
      %v1655 = vpop.f32.mrb[0].mxu0
      %1656 = vmatprep.mubr.bf16.mxu0 0
      %1657 = vmatmul.mubr.bf16.gmra.mrb[0].mxu0 %v1530
      %v1658 = vpop.f32.mrb[0].mxu0
      %v1659 = vadd.f32 0.0, %v1658
      %v1660 = vpop.f32.mrb[0].mxu0
      %v1661 = vpop.f32.mrb[0].mxu0
      %v1662 = vadd.f32 0.0, %v1661
      %v1663 = vpop.f32.mrb[0].mxu0
      %1664 = vmatprep.mubr.bf16.mxu0 0
      %1665 = vmatmul.mubr.bf16.gmra.mrb[0].mxu0 %v1531
      %v1666 = vpop.f32.mrb[0].mxu0
      %v1667 = vadd.f32 0.0, %v1666
      %v1668 = vpop.f32.mrb[0].mxu0
      %v1669 = vpop.f32.mrb[0].mxu0
      %v1670 = vadd.f32 0.0, %v1669
      %v1671 = vpop.f32.mrb[0].mxu0
      %1672 = vmatprep.mubr.bf16.mxu0 0
      %1673 = vmatmul.mubr.bf16.gmra.mrb[0].mxu0 %v1532
      %v1674 = vpop.f32.mrb[0].mxu0
      %v1675 = vadd.f32 0.0, %v1674
      %v1676 = vpop.f32.mrb[0].mxu0
      %v1677 = vpop.f32.mrb[0].mxu0
      %v1678 = vadd.f32 0.0, %v1677
      %v1679 = vpop.f32.mrb[0].mxu0
      %1680 = vmatprep.mubr.bf16.mxu0 0
      %1681 = vmatmul.mubr.bf16.gmra.mrb[0].mxu0 %v1533
      %v1682 = vpop.f32.mrb[0].mxu0
      %v1683 = vadd.f32 0.0, %v1682
      %v1684 = vpop.f32.mrb[0].mxu0
      %v1685 = vpop.f32.mrb[0].mxu0
      %v1686 = vadd.f32 0.0, %v1685
      %v1687 = vpop.f32.mrb[0].mxu0
      %1688 = vmatprep.mubr.bf16.mxu0 0
      %1689 = vmatmul.mubr.bf16.gmra.mrb[0].mxu0 %v1534
      %v1690 = vpop.f32.mrb[0].mxu0
      %v1691 = vadd.f32 0.0, %v1690
      %v1692 = vpop.f32.mrb[0].mxu0
      %v1693 = vpop.f32.mrb[0].mxu0
      %v1694 = vadd.f32 0.0, %v1693
      %v1695 = vpop.f32.mrb[0].mxu0
      %1696 = vmatprep.mubr.bf16.mxu0 0
      %1697 = vmatmul.mubr.bf16.gmra.mrb[0].mxu0 %v1535
      %v1698 = vpop.f32.mrb[0].mxu0
      %v1699 = vadd.f32 0.0, %v1698
      %v1700 = vpop.f32.mrb[0].mxu0
      %v1701 = vpop.f32.mrb[0].mxu0
      %v1702 = vadd.f32 0.0, %v1701
      %v1703 = vpop.f32.mrb[0].mxu0
      %1704 = vmatprep.mubr.bf16.mxu0 0
      %1705 = vmatmul.mubr.bf16.gmra.mrb[0].mxu0 %v1536
      %v1706 = vpop.f32.mrb[0].mxu0
      %v1707 = vadd.f32 0.0, %v1706
      %v1708 = vpop.f32.mrb[0].mxu0
      %v1709 = vpop.f32.mrb[0].mxu0
      %v1710 = vadd.f32 0.0, %v1709
      %v1711 = vpop.f32.mrb[0].mxu0
      %1712 = vmatprep.mubr.bf16.mxu0 0
      %1713 = vmatmul.mubr.bf16.gmra.mrb[0].mxu0 %v1537
      %v1714 = vpop.f32.mrb[0].mxu0
      %v1715 = vadd.f32 0.0, %v1714
      %v1716 = vpop.f32.mrb[0].mxu0
      %v1717 = vpop.f32.mrb[0].mxu0
      %v1718 = vadd.f32 0.0, %v1717
      %v1719 = vpop.f32.mrb[0].mxu0
      %1720 = vmatprep.mubr.bf16.mxu0 0
      %1721 = vmatmul.mubr.bf16.gmra.mrb[0].mxu0 %v1538
      %v1722 = vpop.f32.mrb[0].mxu0
      %v1723 = vadd.f32 0.0, %v1722
      %v1724 = vpop.f32.mrb[0].mxu0
      %v1725 = vpop.f32.mrb[0].mxu0
      %v1726 = vadd.f32 0.0, %v1725
      %v1727 = vpop.f32.mrb[0].mxu0
      %1728 = vmatprep.mubr.bf16.mxu0 0
      %1729 = vmatmul.mubr.bf16.gmra.mrb[0].mxu0 %v1539
      %v1730 = vpop.f32.mrb[0].mxu0
      %v1731 = vadd.f32 0.0, %v1730
      %v1732 = vpop.f32.mrb[0].mxu0
      %v1733 = vpop.f32.mrb[0].mxu0
      %v1734 = vadd.f32 0.0, %v1733
      %v1735 = vpop.f32.mrb[0].mxu0
      %1736 = vmatprep.mubr.bf16.mxu0 0
      %1737 = vmatmul.mubr.bf16.gmra.mrb[0].mxu0 %v1540
      %v1738 = vpop.f32.mrb[0].mxu0
      %v1739 = vadd.f32 0.0, %v1738
      %v1740 = vpop.f32.mrb[0].mxu0
      %v1741 = vpop.f32.mrb[0].mxu0
      %v1742 = vadd.f32 0.0, %v1741
      %v1743 = vpop.f32.mrb[0].mxu0
      %1744 = vmatprep.mubr.bf16.mxu0 0
      %1745 = vmatmul.mubr.bf16.gmra.mrb[0].mxu0 %v1541
      %v1746 = vpop.f32.mrb[0].mxu0
      %v1747 = vadd.f32 0.0, %v1746
      %v1748 = vpop.f32.mrb[0].mxu0
      %v1749 = vpop.f32.mrb[0].mxu0
      %v1750 = vadd.f32 0.0, %v1749
      %v1751 = vpop.f32.mrb[0].mxu0
      %1752 = vmatprep.mubr.bf16.mxu0 0
      %1753 = vmatmul.mubr.bf16.gmra.mrb[0].mxu0 %v1542
      %v1754 = vpop.f32.mrb[0].mxu0
      %v1755 = vadd.f32 0.0, %v1754
      %v1756 = vpop.f32.mrb[0].mxu0
      %v1757 = vpop.f32.mrb[0].mxu0
      %v1758 = vadd.f32 0.0, %v1757
      %v1759 = vpop.f32.mrb[0].mxu0
      %1760 = vmatprep.mubr.bf16.mxu0 0
      %1761 = vmatmul.mubr.bf16.gmra.mrb[0].mxu0 %v1543
      %v1762 = vpop.f32.mrb[0].mxu0
      %v1763 = vadd.f32 0.0, %v1762
      %v1764 = vpop.f32.mrb[0].mxu0
      %v1765 = vpop.f32.mrb[0].mxu0
      %v1766 = vadd.f32 0.0, %v1765
      %v1767 = vpop.f32.mrb[0].mxu0
      %1768 = vdwg.mxu0
      %v1769 = vadd.f32 %v1190, %v1643
      %v1770 = vadd.f32 %v1193, %v1646
      %v1771 = vadd.f32 %v1198, %v1651
      %v1772 = vadd.f32 %v1201, %v1654
      %v1773 = vadd.f32 %v1206, %v1659
      %v1774 = vadd.f32 %v1209, %v1662
      %v1775 = vadd.f32 %v1214, %v1667
      %v1776 = vadd.f32 %v1217, %v1670
      %v1777 = vadd.f32 %v1222, %v1675
      %v1778 = vadd.f32 %v1225, %v1678
      %v1779 = vadd.f32 %v1230, %v1683
      %v1780 = vadd.f32 %v1233, %v1686
      %v1781 = vadd.f32 %v1238, %v1691
      %v1782 = vadd.f32 %v1241, %v1694
      %v1783 = vadd.f32 %v1246, %v1699
      %v1784 = vadd.f32 %v1249, %v1702
      %v1785 = vadd.f32 %v1254, %v1707
      %v1786 = vadd.f32 %v1257, %v1710
      %v1787 = vadd.f32 %v1262, %v1715
      %v1788 = vadd.f32 %v1265, %v1718
      %v1789 = vadd.f32 %v1270, %v1723
      %v1790 = vadd.f32 %v1273, %v1726
      %v1791 = vadd.f32 %v1278, %v1731
      %v1792 = vadd.f32 %v1281, %v1734
      %v1793 = vadd.f32 %v1286, %v1739
      %v1794 = vadd.f32 %v1289, %v1742
      %v1795 = vadd.f32 %v1294, %v1747
      %v1796 = vadd.f32 %v1297, %v1750
      %v1797 = vadd.f32 %v1302, %v1755
      %v1798 = vadd.f32 %v1305, %v1758
      %v1799 = vadd.f32 %v1310, %v1763
      %v1800 = vadd.f32 %v1313, %v1766
      %s1801 = scalar_lea.vmem %s243, 12
      %v1802 = vld [vmem:[%s1801] sm:$0xf]
      %v1803 = vld [vmem:[%s1801 + $0x4] sm:$0xf]
      %v1804 = vld [vmem:[%s1801 + $0xc] sm:$0xf]
      %v1805 = vld [vmem:[%s1801 + $0x10] sm:$0xf]
      %v1806 = vld [vmem:[%s1801 + $0x18] sm:$0xf]
      %v1807 = vld [vmem:[%s1801 + $0x1c] sm:$0xf]
      %v1808 = vld [vmem:[%s1801 + $0x24] sm:$0xf]
      %v1809 = vld [vmem:[%s1801 + $0x28] sm:$0xf]
      %v1810 = vld [vmem:[%s1801 + $0x30] sm:$0xf]
      %v1811 = vld [vmem:[%s1801 + $0x34] sm:$0xf]
      %v1812 = vld [vmem:[%s1801 + $0x3c] sm:$0xf]
      %v1813 = vld [vmem:[%s1801 + $0x40] sm:$0xf]
      %v1814 = vld [vmem:[%s1801 + $0x48] sm:$0xf]
      %v1815 = vld [vmem:[%s1801 + $0x4c] sm:$0xf]
      %v1816 = vld [vmem:[%s1801 + $0x54] sm:$0xf]
      %v1817 = vld [vmem:[%s1801 + $0x58] sm:$0xf]
      %v1818 = vld [vmem:[%s1801 + $0x60] sm:$0xf]
      %v1819 = vld [vmem:[%s1801 + $0x64] sm:$0xf]
      %v1820 = vld [vmem:[%s1801 + $0x6c] sm:$0xf]
      %v1821 = vld [vmem:[%s1801 + $0x70] sm:$0xf]
      %v1822 = vld [vmem:[%s1801 + $0x78] sm:$0xf]
      %v1823 = vld [vmem:[%s1801 + $0x7c] sm:$0xf]
      %v1824 = vld [vmem:[%s1801 + $0x84] sm:$0xf]
      %v1825 = vld [vmem:[%s1801 + $0x88] sm:$0xf]
      %v1826 = vld [vmem:[%s1801 + $0x90] sm:$0xf]
      %v1827 = vld [vmem:[%s1801 + $0x94] sm:$0xf]
      %v1828 = vld [vmem:[%s1801 + $0x9c] sm:$0xf]
      %v1829 = vld [vmem:[%s1801 + $0xa0] sm:$0xf]
      %v1830 = vld [vmem:[%s1801 + $0xa8] sm:$0xf]
      %v1831 = vld [vmem:[%s1801 + $0xac] sm:$0xf]
      %v1832 = vld [vmem:[%s1801 + $0xb4] sm:$0xf]
      %v1833 = vld [vmem:[%s1801 + $0xb8] sm:$0xf]
      %s1834 = scalar_lea.vmem %s247, 192
      %v1835 = vld [vmem:[%s1834] sm:$0xf]
      %v1836 = vld [vmem:[%s1834 + $0x4] sm:$0xf]
      %v1837 = vld [vmem:[%s1834 + $0x8] sm:$0xf]
      %v1838 = vld [vmem:[%s1834 + $0xc] sm:$0xf]
      %v1839 = vld [vmem:[%s1834 + $0x10] sm:$0xf]
      %v1840 = vld [vmem:[%s1834 + $0x14] sm:$0xf]
      %v1841 = vld [vmem:[%s1834 + $0x18] sm:$0xf]
      %v1842 = vld [vmem:[%s1834 + $0x1c] sm:$0xf]
      %v1843 = vld [vmem:[%s1834 + $0x20] sm:$0xf]
      %v1844 = vld [vmem:[%s1834 + $0x24] sm:$0xf]
      %v1845 = vld [vmem:[%s1834 + $0x28] sm:$0xf]
      %v1846 = vld [vmem:[%s1834 + $0x2c] sm:$0xf]
      %v1847 = vld [vmem:[%s1834 + $0x30] sm:$0xf]
      %v1848 = vld [vmem:[%s1834 + $0x34] sm:$0xf]
      %v1849 = vld [vmem:[%s1834 + $0x38] sm:$0xf]
      %v1850 = vld [vmem:[%s1834 + $0x3c] sm:$0xf]
      %v1883 = vunpack.c.l.b16 %v1802
      %v1884 = vunpack.c.l.b16 %v1803
      %v1885 = vunpack.c.l.b16 %v1804
      %v1886 = vunpack.c.l.b16 %v1805
      %v1887 = vunpack.c.l.b16 %v1806
      %v1888 = vunpack.c.l.b16 %v1807
      %v1889 = vunpack.c.l.b16 %v1808
      %v1890 = vunpack.c.l.b16 %v1809
      %v1891 = vunpack.c.l.b16 %v1810
      %v1892 = vunpack.c.l.b16 %v1811
      %v1893 = vunpack.c.l.b16 %v1812
      %v1894 = vunpack.c.l.b16 %v1813
      %v1895 = vunpack.c.l.b16 %v1814
      %v1896 = vunpack.c.l.b16 %v1815
      %v1897 = vunpack.c.l.b16 %v1816
      %v1898 = vunpack.c.l.b16 %v1817
      %v1899 = vunpack.c.l.b16 %v1818
      %v1900 = vunpack.c.l.b16 %v1819
      %v1901 = vunpack.c.l.b16 %v1820
      %v1902 = vunpack.c.l.b16 %v1821
      %v1903 = vunpack.c.l.b16 %v1822
      %v1904 = vunpack.c.l.b16 %v1823
      %v1905 = vunpack.c.l.b16 %v1824
      %v1906 = vunpack.c.l.b16 %v1825
      %v1907 = vunpack.c.l.b16 %v1826
      %v1908 = vunpack.c.l.b16 %v1827
      %v1909 = vunpack.c.l.b16 %v1828
      %v1910 = vunpack.c.l.b16 %v1829
      %v1911 = vunpack.c.l.b16 %v1830
      %v1912 = vunpack.c.l.b16 %v1831
      %v1913 = vunpack.c.l.b16 %v1832
      %v1914 = vunpack.c.l.b16 %v1833
      %v1915 = vpack.c.b16 %v1884, %v1883
      %v1916 = vpack.c.b16 %v1886, %v1885
      %v1917 = vpack.c.b16 %v1888, %v1887
      %v1918 = vpack.c.b16 %v1890, %v1889
      %v1919 = vpack.c.b16 %v1892, %v1891
      %v1920 = vpack.c.b16 %v1894, %v1893
      %v1921 = vpack.c.b16 %v1896, %v1895
      %v1922 = vpack.c.b16 %v1898, %v1897
      %v1923 = vpack.c.b16 %v1900, %v1899
      %v1924 = vpack.c.b16 %v1902, %v1901
      %v1925 = vpack.c.b16 %v1904, %v1903
      %v1926 = vpack.c.b16 %v1906, %v1905
      %v1927 = vpack.c.b16 %v1908, %v1907
      %v1928 = vpack.c.b16 %v1910, %v1909
      %v1929 = vpack.c.b16 %v1912, %v1911
      %v1930 = vpack.c.b16 %v1914, %v1913
      %v1963 = vunpack.c.l.b16 %v1835
      %v1964 = vunpack.c.l.b16 %v1836
      %v1965 = vunpack.c.l.b16 %v1837
      %v1966 = vunpack.c.l.b16 %v1838
      %v1967 = vunpack.c.l.b16 %v1839
      %v1968 = vunpack.c.l.b16 %v1840
      %v1969 = vunpack.c.l.b16 %v1841
      %v1970 = vunpack.c.l.b16 %v1842
      %v1971 = vunpack.c.l.b16 %v1843
      %v1972 = vunpack.c.l.b16 %v1844
      %v1973 = vunpack.c.l.b16 %v1845
      %v1974 = vunpack.c.l.b16 %v1846
      %v1975 = vunpack.c.l.b16 %v1847
      %v1976 = vunpack.c.l.b16 %v1848
      %v1977 = vunpack.c.l.b16 %v1849
      %v1978 = vunpack.c.l.b16 %v1850
      %v1979 = vpack.c.b16 %v1964, %v1963
      %v1980 = vpack.c.b16 %v1966, %v1965
      %v1981 = vpack.c.b16 %v1968, %v1967
      %v1982 = vpack.c.b16 %v1970, %v1969
      %v1983 = vpack.c.b16 %v1972, %v1971
      %v1984 = vpack.c.b16 %v1974, %v1973
      %v1985 = vpack.c.b16 %v1976, %v1975
      %v1986 = vpack.c.b16 %v1978, %v1977
      %1995 = vmatprep.subr.bf16.mxu0 0
      %1996 = vmatpush1.bf16.msra.mxu0 %v1979
      %1997 = vmatprep.subr.bf16.mxu0 0
      %1998 = vmatpush1.bf16.msra.mxu0 %v1980
      %1999 = vmatprep.subr.bf16.mxu0 0
      %2000 = vmatpush1.bf16.msra.mxu0 %v1981
      %2001 = vmatprep.subr.bf16.mxu0 0
      %2002 = vmatpush1.bf16.msra.mxu0 %v1982
      %2003 = vmatprep.subr.bf16.mxu0 0
      %2004 = vmatpush1.bf16.msra.mxu0 %v1983
      %2005 = vmatprep.subr.bf16.mxu0 0
      %2006 = vmatpush1.bf16.msra.mxu0 %v1984
      %2007 = vmatprep.subr.bf16.mxu0 0
      %2008 = vmatpush1.bf16.msra.mxu0 %v1985
      %2009 = vmatprep.subr.bf16.mxu0 0
      %2010 = vmatpush1.bf16.msra.mxu0 %v1986
      %2011 = vmatprep.subr.bf16.mxu0 0
      %2012 = vmatpush1.bf16.msra.mxu0 0
      %2013 = vmatprep.subr.bf16.mxu0 0
      %2014 = vmatpush1.bf16.msra.mxu0 0
      %2015 = vmatprep.subr.bf16.mxu0 0
      %2016 = vmatpush1.bf16.msra.mxu0 0
      %2017 = vmatprep.subr.bf16.mxu0 0
      %2018 = vmatpush1.bf16.msra.mxu0 0
      %2019 = vmatprep.subr.bf16.mxu0 0
      %2020 = vmatpush1.bf16.msra.mxu0 0
      %2021 = vmatprep.subr.bf16.mxu0 0
      %2022 = vmatpush1.bf16.msra.mxu0 0
      %2023 = vmatprep.subr.bf16.mxu0 0
      %2024 = vmatpush1.bf16.msra.mxu0 0
      %2025 = vmatprep.subr.bf16.mxu0 0
      %2026 = vmatpush1.bf16.msra.mxu0 0
      %2027 = vmatprep.mubr.bf16.mxu0 0
      %2028 = vmatmul.mubr.bf16.gmra.mrb[0].mxu0 %v1915
      %v2029 = vpop.f32.mrb[0].mxu0
      %v2030 = vadd.f32 0.0, %v2029
      %v2031 = vpop.f32.mrb[0].mxu0
      %v2032 = vpop.f32.mrb[0].mxu0
      %v2033 = vadd.f32 0.0, %v2032
      %v2034 = vpop.f32.mrb[0].mxu0
      %2035 = vmatprep.mubr.bf16.mxu0 0
      %2036 = vmatmul.mubr.bf16.gmra.mrb[0].mxu0 %v1916
      %v2037 = vpop.f32.mrb[0].mxu0
      %v2038 = vadd.f32 0.0, %v2037
      %v2039 = vpop.f32.mrb[0].mxu0
      %v2040 = vpop.f32.mrb[0].mxu0
      %v2041 = vadd.f32 0.0, %v2040
      %v2042 = vpop.f32.mrb[0].mxu0
      %2043 = vmatprep.mubr.bf16.mxu0 0
      %2044 = vmatmul.mubr.bf16.gmra.mrb[0].mxu0 %v1917
      %v2045 = vpop.f32.mrb[0].mxu0
      %v2046 = vadd.f32 0.0, %v2045
      %v2047 = vpop.f32.mrb[0].mxu0
      %v2048 = vpop.f32.mrb[0].mxu0
      %v2049 = vadd.f32 0.0, %v2048
      %v2050 = vpop.f32.mrb[0].mxu0
      %2051 = vmatprep.mubr.bf16.mxu0 0
      %2052 = vmatmul.mubr.bf16.gmra.mrb[0].mxu0 %v1918
      %v2053 = vpop.f32.mrb[0].mxu0
      %v2054 = vadd.f32 0.0, %v2053
      %v2055 = vpop.f32.mrb[0].mxu0
      %v2056 = vpop.f32.mrb[0].mxu0
      %v2057 = vadd.f32 0.0, %v2056
      %v2058 = vpop.f32.mrb[0].mxu0
      %2059 = vmatprep.mubr.bf16.mxu0 0
      %2060 = vmatmul.mubr.bf16.gmra.mrb[0].mxu0 %v1919
      %v2061 = vpop.f32.mrb[0].mxu0
      %v2062 = vadd.f32 0.0, %v2061
      %v2063 = vpop.f32.mrb[0].mxu0
      %v2064 = vpop.f32.mrb[0].mxu0
      %v2065 = vadd.f32 0.0, %v2064
      %v2066 = vpop.f32.mrb[0].mxu0
      %2067 = vmatprep.mubr.bf16.mxu0 0
      %2068 = vmatmul.mubr.bf16.gmra.mrb[0].mxu0 %v1920
      %v2069 = vpop.f32.mrb[0].mxu0
      %v2070 = vadd.f32 0.0, %v2069
      %v2071 = vpop.f32.mrb[0].mxu0
      %v2072 = vpop.f32.mrb[0].mxu0
      %v2073 = vadd.f32 0.0, %v2072
      %v2074 = vpop.f32.mrb[0].mxu0
      %2075 = vmatprep.mubr.bf16.mxu0 0
      %2076 = vmatmul.mubr.bf16.gmra.mrb[0].mxu0 %v1921
      %v2077 = vpop.f32.mrb[0].mxu0
      %v2078 = vadd.f32 0.0, %v2077
      %v2079 = vpop.f32.mrb[0].mxu0
      %v2080 = vpop.f32.mrb[0].mxu0
      %v2081 = vadd.f32 0.0, %v2080
      %v2082 = vpop.f32.mrb[0].mxu0
      %2083 = vmatprep.mubr.bf16.mxu0 0
      %2084 = vmatmul.mubr.bf16.gmra.mrb[0].mxu0 %v1922
      %v2085 = vpop.f32.mrb[0].mxu0
      %v2086 = vadd.f32 0.0, %v2085
      %v2087 = vpop.f32.mrb[0].mxu0
      %v2088 = vpop.f32.mrb[0].mxu0
      %v2089 = vadd.f32 0.0, %v2088
      %v2090 = vpop.f32.mrb[0].mxu0
      %2091 = vmatprep.mubr.bf16.mxu0 0
      %2092 = vmatmul.mubr.bf16.gmra.mrb[0].mxu0 %v1923
      %v2093 = vpop.f32.mrb[0].mxu0
      %v2094 = vadd.f32 0.0, %v2093
      %v2095 = vpop.f32.mrb[0].mxu0
      %v2096 = vpop.f32.mrb[0].mxu0
      %v2097 = vadd.f32 0.0, %v2096
      %v2098 = vpop.f32.mrb[0].mxu0
      %2099 = vmatprep.mubr.bf16.mxu0 0
      %2100 = vmatmul.mubr.bf16.gmra.mrb[0].mxu0 %v1924
      %v2101 = vpop.f32.mrb[0].mxu0
      %v2102 = vadd.f32 0.0, %v2101
      %v2103 = vpop.f32.mrb[0].mxu0
      %v2104 = vpop.f32.mrb[0].mxu0
      %v2105 = vadd.f32 0.0, %v2104
      %v2106 = vpop.f32.mrb[0].mxu0
      %2107 = vmatprep.mubr.bf16.mxu0 0
      %2108 = vmatmul.mubr.bf16.gmra.mrb[0].mxu0 %v1925
      %v2109 = vpop.f32.mrb[0].mxu0
      %v2110 = vadd.f32 0.0, %v2109
      %v2111 = vpop.f32.mrb[0].mxu0
      %v2112 = vpop.f32.mrb[0].mxu0
      %v2113 = vadd.f32 0.0, %v2112
      %v2114 = vpop.f32.mrb[0].mxu0
      %2115 = vmatprep.mubr.bf16.mxu0 0
      %2116 = vmatmul.mubr.bf16.gmra.mrb[0].mxu0 %v1926
      %v2117 = vpop.f32.mrb[0].mxu0
      %v2118 = vadd.f32 0.0, %v2117
      %v2119 = vpop.f32.mrb[0].mxu0
      %v2120 = vpop.f32.mrb[0].mxu0
      %v2121 = vadd.f32 0.0, %v2120
      %v2122 = vpop.f32.mrb[0].mxu0
      %2123 = vmatprep.mubr.bf16.mxu0 0
      %2124 = vmatmul.mubr.bf16.gmra.mrb[0].mxu0 %v1927
      %v2125 = vpop.f32.mrb[0].mxu0
      %v2126 = vadd.f32 0.0, %v2125
      %v2127 = vpop.f32.mrb[0].mxu0
      %v2128 = vpop.f32.mrb[0].mxu0
      %v2129 = vadd.f32 0.0, %v2128
      %v2130 = vpop.f32.mrb[0].mxu0
      %2131 = vmatprep.mubr.bf16.mxu0 0
      %2132 = vmatmul.mubr.bf16.gmra.mrb[0].mxu0 %v1928
      %v2133 = vpop.f32.mrb[0].mxu0
      %v2134 = vadd.f32 0.0, %v2133
      %v2135 = vpop.f32.mrb[0].mxu0
      %v2136 = vpop.f32.mrb[0].mxu0
      %v2137 = vadd.f32 0.0, %v2136
      %v2138 = vpop.f32.mrb[0].mxu0
      %2139 = vmatprep.mubr.bf16.mxu0 0
      %2140 = vmatmul.mubr.bf16.gmra.mrb[0].mxu0 %v1929
      %v2141 = vpop.f32.mrb[0].mxu0
      %v2142 = vadd.f32 0.0, %v2141
      %v2143 = vpop.f32.mrb[0].mxu0
      %v2144 = vpop.f32.mrb[0].mxu0
      %v2145 = vadd.f32 0.0, %v2144
      %v2146 = vpop.f32.mrb[0].mxu0
      %2147 = vmatprep.mubr.bf16.mxu0 0
      %2148 = vmatmul.mubr.bf16.gmra.mrb[0].mxu0 %v1930
      %v2149 = vpop.f32.mrb[0].mxu0
      %v2150 = vadd.f32 0.0, %v2149
      %v2151 = vpop.f32.mrb[0].mxu0
      %v2152 = vpop.f32.mrb[0].mxu0
      %v2153 = vadd.f32 0.0, %v2152
      %v2154 = vpop.f32.mrb[0].mxu0
      %2155 = vdwg.mxu0
      %v2156 = vadd.f32 %v1769, %v2030
      %v2157 = vadd.f32 %v1770, %v2033
      %v2158 = vadd.f32 %v1771, %v2038
      %v2159 = vadd.f32 %v1772, %v2041
      %v2160 = vadd.f32 %v1773, %v2046
      %v2161 = vadd.f32 %v1774, %v2049
      %v2162 = vadd.f32 %v1775, %v2054
      %v2163 = vadd.f32 %v1776, %v2057
      %v2164 = vadd.f32 %v1777, %v2062
      %v2165 = vadd.f32 %v1778, %v2065
      %v2166 = vadd.f32 %v1779, %v2070
      %v2167 = vadd.f32 %v1780, %v2073
      %v2168 = vadd.f32 %v1781, %v2078
      %v2169 = vadd.f32 %v1782, %v2081
      %v2170 = vadd.f32 %v1783, %v2086
      %v2171 = vadd.f32 %v1784, %v2089
      %v2172 = vadd.f32 %v1785, %v2094
      %v2173 = vadd.f32 %v1786, %v2097
      %v2174 = vadd.f32 %v1787, %v2102
      %v2175 = vadd.f32 %v1788, %v2105
      %v2176 = vadd.f32 %v1789, %v2110
      %v2177 = vadd.f32 %v1790, %v2113
      %v2178 = vadd.f32 %v1791, %v2118
      %v2179 = vadd.f32 %v1792, %v2121
      %v2180 = vadd.f32 %v1793, %v2126
      %v2181 = vadd.f32 %v1794, %v2129
      %v2182 = vadd.f32 %v1795, %v2134
      %v2183 = vadd.f32 %v1796, %v2137
      %v2184 = vadd.f32 %v1797, %v2142
      %v2185 = vadd.f32 %v1798, %v2145
      %v2186 = vadd.f32 %v1799, %v2150
      %v2187 = vadd.f32 %v1800, %v2153
      %v2188 = vld [vmem:[%s1801] sm:$0xf]
      %v2189 = vld [vmem:[%s1801 + $0x4] sm:$0xf]
      %v2190 = vld [vmem:[%s1801 + $0x8] sm:$0x1]
      %v2191 = vld [vmem:[%s1801 + $0xc] sm:$0xf]
      %v2192 = vld [vmem:[%s1801 + $0x10] sm:$0xf]
      %v2193 = vld [vmem:[%s1801 + $0x14] sm:$0x1]
      %v2194 = vld [vmem:[%s1801 + $0x18] sm:$0xf]
      %v2195 = vld [vmem:[%s1801 + $0x1c] sm:$0xf]
      %v2196 = vld [vmem:[%s1801 + $0x20] sm:$0x1]
      %v2197 = vld [vmem:[%s1801 + $0x24] sm:$0xf]
      %v2198 = vld [vmem:[%s1801 + $0x28] sm:$0xf]
      %v2199 = vld [vmem:[%s1801 + $0x2c] sm:$0x1]
      %v2200 = vld [vmem:[%s1801 + $0x30] sm:$0xf]
      %v2201 = vld [vmem:[%s1801 + $0x34] sm:$0xf]
      %v2202 = vld [vmem:[%s1801 + $0x38] sm:$0x1]
      %v2203 = vld [vmem:[%s1801 + $0x3c] sm:$0xf]
      %v2204 = vld [vmem:[%s1801 + $0x40] sm:$0xf]
      %v2205 = vld [vmem:[%s1801 + $0x44] sm:$0x1]
      %v2206 = vld [vmem:[%s1801 + $0x48] sm:$0xf]
      %v2207 = vld [vmem:[%s1801 + $0x4c] sm:$0xf]
      %v2208 = vld [vmem:[%s1801 + $0x50] sm:$0x1]
      %v2209 = vld [vmem:[%s1801 + $0x54] sm:$0xf]
      %v2210 = vld [vmem:[%s1801 + $0x58] sm:$0xf]
      %v2211 = vld [vmem:[%s1801 + $0x5c] sm:$0x1]
      %v2212 = vld [vmem:[%s1801 + $0x60] sm:$0xf]
      %v2213 = vld [vmem:[%s1801 + $0x64] sm:$0xf]
      %v2214 = vld [vmem:[%s1801 + $0x68] sm:$0x1]
      %v2215 = vld [vmem:[%s1801 + $0x6c] sm:$0xf]
      %v2216 = vld [vmem:[%s1801 + $0x70] sm:$0xf]
      %v2217 = vld [vmem:[%s1801 + $0x74] sm:$0x1]
      %v2218 = vld [vmem:[%s1801 + $0x78] sm:$0xf]
      %v2219 = vld [vmem:[%s1801 + $0x7c] sm:$0xf]
      %v2220 = vld [vmem:[%s1801 + $0x80] sm:$0x1]
      %v2221 = vld [vmem:[%s1801 + $0x84] sm:$0xf]
      %v2222 = vld [vmem:[%s1801 + $0x88] sm:$0xf]
      %v2223 = vld [vmem:[%s1801 + $0x8c] sm:$0x1]
      %v2224 = vld [vmem:[%s1801 + $0x90] sm:$0xf]
      %v2225 = vld [vmem:[%s1801 + $0x94] sm:$0xf]
      %v2226 = vld [vmem:[%s1801 + $0x98] sm:$0x1]
      %v2227 = vld [vmem:[%s1801 + $0x9c] sm:$0xf]
      %v2228 = vld [vmem:[%s1801 + $0xa0] sm:$0xf]
      %v2229 = vld [vmem:[%s1801 + $0xa4] sm:$0x1]
      %v2230 = vld [vmem:[%s1801 + $0xa8] sm:$0xf]
      %v2231 = vld [vmem:[%s1801 + $0xac] sm:$0xf]
      %v2232 = vld [vmem:[%s1801 + $0xb0] sm:$0x1]
      %v2233 = vld [vmem:[%s1801 + $0xb4] sm:$0xf]
      %v2234 = vld [vmem:[%s1801 + $0xb8] sm:$0xf]
      %v2235 = vld [vmem:[%s1801 + $0xbc] sm:$0x1]
      %v2237 = vshrl.u32 %v2188, 16
      %v2239 = vrot.slane %v2237, 4
      %v2240 = vshll.u32 %v2188, 16
      %v2242 = vrot.slane %v2240, 5
      %v2243 = vor.u32 %v2239, %v2242
      %v2244 = vrot.slane %v2243, 4
      %v2246 = vshll.u32 %v2189, 16
      %v2248 = vrot.slane %v2246, 5
      %v2249 = vsel %vm336, %v2244, %v2248
      %v2250 = vshrl.u32 %v2189, 16
      %v2252 = vrot.slane %v2250, 4
      %v2253 = vor.u32 %v2252, %v2248
      %v2254 = vrot.slane %v2253, 4
      %v2256 = vshll.u32 %v2190, 16
      %v2258 = vrot.slane %v2256, 5
      %v2259 = vsel %vm336, %v2254, %v2258
      %v2261 = vshrl.u32 %v2191, 16
      %v2263 = vrot.slane %v2261, 4
      %v2264 = vshll.u32 %v2191, 16
      %v2266 = vrot.slane %v2264, 5
      %v2267 = vor.u32 %v2263, %v2266
      %v2268 = vrot.slane %v2267, 4
      %v2270 = vshll.u32 %v2192, 16
      %v2272 = vrot.slane %v2270, 5
      %v2273 = vsel %vm336, %v2268, %v2272
      %v2274 = vshrl.u32 %v2192, 16
      %v2276 = vrot.slane %v2274, 4
      %v2277 = vor.u32 %v2276, %v2272
      %v2278 = vrot.slane %v2277, 4
      %v2280 = vshll.u32 %v2193, 16
      %v2282 = vrot.slane %v2280, 5
      %v2283 = vsel %vm336, %v2278, %v2282
      %v2285 = vshrl.u32 %v2194, 16
      %v2287 = vrot.slane %v2285, 4
      %v2288 = vshll.u32 %v2194, 16
      %v2290 = vrot.slane %v2288, 5
      %v2291 = vor.u32 %v2287, %v2290
      %v2292 = vrot.slane %v2291, 4
      %v2294 = vshll.u32 %v2195, 16
      %v2296 = vrot.slane %v2294, 5
      %v2297 = vsel %vm336, %v2292, %v2296
      %v2298 = vshrl.u32 %v2195, 16
      %v2300 = vrot.slane %v2298, 4
      %v2301 = vor.u32 %v2300, %v2296
      %v2302 = vrot.slane %v2301, 4
      %v2304 = vshll.u32 %v2196, 16
      %v2306 = vrot.slane %v2304, 5
      %v2307 = vsel %vm336, %v2302, %v2306
      %v2309 = vshrl.u32 %v2197, 16
      %v2311 = vrot.slane %v2309, 4
      %v2312 = vshll.u32 %v2197, 16
      %v2314 = vrot.slane %v2312, 5
      %v2315 = vor.u32 %v2311, %v2314
      %v2316 = vrot.slane %v2315, 4
      %v2318 = vshll.u32 %v2198, 16
      %v2320 = vrot.slane %v2318, 5
      %v2321 = vsel %vm336, %v2316, %v2320
      %v2322 = vshrl.u32 %v2198, 16
      %v2324 = vrot.slane %v2322, 4
      %v2325 = vor.u32 %v2324, %v2320
      %v2326 = vrot.slane %v2325, 4
      %v2328 = vshll.u32 %v2199, 16
      %v2330 = vrot.slane %v2328, 5
      %v2331 = vsel %vm336, %v2326, %v2330
      %v2333 = vshrl.u32 %v2200, 16
      %v2335 = vrot.slane %v2333, 4
      %v2336 = vshll.u32 %v2200, 16
      %v2338 = vrot.slane %v2336, 5
      %v2339 = vor.u32 %v2335, %v2338
      %v2340 = vrot.slane %v2339, 4
      %v2342 = vshll.u32 %v2201, 16
      %v2344 = vrot.slane %v2342, 5
      %v2345 = vsel %vm336, %v2340, %v2344
      %v2346 = vshrl.u32 %v2201, 16
      %v2348 = vrot.slane %v2346, 4
      %v2349 = vor.u32 %v2348, %v2344
      %v2350 = vrot.slane %v2349, 4
      %v2352 = vshll.u32 %v2202, 16
      %v2354 = vrot.slane %v2352, 5
      %v2355 = vsel %vm336, %v2350, %v2354
      %v2357 = vshrl.u32 %v2203, 16
      %v2359 = vrot.slane %v2357, 4
      %v2360 = vshll.u32 %v2203, 16
      %v2362 = vrot.slane %v2360, 5
      %v2363 = vor.u32 %v2359, %v2362
      %v2364 = vrot.slane %v2363, 4
      %v2366 = vshll.u32 %v2204, 16
      %v2368 = vrot.slane %v2366, 5
      %v2369 = vsel %vm336, %v2364, %v2368
      %v2370 = vshrl.u32 %v2204, 16
      %v2372 = vrot.slane %v2370, 4
      %v2373 = vor.u32 %v2372, %v2368
      %v2374 = vrot.slane %v2373, 4
      %v2376 = vshll.u32 %v2205, 16
      %v2378 = vrot.slane %v2376, 5
      %v2379 = vsel %vm336, %v2374, %v2378
      %v2381 = vshrl.u32 %v2206, 16
      %v2383 = vrot.slane %v2381, 4
      %v2384 = vshll.u32 %v2206, 16
      %v2386 = vrot.slane %v2384, 5
      %v2387 = vor.u32 %v2383, %v2386
      %v2388 = vrot.slane %v2387, 4
      %v2390 = vshll.u32 %v2207, 16
      %v2392 = vrot.slane %v2390, 5
      %v2393 = vsel %vm336, %v2388, %v2392
      %v2394 = vshrl.u32 %v2207, 16
      %v2396 = vrot.slane %v2394, 4
      %v2397 = vor.u32 %v2396, %v2392
      %v2398 = vrot.slane %v2397, 4
      %v2400 = vshll.u32 %v2208, 16
      %v2402 = vrot.slane %v2400, 5
      %v2403 = vsel %vm336, %v2398, %v2402
      %v2405 = vshrl.u32 %v2209, 16
      %v2407 = vrot.slane %v2405, 4
      %v2408 = vshll.u32 %v2209, 16
      %v2410 = vrot.slane %v2408, 5
      %v2411 = vor.u32 %v2407, %v2410
      %v2412 = vrot.slane %v2411, 4
      %v2414 = vshll.u32 %v2210, 16
      %v2416 = vrot.slane %v2414, 5
      %v2417 = vsel %vm336, %v2412, %v2416
      %v2418 = vshrl.u32 %v2210, 16
      %v2420 = vrot.slane %v2418, 4
      %v2421 = vor.u32 %v2420, %v2416
      %v2422 = vrot.slane %v2421, 4
      %v2424 = vshll.u32 %v2211, 16
      %v2426 = vrot.slane %v2424, 5
      %v2427 = vsel %vm336, %v2422, %v2426
      %v2429 = vshrl.u32 %v2212, 16
      %v2431 = vrot.slane %v2429, 4
      %v2432 = vshll.u32 %v2212, 16
      %v2434 = vrot.slane %v2432, 5
      %v2435 = vor.u32 %v2431, %v2434
      %v2436 = vrot.slane %v2435, 4
      %v2438 = vshll.u32 %v2213, 16
      %v2440 = vrot.slane %v2438, 5
      %v2441 = vsel %vm336, %v2436, %v2440
      %v2442 = vshrl.u32 %v2213, 16
      %v2444 = vrot.slane %v2442, 4
      %v2445 = vor.u32 %v2444, %v2440
      %v2446 = vrot.slane %v2445, 4
      %v2448 = vshll.u32 %v2214, 16
      %v2450 = vrot.slane %v2448, 5
      %v2451 = vsel %vm336, %v2446, %v2450
      %v2453 = vshrl.u32 %v2215, 16
      %v2455 = vrot.slane %v2453, 4
      %v2456 = vshll.u32 %v2215, 16
      %v2458 = vrot.slane %v2456, 5
      %v2459 = vor.u32 %v2455, %v2458
      %v2460 = vrot.slane %v2459, 4
      %v2462 = vshll.u32 %v2216, 16
      %v2464 = vrot.slane %v2462, 5
      %v2465 = vsel %vm336, %v2460, %v2464
      %v2466 = vshrl.u32 %v2216, 16
      %v2468 = vrot.slane %v2466, 4
      %v2469 = vor.u32 %v2468, %v2464
      %v2470 = vrot.slane %v2469, 4
      %v2472 = vshll.u32 %v2217, 16
      %v2474 = vrot.slane %v2472, 5
      %v2475 = vsel %vm336, %v2470, %v2474
      %v2477 = vshrl.u32 %v2218, 16
      %v2479 = vrot.slane %v2477, 4
      %v2480 = vshll.u32 %v2218, 16
      %v2482 = vrot.slane %v2480, 5
      %v2483 = vor.u32 %v2479, %v2482
      %v2484 = vrot.slane %v2483, 4
      %v2486 = vshll.u32 %v2219, 16
      %v2488 = vrot.slane %v2486, 5
      %v2489 = vsel %vm336, %v2484, %v2488
      %v2490 = vshrl.u32 %v2219, 16
      %v2492 = vrot.slane %v2490, 4
      %v2493 = vor.u32 %v2492, %v2488
      %v2494 = vrot.slane %v2493, 4
      %v2496 = vshll.u32 %v2220, 16
      %v2498 = vrot.slane %v2496, 5
      %v2499 = vsel %vm336, %v2494, %v2498
      %v2501 = vshrl.u32 %v2221, 16
      %v2503 = vrot.slane %v2501, 4
      %v2504 = vshll.u32 %v2221, 16
      %v2506 = vrot.slane %v2504, 5
      %v2507 = vor.u32 %v2503, %v2506
      %v2508 = vrot.slane %v2507, 4
      %v2510 = vshll.u32 %v2222, 16
      %v2512 = vrot.slane %v2510, 5
      %v2513 = vsel %vm336, %v2508, %v2512
      %v2514 = vshrl.u32 %v2222, 16
      %v2516 = vrot.slane %v2514, 4
      %v2517 = vor.u32 %v2516, %v2512
      %v2518 = vrot.slane %v2517, 4
      %v2520 = vshll.u32 %v2223, 16
      %v2522 = vrot.slane %v2520, 5
      %v2523 = vsel %vm336, %v2518, %v2522
      %v2525 = vshrl.u32 %v2224, 16
      %v2527 = vrot.slane %v2525, 4
      %v2528 = vshll.u32 %v2224, 16
      %v2530 = vrot.slane %v2528, 5
      %v2531 = vor.u32 %v2527, %v2530
      %v2532 = vrot.slane %v2531, 4
      %v2534 = vshll.u32 %v2225, 16
      %v2536 = vrot.slane %v2534, 5
      %v2537 = vsel %vm336, %v2532, %v2536
      %v2538 = vshrl.u32 %v2225, 16
      %v2540 = vrot.slane %v2538, 4
      %v2541 = vor.u32 %v2540, %v2536
      %v2542 = vrot.slane %v2541, 4
      %v2544 = vshll.u32 %v2226, 16
      %v2546 = vrot.slane %v2544, 5
      %v2547 = vsel %vm336, %v2542, %v2546
      %v2549 = vshrl.u32 %v2227, 16
      %v2551 = vrot.slane %v2549, 4
      %v2552 = vshll.u32 %v2227, 16
      %v2554 = vrot.slane %v2552, 5
      %v2555 = vor.u32 %v2551, %v2554
      %v2556 = vrot.slane %v2555, 4
      %v2558 = vshll.u32 %v2228, 16
      %v2560 = vrot.slane %v2558, 5
      %v2561 = vsel %vm336, %v2556, %v2560
      %v2562 = vshrl.u32 %v2228, 16
      %v2564 = vrot.slane %v2562, 4
      %v2565 = vor.u32 %v2564, %v2560
      %v2566 = vrot.slane %v2565, 4
      %v2568 = vshll.u32 %v2229, 16
      %v2570 = vrot.slane %v2568, 5
      %v2571 = vsel %vm336, %v2566, %v2570
      %v2573 = vshrl.u32 %v2230, 16
      %v2575 = vrot.slane %v2573, 4
      %v2576 = vshll.u32 %v2230, 16
      %v2578 = vrot.slane %v2576, 5
      %v2579 = vor.u32 %v2575, %v2578
      %v2580 = vrot.slane %v2579, 4
      %v2582 = vshll.u32 %v2231, 16
      %v2584 = vrot.slane %v2582, 5
      %v2585 = vsel %vm336, %v2580, %v2584
      %v2586 = vshrl.u32 %v2231, 16
      %v2588 = vrot.slane %v2586, 4
      %v2589 = vor.u32 %v2588, %v2584
      %v2590 = vrot.slane %v2589, 4
      %v2592 = vshll.u32 %v2232, 16
      %v2594 = vrot.slane %v2592, 5
      %v2595 = vsel %vm336, %v2590, %v2594
      %v2597 = vshrl.u32 %v2233, 16
      %v2599 = vrot.slane %v2597, 4
      %v2600 = vshll.u32 %v2233, 16
      %v2602 = vrot.slane %v2600, 5
      %v2603 = vor.u32 %v2599, %v2602
      %v2604 = vrot.slane %v2603, 4
      %v2606 = vshll.u32 %v2234, 16
      %v2608 = vrot.slane %v2606, 5
      %v2609 = vsel %vm336, %v2604, %v2608
      %v2610 = vshrl.u32 %v2234, 16
      %v2612 = vrot.slane %v2610, 4
      %v2613 = vor.u32 %v2612, %v2608
      %v2614 = vrot.slane %v2613, 4
      %v2616 = vshll.u32 %v2235, 16
      %v2618 = vrot.slane %v2616, 5
      %v2619 = vsel %vm336, %v2614, %v2618
      %s2620 = scalar_lea.vmem %s247, 256
      %v2621 = vld [vmem:[%s2620] sm:$0xf]
      %v2622 = vld [vmem:[%s2620 + $0x4] sm:$0xf]
      %v2623 = vld [vmem:[%s2620 + $0x8] sm:$0xf]
      %v2624 = vld [vmem:[%s2620 + $0xc] sm:$0xf]
      %v2625 = vld [vmem:[%s2620 + $0x10] sm:$0xf]
      %v2626 = vld [vmem:[%s2620 + $0x14] sm:$0xf]
      %v2627 = vld [vmem:[%s2620 + $0x18] sm:$0xf]
      %v2628 = vld [vmem:[%s2620 + $0x1c] sm:$0xf]
      %v2629 = vld [vmem:[%s2620 + $0x20] sm:$0xf]
      %v2630 = vld [vmem:[%s2620 + $0x24] sm:$0xf]
      %v2631 = vld [vmem:[%s2620 + $0x28] sm:$0xf]
      %v2632 = vld [vmem:[%s2620 + $0x2c] sm:$0xf]
      %v2633 = vld [vmem:[%s2620 + $0x30] sm:$0xf]
      %v2634 = vld [vmem:[%s2620 + $0x34] sm:$0xf]
      %v2635 = vld [vmem:[%s2620 + $0x38] sm:$0xf]
      %v2636 = vld [vmem:[%s2620 + $0x3c] sm:$0xf]
      %v2637 = vunpack.c.l.b16 %v2249
      %v2638 = vunpack.c.l.b16 %v2259
      %v2639 = vunpack.c.l.b16 %v2273
      %v2640 = vunpack.c.l.b16 %v2283
      %v2641 = vunpack.c.l.b16 %v2297
      %v2642 = vunpack.c.l.b16 %v2307
      %v2643 = vunpack.c.l.b16 %v2321
      %v2644 = vunpack.c.l.b16 %v2331
      %v2645 = vunpack.c.l.b16 %v2345
      %v2646 = vunpack.c.l.b16 %v2355
      %v2647 = vunpack.c.l.b16 %v2369
      %v2648 = vunpack.c.l.b16 %v2379
      %v2649 = vunpack.c.l.b16 %v2393
      %v2650 = vunpack.c.l.b16 %v2403
      %v2651 = vunpack.c.l.b16 %v2417
      %v2652 = vunpack.c.l.b16 %v2427
      %v2653 = vunpack.c.l.b16 %v2441
      %v2654 = vunpack.c.l.b16 %v2451
      %v2655 = vunpack.c.l.b16 %v2465
      %v2656 = vunpack.c.l.b16 %v2475
      %v2657 = vunpack.c.l.b16 %v2489
      %v2658 = vunpack.c.l.b16 %v2499
      %v2659 = vunpack.c.l.b16 %v2513
      %v2660 = vunpack.c.l.b16 %v2523
      %v2661 = vunpack.c.l.b16 %v2537
      %v2662 = vunpack.c.l.b16 %v2547
      %v2663 = vunpack.c.l.b16 %v2561
      %v2664 = vunpack.c.l.b16 %v2571
      %v2665 = vunpack.c.l.b16 %v2585
      %v2666 = vunpack.c.l.b16 %v2595
      %v2667 = vunpack.c.l.b16 %v2609
      %v2668 = vunpack.c.l.b16 %v2619
      %v2669 = vpack.c.b16 %v2638, %v2637
      %v2670 = vpack.c.b16 %v2640, %v2639
      %v2671 = vpack.c.b16 %v2642, %v2641
      %v2672 = vpack.c.b16 %v2644, %v2643
      %v2673 = vpack.c.b16 %v2646, %v2645
      %v2674 = vpack.c.b16 %v2648, %v2647
      %v2675 = vpack.c.b16 %v2650, %v2649
      %v2676 = vpack.c.b16 %v2652, %v2651
      %v2677 = vpack.c.b16 %v2654, %v2653
      %v2678 = vpack.c.b16 %v2656, %v2655
      %v2679 = vpack.c.b16 %v2658, %v2657
      %v2680 = vpack.c.b16 %v2660, %v2659
      %v2681 = vpack.c.b16 %v2662, %v2661
      %v2682 = vpack.c.b16 %v2664, %v2663
      %v2683 = vpack.c.b16 %v2666, %v2665
      %v2684 = vpack.c.b16 %v2668, %v2667
      %v2717 = vunpack.c.l.b16 %v2621
      %v2718 = vunpack.c.l.b16 %v2622
      %v2719 = vunpack.c.l.b16 %v2623
      %v2720 = vunpack.c.l.b16 %v2624
      %v2721 = vunpack.c.l.b16 %v2625
      %v2722 = vunpack.c.l.b16 %v2626
      %v2723 = vunpack.c.l.b16 %v2627
      %v2724 = vunpack.c.l.b16 %v2628
      %v2725 = vunpack.c.l.b16 %v2629
      %v2726 = vunpack.c.l.b16 %v2630
      %v2727 = vunpack.c.l.b16 %v2631
      %v2728 = vunpack.c.l.b16 %v2632
      %v2729 = vunpack.c.l.b16 %v2633
      %v2730 = vunpack.c.l.b16 %v2634
      %v2731 = vunpack.c.l.b16 %v2635
      %v2732 = vunpack.c.l.b16 %v2636
      %v2733 = vpack.c.b16 %v2718, %v2717
      %v2734 = vpack.c.b16 %v2720, %v2719
      %v2735 = vpack.c.b16 %v2722, %v2721
      %v2736 = vpack.c.b16 %v2724, %v2723
      %v2737 = vpack.c.b16 %v2726, %v2725
      %v2738 = vpack.c.b16 %v2728, %v2727
      %v2739 = vpack.c.b16 %v2730, %v2729
      %v2740 = vpack.c.b16 %v2732, %v2731
      %2749 = vmatprep.subr.bf16.mxu0 0
      %2750 = vmatpush1.bf16.msra.mxu0 %v2733
      %2751 = vmatprep.subr.bf16.mxu0 0
      %2752 = vmatpush1.bf16.msra.mxu0 %v2734
      %2753 = vmatprep.subr.bf16.mxu0 0
      %2754 = vmatpush1.bf16.msra.mxu0 %v2735
      %2755 = vmatprep.subr.bf16.mxu0 0
      %2756 = vmatpush1.bf16.msra.mxu0 %v2736
      %2757 = vmatprep.subr.bf16.mxu0 0
      %2758 = vmatpush1.bf16.msra.mxu0 %v2737
      %2759 = vmatprep.subr.bf16.mxu0 0
      %2760 = vmatpush1.bf16.msra.mxu0 %v2738
      %2761 = vmatprep.subr.bf16.mxu0 0
      %2762 = vmatpush1.bf16.msra.mxu0 %v2739
      %2763 = vmatprep.subr.bf16.mxu0 0
      %2764 = vmatpush1.bf16.msra.mxu0 %v2740
      %2765 = vmatprep.subr.bf16.mxu0 0
      %2766 = vmatpush1.bf16.msra.mxu0 0
      %2767 = vmatprep.subr.bf16.mxu0 0
      %2768 = vmatpush1.bf16.msra.mxu0 0
      %2769 = vmatprep.subr.bf16.mxu0 0
      %2770 = vmatpush1.bf16.msra.mxu0 0
      %2771 = vmatprep.subr.bf16.mxu0 0
      %2772 = vmatpush1.bf16.msra.mxu0 0
      %2773 = vmatprep.subr.bf16.mxu0 0
      %2774 = vmatpush1.bf16.msra.mxu0 0
      %2775 = vmatprep.subr.bf16.mxu0 0
      %2776 = vmatpush1.bf16.msra.mxu0 0
      %2777 = vmatprep.subr.bf16.mxu0 0
      %2778 = vmatpush1.bf16.msra.mxu0 0
      %2779 = vmatprep.subr.bf16.mxu0 0
      %2780 = vmatpush1.bf16.msra.mxu0 0
      %2781 = vmatprep.mubr.bf16.mxu0 0
      %2782 = vmatmul.mubr.bf16.gmra.mrb[0].mxu0 %v2669
      %v2783 = vpop.f32.mrb[0].mxu0
      %v2784 = vadd.f32 0.0, %v2783
      %v2785 = vpop.f32.mrb[0].mxu0
      %v2786 = vpop.f32.mrb[0].mxu0
      %v2787 = vadd.f32 0.0, %v2786
      %v2788 = vpop.f32.mrb[0].mxu0
      %2789 = vmatprep.mubr.bf16.mxu0 0
      %2790 = vmatmul.mubr.bf16.gmra.mrb[0].mxu0 %v2670
      %v2791 = vpop.f32.mrb[0].mxu0
      %v2792 = vadd.f32 0.0, %v2791
      %v2793 = vpop.f32.mrb[0].mxu0
      %v2794 = vpop.f32.mrb[0].mxu0
      %v2795 = vadd.f32 0.0, %v2794
      %v2796 = vpop.f32.mrb[0].mxu0
      %2797 = vmatprep.mubr.bf16.mxu0 0
      %2798 = vmatmul.mubr.bf16.gmra.mrb[0].mxu0 %v2671
      %v2799 = vpop.f32.mrb[0].mxu0
      %v2800 = vadd.f32 0.0, %v2799
      %v2801 = vpop.f32.mrb[0].mxu0
      %v2802 = vpop.f32.mrb[0].mxu0
      %v2803 = vadd.f32 0.0, %v2802
      %v2804 = vpop.f32.mrb[0].mxu0
      %2805 = vmatprep.mubr.bf16.mxu0 0
      %2806 = vmatmul.mubr.bf16.gmra.mrb[0].mxu0 %v2672
      %v2807 = vpop.f32.mrb[0].mxu0
      %v2808 = vadd.f32 0.0, %v2807
      %v2809 = vpop.f32.mrb[0].mxu0
      %v2810 = vpop.f32.mrb[0].mxu0
      %v2811 = vadd.f32 0.0, %v2810
      %v2812 = vpop.f32.mrb[0].mxu0
      %2813 = vmatprep.mubr.bf16.mxu0 0
      %2814 = vmatmul.mubr.bf16.gmra.mrb[0].mxu0 %v2673
      %v2815 = vpop.f32.mrb[0].mxu0
      %v2816 = vadd.f32 0.0, %v2815
      %v2817 = vpop.f32.mrb[0].mxu0
      %v2818 = vpop.f32.mrb[0].mxu0
      %v2819 = vadd.f32 0.0, %v2818
      %v2820 = vpop.f32.mrb[0].mxu0
      %2821 = vmatprep.mubr.bf16.mxu0 0
      %2822 = vmatmul.mubr.bf16.gmra.mrb[0].mxu0 %v2674
      %v2823 = vpop.f32.mrb[0].mxu0
      %v2824 = vadd.f32 0.0, %v2823
      %v2825 = vpop.f32.mrb[0].mxu0
      %v2826 = vpop.f32.mrb[0].mxu0
      %v2827 = vadd.f32 0.0, %v2826
      %v2828 = vpop.f32.mrb[0].mxu0
      %2829 = vmatprep.mubr.bf16.mxu0 0
      %2830 = vmatmul.mubr.bf16.gmra.mrb[0].mxu0 %v2675
      %v2831 = vpop.f32.mrb[0].mxu0
      %v2832 = vadd.f32 0.0, %v2831
      %v2833 = vpop.f32.mrb[0].mxu0
      %v2834 = vpop.f32.mrb[0].mxu0
      %v2835 = vadd.f32 0.0, %v2834
      %v2836 = vpop.f32.mrb[0].mxu0
      %2837 = vmatprep.mubr.bf16.mxu0 0
      %2838 = vmatmul.mubr.bf16.gmra.mrb[0].mxu0 %v2676
      %v2839 = vpop.f32.mrb[0].mxu0
      %v2840 = vadd.f32 0.0, %v2839
      %v2841 = vpop.f32.mrb[0].mxu0
      %v2842 = vpop.f32.mrb[0].mxu0
      %v2843 = vadd.f32 0.0, %v2842
      %v2844 = vpop.f32.mrb[0].mxu0
      %2845 = vmatprep.mubr.bf16.mxu0 0
      %2846 = vmatmul.mubr.bf16.gmra.mrb[0].mxu0 %v2677
      %v2847 = vpop.f32.mrb[0].mxu0
      %v2848 = vadd.f32 0.0, %v2847
      %v2849 = vpop.f32.mrb[0].mxu0
      %v2850 = vpop.f32.mrb[0].mxu0
      %v2851 = vadd.f32 0.0, %v2850
      %v2852 = vpop.f32.mrb[0].mxu0
      %2853 = vmatprep.mubr.bf16.mxu0 0
      %2854 = vmatmul.mubr.bf16.gmra.mrb[0].mxu0 %v2678
      %v2855 = vpop.f32.mrb[0].mxu0
      %v2856 = vadd.f32 0.0, %v2855
      %v2857 = vpop.f32.mrb[0].mxu0
      %v2858 = vpop.f32.mrb[0].mxu0
      %v2859 = vadd.f32 0.0, %v2858
      %v2860 = vpop.f32.mrb[0].mxu0
      %2861 = vmatprep.mubr.bf16.mxu0 0
      %2862 = vmatmul.mubr.bf16.gmra.mrb[0].mxu0 %v2679
      %v2863 = vpop.f32.mrb[0].mxu0
      %v2864 = vadd.f32 0.0, %v2863
      %v2865 = vpop.f32.mrb[0].mxu0
      %v2866 = vpop.f32.mrb[0].mxu0
      %v2867 = vadd.f32 0.0, %v2866
      %v2868 = vpop.f32.mrb[0].mxu0
      %2869 = vmatprep.mubr.bf16.mxu0 0
      %2870 = vmatmul.mubr.bf16.gmra.mrb[0].mxu0 %v2680
      %v2871 = vpop.f32.mrb[0].mxu0
      %v2872 = vadd.f32 0.0, %v2871
      %v2873 = vpop.f32.mrb[0].mxu0
      %v2874 = vpop.f32.mrb[0].mxu0
      %v2875 = vadd.f32 0.0, %v2874
      %v2876 = vpop.f32.mrb[0].mxu0
      %2877 = vmatprep.mubr.bf16.mxu0 0
      %2878 = vmatmul.mubr.bf16.gmra.mrb[0].mxu0 %v2681
      %v2879 = vpop.f32.mrb[0].mxu0
      %v2880 = vadd.f32 0.0, %v2879
      %v2881 = vpop.f32.mrb[0].mxu0
      %v2882 = vpop.f32.mrb[0].mxu0
      %v2883 = vadd.f32 0.0, %v2882
      %v2884 = vpop.f32.mrb[0].mxu0
      %2885 = vmatprep.mubr.bf16.mxu0 0
      %2886 = vmatmul.mubr.bf16.gmra.mrb[0].mxu0 %v2682
      %v2887 = vpop.f32.mrb[0].mxu0
      %v2888 = vadd.f32 0.0, %v2887
      %v2889 = vpop.f32.mrb[0].mxu0
      %v2890 = vpop.f32.mrb[0].mxu0
      %v2891 = vadd.f32 0.0, %v2890
      %v2892 = vpop.f32.mrb[0].mxu0
      %2893 = vmatprep.mubr.bf16.mxu0 0
      %2894 = vmatmul.mubr.bf16.gmra.mrb[0].mxu0 %v2683
      %v2895 = vpop.f32.mrb[0].mxu0
      %v2896 = vadd.f32 0.0, %v2895
      %v2897 = vpop.f32.mrb[0].mxu0
      %v2898 = vpop.f32.mrb[0].mxu0
      %v2899 = vadd.f32 0.0, %v2898
      %v2900 = vpop.f32.mrb[0].mxu0
      %2901 = vmatprep.mubr.bf16.mxu0 0
      %2902 = vmatmul.mubr.bf16.gmra.mrb[0].mxu0 %v2684
      %v2903 = vpop.f32.mrb[0].mxu0
      %v2904 = vadd.f32 0.0, %v2903
      %v2905 = vpop.f32.mrb[0].mxu0
      %v2906 = vpop.f32.mrb[0].mxu0
      %v2907 = vadd.f32 0.0, %v2906
      %v2908 = vpop.f32.mrb[0].mxu0
      %2909 = vdwg.mxu0
      %v2910 = vadd.f32 %v2156, %v2784
      %v2911 = vadd.f32 %v2157, %v2787
      %v2912 = vadd.f32 %v2158, %v2792
      %v2913 = vadd.f32 %v2159, %v2795
      %v2914 = vadd.f32 %v2160, %v2800
      %v2915 = vadd.f32 %v2161, %v2803
      %v2916 = vadd.f32 %v2162, %v2808
      %v2917 = vadd.f32 %v2163, %v2811
      %v2918 = vadd.f32 %v2164, %v2816
      %v2919 = vadd.f32 %v2165, %v2819
      %v2920 = vadd.f32 %v2166, %v2824
      %v2921 = vadd.f32 %v2167, %v2827
      %v2922 = vadd.f32 %v2168, %v2832
      %v2923 = vadd.f32 %v2169, %v2835
      %v2924 = vadd.f32 %v2170, %v2840
      %v2925 = vadd.f32 %v2171, %v2843
      %v2926 = vadd.f32 %v2172, %v2848
      %v2927 = vadd.f32 %v2173, %v2851
      %v2928 = vadd.f32 %v2174, %v2856
      %v2929 = vadd.f32 %v2175, %v2859
      %v2930 = vadd.f32 %v2176, %v2864
      %v2931 = vadd.f32 %v2177, %v2867
      %v2932 = vadd.f32 %v2178, %v2872
      %v2933 = vadd.f32 %v2179, %v2875
      %v2934 = vadd.f32 %v2180, %v2880
      %v2935 = vadd.f32 %v2181, %v2883
      %v2936 = vadd.f32 %v2182, %v2888
      %v2937 = vadd.f32 %v2183, %v2891
      %v2938 = vadd.f32 %v2184, %v2896
      %v2939 = vadd.f32 %v2185, %v2899
      %v2940 = vadd.f32 %v2186, %v2904
      %v2941 = vadd.f32 %v2187, %v2907
      %v2942 = vld [vmem:[%s1801] sm:$0xe]
      %v2943 = vld [vmem:[%s1801 + $0xc] sm:$0xe]
      %v2944 = vld [vmem:[%s1801 + $0x18] sm:$0xe]
      %v2945 = vld [vmem:[%s1801 + $0x24] sm:$0xe]
      %v2946 = vld [vmem:[%s1801 + $0x30] sm:$0xe]
      %v2947 = vld [vmem:[%s1801 + $0x3c] sm:$0xe]
      %v2948 = vld [vmem:[%s1801 + $0x48] sm:$0xe]
      %v2949 = vld [vmem:[%s1801 + $0x54] sm:$0xe]
      %v2950 = vld [vmem:[%s1801 + $0x60] sm:$0xe]
      %v2951 = vld [vmem:[%s1801 + $0x6c] sm:$0xe]
      %v2952 = vld [vmem:[%s1801 + $0x78] sm:$0xe]
      %v2953 = vld [vmem:[%s1801 + $0x84] sm:$0xe]
      %v2954 = vld [vmem:[%s1801 + $0x90] sm:$0xe]
      %v2955 = vld [vmem:[%s1801 + $0x9c] sm:$0xe]
      %v2956 = vld [vmem:[%s1801 + $0xa8] sm:$0xe]
      %v2957 = vld [vmem:[%s1801 + $0xb4] sm:$0xe]
      %v3006 = vrot.slane %v2942, 5
      %v3007 = vrot.slane %v3006, 4
      %v3008 = vrot.slane %v2189, 5
      %v3009 = vsel %vm1366, %v3007, %v3008
      %v3010 = vrot.slane %v3008, 4
      %v3011 = vrot.slane %v2190, 5
      %v3012 = vsel %vm1366, %v3010, %v3011
      %v3013 = vrot.slane %v2943, 5
      %v3014 = vrot.slane %v3013, 4
      %v3015 = vrot.slane %v2192, 5
      %v3016 = vsel %vm1366, %v3014, %v3015
      %v3017 = vrot.slane %v3015, 4
      %v3018 = vrot.slane %v2193, 5
      %v3019 = vsel %vm1366, %v3017, %v3018
      %v3020 = vrot.slane %v2944, 5
      %v3021 = vrot.slane %v3020, 4
      %v3022 = vrot.slane %v2195, 5
      %v3023 = vsel %vm1366, %v3021, %v3022
      %v3024 = vrot.slane %v3022, 4
      %v3025 = vrot.slane %v2196, 5
      %v3026 = vsel %vm1366, %v3024, %v3025
      %v3027 = vrot.slane %v2945, 5
      %v3028 = vrot.slane %v3027, 4
      %v3029 = vrot.slane %v2198, 5
      %v3030 = vsel %vm1366, %v3028, %v3029
      %v3031 = vrot.slane %v3029, 4
      %v3032 = vrot.slane %v2199, 5
      %v3033 = vsel %vm1366, %v3031, %v3032
      %v3034 = vrot.slane %v2946, 5
      %v3035 = vrot.slane %v3034, 4
      %v3036 = vrot.slane %v2201, 5
      %v3037 = vsel %vm1366, %v3035, %v3036
      %v3038 = vrot.slane %v3036, 4
      %v3039 = vrot.slane %v2202, 5
      %v3040 = vsel %vm1366, %v3038, %v3039
      %v3041 = vrot.slane %v2947, 5
      %v3042 = vrot.slane %v3041, 4
      %v3043 = vrot.slane %v2204, 5
      %v3044 = vsel %vm1366, %v3042, %v3043
      %v3045 = vrot.slane %v3043, 4
      %v3046 = vrot.slane %v2205, 5
      %v3047 = vsel %vm1366, %v3045, %v3046
      %v3048 = vrot.slane %v2948, 5
      %v3049 = vrot.slane %v3048, 4
      %v3050 = vrot.slane %v2207, 5
      %v3051 = vsel %vm1366, %v3049, %v3050
      %v3052 = vrot.slane %v3050, 4
      %v3053 = vrot.slane %v2208, 5
      %v3054 = vsel %vm1366, %v3052, %v3053
      %v3055 = vrot.slane %v2949, 5
      %v3056 = vrot.slane %v3055, 4
      %v3057 = vrot.slane %v2210, 5
      %v3058 = vsel %vm1366, %v3056, %v3057
      %v3059 = vrot.slane %v3057, 4
      %v3060 = vrot.slane %v2211, 5
      %v3061 = vsel %vm1366, %v3059, %v3060
      %v3062 = vrot.slane %v2950, 5
      %v3063 = vrot.slane %v3062, 4
      %v3064 = vrot.slane %v2213, 5
      %v3065 = vsel %vm1366, %v3063, %v3064
      %v3066 = vrot.slane %v3064, 4
      %v3067 = vrot.slane %v2214, 5
      %v3068 = vsel %vm1366, %v3066, %v3067
      %v3069 = vrot.slane %v2951, 5
      %v3070 = vrot.slane %v3069, 4
      %v3071 = vrot.slane %v2216, 5
      %v3072 = vsel %vm1366, %v3070, %v3071
      %v3073 = vrot.slane %v3071, 4
      %v3074 = vrot.slane %v2217, 5
      %v3075 = vsel %vm1366, %v3073, %v3074
      %v3076 = vrot.slane %v2952, 5
      %v3077 = vrot.slane %v3076, 4
      %v3078 = vrot.slane %v2219, 5
      %v3079 = vsel %vm1366, %v3077, %v3078
      %v3080 = vrot.slane %v3078, 4
      %v3081 = vrot.slane %v2220, 5
      %v3082 = vsel %vm1366, %v3080, %v3081
      %v3083 = vrot.slane %v2953, 5
      %v3084 = vrot.slane %v3083, 4
      %v3085 = vrot.slane %v2222, 5
      %v3086 = vsel %vm1366, %v3084, %v3085
      %v3087 = vrot.slane %v3085, 4
      %v3088 = vrot.slane %v2223, 5
      %v3089 = vsel %vm1366, %v3087, %v3088
      %v3090 = vrot.slane %v2954, 5
      %v3091 = vrot.slane %v3090, 4
      %v3092 = vrot.slane %v2225, 5
      %v3093 = vsel %vm1366, %v3091, %v3092
      %v3094 = vrot.slane %v3092, 4
      %v3095 = vrot.slane %v2226, 5
      %v3096 = vsel %vm1366, %v3094, %v3095
      %v3097 = vrot.slane %v2955, 5
      %v3098 = vrot.slane %v3097, 4
      %v3099 = vrot.slane %v2228, 5
      %v3100 = vsel %vm1366, %v3098, %v3099
      %v3101 = vrot.slane %v3099, 4
      %v3102 = vrot.slane %v2229, 5
      %v3103 = vsel %vm1366, %v3101, %v3102
      %v3104 = vrot.slane %v2956, 5
      %v3105 = vrot.slane %v3104, 4
      %v3106 = vrot.slane %v2231, 5
      %v3107 = vsel %vm1366, %v3105, %v3106
      %v3108 = vrot.slane %v3106, 4
      %v3109 = vrot.slane %v2232, 5
      %v3110 = vsel %vm1366, %v3108, %v3109
      %v3111 = vrot.slane %v2957, 5
      %v3112 = vrot.slane %v3111, 4
      %v3113 = vrot.slane %v2234, 5
      %v3114 = vsel %vm1366, %v3112, %v3113
      %v3115 = vrot.slane %v3113, 4
      %v3116 = vrot.slane %v2235, 5
      %v3117 = vsel %vm1366, %v3115, %v3116
      %s3118 = scalar_lea.vmem %s247, 320
      %v3119 = vld [vmem:[%s3118] sm:$0xf]
      %v3120 = vld [vmem:[%s3118 + $0x4] sm:$0xf]
      %v3121 = vld [vmem:[%s3118 + $0x8] sm:$0xf]
      %v3122 = vld [vmem:[%s3118 + $0xc] sm:$0xf]
      %v3123 = vld [vmem:[%s3118 + $0x10] sm:$0xf]
      %v3124 = vld [vmem:[%s3118 + $0x14] sm:$0xf]
      %v3125 = vld [vmem:[%s3118 + $0x18] sm:$0xf]
      %v3126 = vld [vmem:[%s3118 + $0x1c] sm:$0xf]
      %v3127 = vld [vmem:[%s3118 + $0x20] sm:$0xf]
      %v3128 = vld [vmem:[%s3118 + $0x24] sm:$0xf]
      %v3129 = vld [vmem:[%s3118 + $0x28] sm:$0xf]
      %v3130 = vld [vmem:[%s3118 + $0x2c] sm:$0xf]
      %v3131 = vld [vmem:[%s3118 + $0x30] sm:$0xf]
      %v3132 = vld [vmem:[%s3118 + $0x34] sm:$0xf]
      %v3133 = vld [vmem:[%s3118 + $0x38] sm:$0xf]
      %v3134 = vld [vmem:[%s3118 + $0x3c] sm:$0xf]
      %v3135 = vunpack.c.l.b16 %v3009
      %v3136 = vunpack.c.l.b16 %v3012
      %v3137 = vunpack.c.l.b16 %v3016
      %v3138 = vunpack.c.l.b16 %v3019
      %v3139 = vunpack.c.l.b16 %v3023
      %v3140 = vunpack.c.l.b16 %v3026
      %v3141 = vunpack.c.l.b16 %v3030
      %v3142 = vunpack.c.l.b16 %v3033
      %v3143 = vunpack.c.l.b16 %v3037
      %v3144 = vunpack.c.l.b16 %v3040
      %v3145 = vunpack.c.l.b16 %v3044
      %v3146 = vunpack.c.l.b16 %v3047
      %v3147 = vunpack.c.l.b16 %v3051
      %v3148 = vunpack.c.l.b16 %v3054
      %v3149 = vunpack.c.l.b16 %v3058
      %v3150 = vunpack.c.l.b16 %v3061
      %v3151 = vunpack.c.l.b16 %v3065
      %v3152 = vunpack.c.l.b16 %v3068
      %v3153 = vunpack.c.l.b16 %v3072
      %v3154 = vunpack.c.l.b16 %v3075
      %v3155 = vunpack.c.l.b16 %v3079
      %v3156 = vunpack.c.l.b16 %v3082
      %v3157 = vunpack.c.l.b16 %v3086
      %v3158 = vunpack.c.l.b16 %v3089
      %v3159 = vunpack.c.l.b16 %v3093
      %v3160 = vunpack.c.l.b16 %v3096
      %v3161 = vunpack.c.l.b16 %v3100
      %v3162 = vunpack.c.l.b16 %v3103
      %v3163 = vunpack.c.l.b16 %v3107
      %v3164 = vunpack.c.l.b16 %v3110
      %v3165 = vunpack.c.l.b16 %v3114
      %v3166 = vunpack.c.l.b16 %v3117
      %v3167 = vpack.c.b16 %v3136, %v3135
      %v3168 = vpack.c.b16 %v3138, %v3137
      %v3169 = vpack.c.b16 %v3140, %v3139
      %v3170 = vpack.c.b16 %v3142, %v3141
      %v3171 = vpack.c.b16 %v3144, %v3143
      %v3172 = vpack.c.b16 %v3146, %v3145
      %v3173 = vpack.c.b16 %v3148, %v3147
      %v3174 = vpack.c.b16 %v3150, %v3149
      %v3175 = vpack.c.b16 %v3152, %v3151
      %v3176 = vpack.c.b16 %v3154, %v3153
      %v3177 = vpack.c.b16 %v3156, %v3155
      %v3178 = vpack.c.b16 %v3158, %v3157
      %v3179 = vpack.c.b16 %v3160, %v3159
      %v3180 = vpack.c.b16 %v3162, %v3161
      %v3181 = vpack.c.b16 %v3164, %v3163
      %v3182 = vpack.c.b16 %v3166, %v3165
      %v3215 = vunpack.c.l.b16 %v3119
      %v3216 = vunpack.c.l.b16 %v3120
      %v3217 = vunpack.c.l.b16 %v3121
      %v3218 = vunpack.c.l.b16 %v3122
      %v3219 = vunpack.c.l.b16 %v3123
      %v3220 = vunpack.c.l.b16 %v3124
      %v3221 = vunpack.c.l.b16 %v3125
      %v3222 = vunpack.c.l.b16 %v3126
      %v3223 = vunpack.c.l.b16 %v3127
      %v3224 = vunpack.c.l.b16 %v3128
      %v3225 = vunpack.c.l.b16 %v3129
      %v3226 = vunpack.c.l.b16 %v3130
      %v3227 = vunpack.c.l.b16 %v3131
      %v3228 = vunpack.c.l.b16 %v3132
      %v3229 = vunpack.c.l.b16 %v3133
      %v3230 = vunpack.c.l.b16 %v3134
      %v3231 = vpack.c.b16 %v3216, %v3215
      %v3232 = vpack.c.b16 %v3218, %v3217
      %v3233 = vpack.c.b16 %v3220, %v3219
      %v3234 = vpack.c.b16 %v3222, %v3221
      %v3235 = vpack.c.b16 %v3224, %v3223
      %v3236 = vpack.c.b16 %v3226, %v3225
      %v3237 = vpack.c.b16 %v3228, %v3227
      %v3238 = vpack.c.b16 %v3230, %v3229
      %3247 = vmatprep.subr.bf16.mxu0 0
      %3248 = vmatpush1.bf16.msra.mxu0 %v3231
      %3249 = vmatprep.subr.bf16.mxu0 0
      %3250 = vmatpush1.bf16.msra.mxu0 %v3232
      %3251 = vmatprep.subr.bf16.mxu0 0
      %3252 = vmatpush1.bf16.msra.mxu0 %v3233
      %3253 = vmatprep.subr.bf16.mxu0 0
      %3254 = vmatpush1.bf16.msra.mxu0 %v3234
      %3255 = vmatprep.subr.bf16.mxu0 0
      %3256 = vmatpush1.bf16.msra.mxu0 %v3235
      %3257 = vmatprep.subr.bf16.mxu0 0
      %3258 = vmatpush1.bf16.msra.mxu0 %v3236
      %3259 = vmatprep.subr.bf16.mxu0 0
      %3260 = vmatpush1.bf16.msra.mxu0 %v3237
      %3261 = vmatprep.subr.bf16.mxu0 0
      %3262 = vmatpush1.bf16.msra.mxu0 %v3238
      %3263 = vmatprep.subr.bf16.mxu0 0
      %3264 = vmatpush1.bf16.msra.mxu0 0
      %3265 = vmatprep.subr.bf16.mxu0 0
      %3266 = vmatpush1.bf16.msra.mxu0 0
      %3267 = vmatprep.subr.bf16.mxu0 0
      %3268 = vmatpush1.bf16.msra.mxu0 0
      %3269 = vmatprep.subr.bf16.mxu0 0
      %3270 = vmatpush1.bf16.msra.mxu0 0
      %3271 = vmatprep.subr.bf16.mxu0 0
      %3272 = vmatpush1.bf16.msra.mxu0 0
      %3273 = vmatprep.subr.bf16.mxu0 0
      %3274 = vmatpush1.bf16.msra.mxu0 0
      %3275 = vmatprep.subr.bf16.mxu0 0
      %3276 = vmatpush1.bf16.msra.mxu0 0
      %3277 = vmatprep.subr.bf16.mxu0 0
      %3278 = vmatpush1.bf16.msra.mxu0 0
      %3279 = vmatprep.mubr.bf16.mxu0 0
      %3280 = vmatmul.mubr.bf16.gmra.mrb[0].mxu0 %v3167
      %v3281 = vpop.f32.mrb[0].mxu0
      %v3282 = vadd.f32 0.0, %v3281
      %v3283 = vpop.f32.mrb[0].mxu0
      %v3284 = vpop.f32.mrb[0].mxu0
      %v3285 = vadd.f32 0.0, %v3284
      %v3286 = vpop.f32.mrb[0].mxu0
      %3287 = vmatprep.mubr.bf16.mxu0 0
      %3288 = vmatmul.mubr.bf16.gmra.mrb[0].mxu0 %v3168
      %v3289 = vpop.f32.mrb[0].mxu0
      %v3290 = vadd.f32 0.0, %v3289
      %v3291 = vpop.f32.mrb[0].mxu0
      %v3292 = vpop.f32.mrb[0].mxu0
      %v3293 = vadd.f32 0.0, %v3292
      %v3294 = vpop.f32.mrb[0].mxu0
      %3295 = vmatprep.mubr.bf16.mxu0 0
      %3296 = vmatmul.mubr.bf16.gmra.mrb[0].mxu0 %v3169
      %v3297 = vpop.f32.mrb[0].mxu0
      %v3298 = vadd.f32 0.0, %v3297
      %v3299 = vpop.f32.mrb[0].mxu0
      %v3300 = vpop.f32.mrb[0].mxu0
      %v3301 = vadd.f32 0.0, %v3300
      %v3302 = vpop.f32.mrb[0].mxu0
      %3303 = vmatprep.mubr.bf16.mxu0 0
      %3304 = vmatmul.mubr.bf16.gmra.mrb[0].mxu0 %v3170
      %v3305 = vpop.f32.mrb[0].mxu0
      %v3306 = vadd.f32 0.0, %v3305
      %v3307 = vpop.f32.mrb[0].mxu0
      %v3308 = vpop.f32.mrb[0].mxu0
      %v3309 = vadd.f32 0.0, %v3308
      %v3310 = vpop.f32.mrb[0].mxu0
      %3311 = vmatprep.mubr.bf16.mxu0 0
      %3312 = vmatmul.mubr.bf16.gmra.mrb[0].mxu0 %v3171
      %v3313 = vpop.f32.mrb[0].mxu0
      %v3314 = vadd.f32 0.0, %v3313
      %v3315 = vpop.f32.mrb[0].mxu0
      %v3316 = vpop.f32.mrb[0].mxu0
      %v3317 = vadd.f32 0.0, %v3316
      %v3318 = vpop.f32.mrb[0].mxu0
      %3319 = vmatprep.mubr.bf16.mxu0 0
      %3320 = vmatmul.mubr.bf16.gmra.mrb[0].mxu0 %v3172
      %v3321 = vpop.f32.mrb[0].mxu0
      %v3322 = vadd.f32 0.0, %v3321
      %v3323 = vpop.f32.mrb[0].mxu0
      %v3324 = vpop.f32.mrb[0].mxu0
      %v3325 = vadd.f32 0.0, %v3324
      %v3326 = vpop.f32.mrb[0].mxu0
      %3327 = vmatprep.mubr.bf16.mxu0 0
      %3328 = vmatmul.mubr.bf16.gmra.mrb[0].mxu0 %v3173
      %v3329 = vpop.f32.mrb[0].mxu0
      %v3330 = vadd.f32 0.0, %v3329
      %v3331 = vpop.f32.mrb[0].mxu0
      %v3332 = vpop.f32.mrb[0].mxu0
      %v3333 = vadd.f32 0.0, %v3332
      %v3334 = vpop.f32.mrb[0].mxu0
      %3335 = vmatprep.mubr.bf16.mxu0 0
      %3336 = vmatmul.mubr.bf16.gmra.mrb[0].mxu0 %v3174
      %v3337 = vpop.f32.mrb[0].mxu0
      %v3338 = vadd.f32 0.0, %v3337
      %v3339 = vpop.f32.mrb[0].mxu0
      %v3340 = vpop.f32.mrb[0].mxu0
      %v3341 = vadd.f32 0.0, %v3340
      %v3342 = vpop.f32.mrb[0].mxu0
      %3343 = vmatprep.mubr.bf16.mxu0 0
      %3344 = vmatmul.mubr.bf16.gmra.mrb[0].mxu0 %v3175
      %v3345 = vpop.f32.mrb[0].mxu0
      %v3346 = vadd.f32 0.0, %v3345
      %v3347 = vpop.f32.mrb[0].mxu0
      %v3348 = vpop.f32.mrb[0].mxu0
      %v3349 = vadd.f32 0.0, %v3348
      %v3350 = vpop.f32.mrb[0].mxu0
      %3351 = vmatprep.mubr.bf16.mxu0 0
      %3352 = vmatmul.mubr.bf16.gmra.mrb[0].mxu0 %v3176
      %v3353 = vpop.f32.mrb[0].mxu0
      %v3354 = vadd.f32 0.0, %v3353
      %v3355 = vpop.f32.mrb[0].mxu0
      %v3356 = vpop.f32.mrb[0].mxu0
      %v3357 = vadd.f32 0.0, %v3356
      %v3358 = vpop.f32.mrb[0].mxu0
      %3359 = vmatprep.mubr.bf16.mxu0 0
      %3360 = vmatmul.mubr.bf16.gmra.mrb[0].mxu0 %v3177
      %v3361 = vpop.f32.mrb[0].mxu0
      %v3362 = vadd.f32 0.0, %v3361
      %v3363 = vpop.f32.mrb[0].mxu0
      %v3364 = vpop.f32.mrb[0].mxu0
      %v3365 = vadd.f32 0.0, %v3364
      %v3366 = vpop.f32.mrb[0].mxu0
      %3367 = vmatprep.mubr.bf16.mxu0 0
      %3368 = vmatmul.mubr.bf16.gmra.mrb[0].mxu0 %v3178
      %v3369 = vpop.f32.mrb[0].mxu0
      %v3370 = vadd.f32 0.0, %v3369
      %v3371 = vpop.f32.mrb[0].mxu0
      %v3372 = vpop.f32.mrb[0].mxu0
      %v3373 = vadd.f32 0.0, %v3372
      %v3374 = vpop.f32.mrb[0].mxu0
      %3375 = vmatprep.mubr.bf16.mxu0 0
      %3376 = vmatmul.mubr.bf16.gmra.mrb[0].mxu0 %v3179
      %v3377 = vpop.f32.mrb[0].mxu0
      %v3378 = vadd.f32 0.0, %v3377
      %v3379 = vpop.f32.mrb[0].mxu0
      %v3380 = vpop.f32.mrb[0].mxu0
      %v3381 = vadd.f32 0.0, %v3380
      %v3382 = vpop.f32.mrb[0].mxu0
      %3383 = vmatprep.mubr.bf16.mxu0 0
      %3384 = vmatmul.mubr.bf16.gmra.mrb[0].mxu0 %v3180
      %v3385 = vpop.f32.mrb[0].mxu0
      %v3386 = vadd.f32 0.0, %v3385
      %v3387 = vpop.f32.mrb[0].mxu0
      %v3388 = vpop.f32.mrb[0].mxu0
      %v3389 = vadd.f32 0.0, %v3388
      %v3390 = vpop.f32.mrb[0].mxu0
      %3391 = vmatprep.mubr.bf16.mxu0 0
      %3392 = vmatmul.mubr.bf16.gmra.mrb[0].mxu0 %v3181
      %v3393 = vpop.f32.mrb[0].mxu0
      %v3394 = vadd.f32 0.0, %v3393
      %v3395 = vpop.f32.mrb[0].mxu0
      %v3396 = vpop.f32.mrb[0].mxu0
      %v3397 = vadd.f32 0.0, %v3396
      %v3398 = vpop.f32.mrb[0].mxu0
      %3399 = vmatprep.mubr.bf16.mxu0 0
      %3400 = vmatmul.mubr.bf16.gmra.mrb[0].mxu0 %v3182
      %v3401 = vpop.f32.mrb[0].mxu0
      %v3402 = vadd.f32 0.0, %v3401
      %v3403 = vpop.f32.mrb[0].mxu0
      %v3404 = vpop.f32.mrb[0].mxu0
      %v3405 = vadd.f32 0.0, %v3404
      %v3406 = vpop.f32.mrb[0].mxu0
      %3407 = vdwg.mxu0
      %v3408 = vadd.f32 %v2910, %v3282
      %v3409 = vadd.f32 %v2911, %v3285
      %v3410 = vadd.f32 %v2912, %v3290
      %v3411 = vadd.f32 %v2913, %v3293
      %v3412 = vadd.f32 %v2914, %v3298
      %v3413 = vadd.f32 %v2915, %v3301
      %v3414 = vadd.f32 %v2916, %v3306
      %v3415 = vadd.f32 %v2917, %v3309
      %v3416 = vadd.f32 %v2918, %v3314
      %v3417 = vadd.f32 %v2919, %v3317
      %v3418 = vadd.f32 %v2920, %v3322
      %v3419 = vadd.f32 %v2921, %v3325
      %v3420 = vadd.f32 %v2922, %v3330
      %v3421 = vadd.f32 %v2923, %v3333
      %v3422 = vadd.f32 %v2924, %v3338
      %v3423 = vadd.f32 %v2925, %v3341
      %v3424 = vadd.f32 %v2926, %v3346
      %v3425 = vadd.f32 %v2927, %v3349
      %v3426 = vadd.f32 %v2928, %v3354
      %v3427 = vadd.f32 %v2929, %v3357
      %v3428 = vadd.f32 %v2930, %v3362
      %v3429 = vadd.f32 %v2931, %v3365
      %v3430 = vadd.f32 %v2932, %v3370
      %v3431 = vadd.f32 %v2933, %v3373
      %v3432 = vadd.f32 %v2934, %v3378
      %v3433 = vadd.f32 %v2935, %v3381
      %v3434 = vadd.f32 %v2936, %v3386
      %v3435 = vadd.f32 %v2937, %v3389
      %v3436 = vadd.f32 %v2938, %v3394
      %v3437 = vadd.f32 %v2939, %v3397
      %v3438 = vadd.f32 %v2940, %v3402
      %v3439 = vadd.f32 %v2941, %v3405
      %s3440 = scalar_lea.vmem %s243, 24
      %v3441 = vld [vmem:[%s3440] sm:$0xf]
      %v3442 = vld [vmem:[%s3440 + $0x4] sm:$0xf]
      %v3443 = vld [vmem:[%s3440 + $0xc] sm:$0xf]
      %v3444 = vld [vmem:[%s3440 + $0x10] sm:$0xf]
      %v3445 = vld [vmem:[%s3440 + $0x18] sm:$0xf]
      %v3446 = vld [vmem:[%s3440 + $0x1c] sm:$0xf]
      %v3447 = vld [vmem:[%s3440 + $0x24] sm:$0xf]
      %v3448 = vld [vmem:[%s3440 + $0x28] sm:$0xf]
      %v3449 = vld [vmem:[%s3440 + $0x30] sm:$0xf]
      %v3450 = vld [vmem:[%s3440 + $0x34] sm:$0xf]
      %v3451 = vld [vmem:[%s3440 + $0x3c] sm:$0xf]
      %v3452 = vld [vmem:[%s3440 + $0x40] sm:$0xf]
      %v3453 = vld [vmem:[%s3440 + $0x48] sm:$0xf]
      %v3454 = vld [vmem:[%s3440 + $0x4c] sm:$0xf]
      %v3455 = vld [vmem:[%s3440 + $0x54] sm:$0xf]
      %v3456 = vld [vmem:[%s3440 + $0x58] sm:$0xf]
      %v3457 = vld [vmem:[%s3440 + $0x60] sm:$0xf]
      %v3458 = vld [vmem:[%s3440 + $0x64] sm:$0xf]
      %v3459 = vld [vmem:[%s3440 + $0x6c] sm:$0xf]
      %v3460 = vld [vmem:[%s3440 + $0x70] sm:$0xf]
      %v3461 = vld [vmem:[%s3440 + $0x78] sm:$0xf]
      %v3462 = vld [vmem:[%s3440 + $0x7c] sm:$0xf]
      %v3463 = vld [vmem:[%s3440 + $0x84] sm:$0xf]
      %v3464 = vld [vmem:[%s3440 + $0x88] sm:$0xf]
      %v3465 = vld [vmem:[%s3440 + $0x90] sm:$0xf]
      %v3466 = vld [vmem:[%s3440 + $0x94] sm:$0xf]
      %v3467 = vld [vmem:[%s3440 + $0x9c] sm:$0xf]
      %v3468 = vld [vmem:[%s3440 + $0xa0] sm:$0xf]
      %v3469 = vld [vmem:[%s3440 + $0xa8] sm:$0xf]
      %v3470 = vld [vmem:[%s3440 + $0xac] sm:$0xf]
      %v3471 = vld [vmem:[%s3440 + $0xb4] sm:$0xf]
      %v3472 = vld [vmem:[%s3440 + $0xb8] sm:$0xf]
      %s3473 = scalar_lea.vmem %s247, 384
      %v3474 = vld [vmem:[%s3473] sm:$0xf]
      %v3475 = vld [vmem:[%s3473 + $0x4] sm:$0xf]
      %v3476 = vld [vmem:[%s3473 + $0x8] sm:$0xf]
      %v3477 = vld [vmem:[%s3473 + $0xc] sm:$0xf]
      %v3478 = vld [vmem:[%s3473 + $0x10] sm:$0xf]
      %v3479 = vld [vmem:[%s3473 + $0x14] sm:$0xf]
      %v3480 = vld [vmem:[%s3473 + $0x18] sm:$0xf]
      %v3481 = vld [vmem:[%s3473 + $0x1c] sm:$0xf]
      %v3482 = vld [vmem:[%s3473 + $0x20] sm:$0xf]
      %v3483 = vld [vmem:[%s3473 + $0x24] sm:$0xf]
      %v3484 = vld [vmem:[%s3473 + $0x28] sm:$0xf]
      %v3485 = vld [vmem:[%s3473 + $0x2c] sm:$0xf]
      %v3486 = vld [vmem:[%s3473 + $0x30] sm:$0xf]
      %v3487 = vld [vmem:[%s3473 + $0x34] sm:$0xf]
      %v3488 = vld [vmem:[%s3473 + $0x38] sm:$0xf]
      %v3489 = vld [vmem:[%s3473 + $0x3c] sm:$0xf]
      %v3522 = vunpack.c.l.b16 %v3441
      %v3523 = vunpack.c.l.b16 %v3442
      %v3524 = vunpack.c.l.b16 %v3443
      %v3525 = vunpack.c.l.b16 %v3444
      %v3526 = vunpack.c.l.b16 %v3445
      %v3527 = vunpack.c.l.b16 %v3446
      %v3528 = vunpack.c.l.b16 %v3447
      %v3529 = vunpack.c.l.b16 %v3448
      %v3530 = vunpack.c.l.b16 %v3449
      %v3531 = vunpack.c.l.b16 %v3450
      %v3532 = vunpack.c.l.b16 %v3451
      %v3533 = vunpack.c.l.b16 %v3452
      %v3534 = vunpack.c.l.b16 %v3453
      %v3535 = vunpack.c.l.b16 %v3454
      %v3536 = vunpack.c.l.b16 %v3455
      %v3537 = vunpack.c.l.b16 %v3456
      %v3538 = vunpack.c.l.b16 %v3457
      %v3539 = vunpack.c.l.b16 %v3458
      %v3540 = vunpack.c.l.b16 %v3459
      %v3541 = vunpack.c.l.b16 %v3460
      %v3542 = vunpack.c.l.b16 %v3461
      %v3543 = vunpack.c.l.b16 %v3462
      %v3544 = vunpack.c.l.b16 %v3463
      %v3545 = vunpack.c.l.b16 %v3464
      %v3546 = vunpack.c.l.b16 %v3465
      %v3547 = vunpack.c.l.b16 %v3466
      %v3548 = vunpack.c.l.b16 %v3467
      %v3549 = vunpack.c.l.b16 %v3468
      %v3550 = vunpack.c.l.b16 %v3469
      %v3551 = vunpack.c.l.b16 %v3470
      %v3552 = vunpack.c.l.b16 %v3471
      %v3553 = vunpack.c.l.b16 %v3472
      %v3554 = vpack.c.b16 %v3523, %v3522
      %v3555 = vpack.c.b16 %v3525, %v3524
      %v3556 = vpack.c.b16 %v3527, %v3526
      %v3557 = vpack.c.b16 %v3529, %v3528
      %v3558 = vpack.c.b16 %v3531, %v3530
      %v3559 = vpack.c.b16 %v3533, %v3532
      %v3560 = vpack.c.b16 %v3535, %v3534
      %v3561 = vpack.c.b16 %v3537, %v3536
      %v3562 = vpack.c.b16 %v3539, %v3538
      %v3563 = vpack.c.b16 %v3541, %v3540
      %v3564 = vpack.c.b16 %v3543, %v3542
      %v3565 = vpack.c.b16 %v3545, %v3544
      %v3566 = vpack.c.b16 %v3547, %v3546
      %v3567 = vpack.c.b16 %v3549, %v3548
      %v3568 = vpack.c.b16 %v3551, %v3550
      %v3569 = vpack.c.b16 %v3553, %v3552
      %v3602 = vunpack.c.l.b16 %v3474
      %v3603 = vunpack.c.l.b16 %v3475
      %v3604 = vunpack.c.l.b16 %v3476
      %v3605 = vunpack.c.l.b16 %v3477
      %v3606 = vunpack.c.l.b16 %v3478
      %v3607 = vunpack.c.l.b16 %v3479
      %v3608 = vunpack.c.l.b16 %v3480
      %v3609 = vunpack.c.l.b16 %v3481
      %v3610 = vunpack.c.l.b16 %v3482
      %v3611 = vunpack.c.l.b16 %v3483
      %v3612 = vunpack.c.l.b16 %v3484
      %v3613 = vunpack.c.l.b16 %v3485
      %v3614 = vunpack.c.l.b16 %v3486
      %v3615 = vunpack.c.l.b16 %v3487
      %v3616 = vunpack.c.l.b16 %v3488
      %v3617 = vunpack.c.l.b16 %v3489
      %v3618 = vpack.c.b16 %v3603, %v3602
      %v3619 = vpack.c.b16 %v3605, %v3604
      %v3620 = vpack.c.b16 %v3607, %v3606
      %v3621 = vpack.c.b16 %v3609, %v3608
      %v3622 = vpack.c.b16 %v3611, %v3610
      %v3623 = vpack.c.b16 %v3613, %v3612
      %v3624 = vpack.c.b16 %v3615, %v3614
      %v3625 = vpack.c.b16 %v3617, %v3616
      %3634 = vmatprep.subr.bf16.mxu0 0
      %3635 = vmatpush1.bf16.msra.mxu0 %v3618
      %3636 = vmatprep.subr.bf16.mxu0 0
      %3637 = vmatpush1.bf16.msra.mxu0 %v3619
      %3638 = vmatprep.subr.bf16.mxu0 0
      %3639 = vmatpush1.bf16.msra.mxu0 %v3620
      %3640 = vmatprep.subr.bf16.mxu0 0
      %3641 = vmatpush1.bf16.msra.mxu0 %v3621
      %3642 = vmatprep.subr.bf16.mxu0 0
      %3643 = vmatpush1.bf16.msra.mxu0 %v3622
      %3644 = vmatprep.subr.bf16.mxu0 0
      %3645 = vmatpush1.bf16.msra.mxu0 %v3623
      %3646 = vmatprep.subr.bf16.mxu0 0
      %3647 = vmatpush1.bf16.msra.mxu0 %v3624
      %3648 = vmatprep.subr.bf16.mxu0 0
      %3649 = vmatpush1.bf16.msra.mxu0 %v3625
      %3650 = vmatprep.subr.bf16.mxu0 0
      %3651 = vmatpush1.bf16.msra.mxu0 0
      %3652 = vmatprep.subr.bf16.mxu0 0
      %3653 = vmatpush1.bf16.msra.mxu0 0
      %3654 = vmatprep.subr.bf16.mxu0 0
      %3655 = vmatpush1.bf16.msra.mxu0 0
      %3656 = vmatprep.subr.bf16.mxu0 0
      %3657 = vmatpush1.bf16.msra.mxu0 0
      %3658 = vmatprep.subr.bf16.mxu0 0
      %3659 = vmatpush1.bf16.msra.mxu0 0
      %3660 = vmatprep.subr.bf16.mxu0 0
      %3661 = vmatpush1.bf16.msra.mxu0 0
      %3662 = vmatprep.subr.bf16.mxu0 0
      %3663 = vmatpush1.bf16.msra.mxu0 0
      %3664 = vmatprep.subr.bf16.mxu0 0
      %3665 = vmatpush1.bf16.msra.mxu0 0
      %3666 = vmatprep.mubr.bf16.mxu0 0
      %3667 = vmatmul.mubr.bf16.gmra.mrb[0].mxu0 %v3554
      %v3668 = vpop.f32.mrb[0].mxu0
      %v3669 = vadd.f32 0.0, %v3668
      %v3670 = vpop.f32.mrb[0].mxu0
      %v3671 = vpop.f32.mrb[0].mxu0
      %v3672 = vadd.f32 0.0, %v3671
      %v3673 = vpop.f32.mrb[0].mxu0
      %3674 = vmatprep.mubr.bf16.mxu0 0
      %3675 = vmatmul.mubr.bf16.gmra.mrb[0].mxu0 %v3555
      %v3676 = vpop.f32.mrb[0].mxu0
      %v3677 = vadd.f32 0.0, %v3676
      %v3678 = vpop.f32.mrb[0].mxu0
      %v3679 = vpop.f32.mrb[0].mxu0
      %v3680 = vadd.f32 0.0, %v3679
      %v3681 = vpop.f32.mrb[0].mxu0
      %3682 = vmatprep.mubr.bf16.mxu0 0
      %3683 = vmatmul.mubr.bf16.gmra.mrb[0].mxu0 %v3556
      %v3684 = vpop.f32.mrb[0].mxu0
      %v3685 = vadd.f32 0.0, %v3684
      %v3686 = vpop.f32.mrb[0].mxu0
      %v3687 = vpop.f32.mrb[0].mxu0
      %v3688 = vadd.f32 0.0, %v3687
      %v3689 = vpop.f32.mrb[0].mxu0
      %3690 = vmatprep.mubr.bf16.mxu0 0
      %3691 = vmatmul.mubr.bf16.gmra.mrb[0].mxu0 %v3557
      %v3692 = vpop.f32.mrb[0].mxu0
      %v3693 = vadd.f32 0.0, %v3692
      %v3694 = vpop.f32.mrb[0].mxu0
      %v3695 = vpop.f32.mrb[0].mxu0
      %v3696 = vadd.f32 0.0, %v3695
      %v3697 = vpop.f32.mrb[0].mxu0
      %3698 = vmatprep.mubr.bf16.mxu0 0
      %3699 = vmatmul.mubr.bf16.gmra.mrb[0].mxu0 %v3558
      %v3700 = vpop.f32.mrb[0].mxu0
      %v3701 = vadd.f32 0.0, %v3700
      %v3702 = vpop.f32.mrb[0].mxu0
      %v3703 = vpop.f32.mrb[0].mxu0
      %v3704 = vadd.f32 0.0, %v3703
      %v3705 = vpop.f32.mrb[0].mxu0
      %3706 = vmatprep.mubr.bf16.mxu0 0
      %3707 = vmatmul.mubr.bf16.gmra.mrb[0].mxu0 %v3559
      %v3708 = vpop.f32.mrb[0].mxu0
      %v3709 = vadd.f32 0.0, %v3708
      %v3710 = vpop.f32.mrb[0].mxu0
      %v3711 = vpop.f32.mrb[0].mxu0
      %v3712 = vadd.f32 0.0, %v3711
      %v3713 = vpop.f32.mrb[0].mxu0
      %3714 = vmatprep.mubr.bf16.mxu0 0
      %3715 = vmatmul.mubr.bf16.gmra.mrb[0].mxu0 %v3560
      %v3716 = vpop.f32.mrb[0].mxu0
      %v3717 = vadd.f32 0.0, %v3716
      %v3718 = vpop.f32.mrb[0].mxu0
      %v3719 = vpop.f32.mrb[0].mxu0
      %v3720 = vadd.f32 0.0, %v3719
      %v3721 = vpop.f32.mrb[0].mxu0
      %3722 = vmatprep.mubr.bf16.mxu0 0
      %3723 = vmatmul.mubr.bf16.gmra.mrb[0].mxu0 %v3561
      %v3724 = vpop.f32.mrb[0].mxu0
      %v3725 = vadd.f32 0.0, %v3724
      %v3726 = vpop.f32.mrb[0].mxu0
      %v3727 = vpop.f32.mrb[0].mxu0
      %v3728 = vadd.f32 0.0, %v3727
      %v3729 = vpop.f32.mrb[0].mxu0
      %3730 = vmatprep.mubr.bf16.mxu0 0
      %3731 = vmatmul.mubr.bf16.gmra.mrb[0].mxu0 %v3562
      %v3732 = vpop.f32.mrb[0].mxu0
      %v3733 = vadd.f32 0.0, %v3732
      %v3734 = vpop.f32.mrb[0].mxu0
      %v3735 = vpop.f32.mrb[0].mxu0
      %v3736 = vadd.f32 0.0, %v3735
      %v3737 = vpop.f32.mrb[0].mxu0
      %3738 = vmatprep.mubr.bf16.mxu0 0
      %3739 = vmatmul.mubr.bf16.gmra.mrb[0].mxu0 %v3563
      %v3740 = vpop.f32.mrb[0].mxu0
      %v3741 = vadd.f32 0.0, %v3740
      %v3742 = vpop.f32.mrb[0].mxu0
      %v3743 = vpop.f32.mrb[0].mxu0
      %v3744 = vadd.f32 0.0, %v3743
      %v3745 = vpop.f32.mrb[0].mxu0
      %3746 = vmatprep.mubr.bf16.mxu0 0
      %3747 = vmatmul.mubr.bf16.gmra.mrb[0].mxu0 %v3564
      %v3748 = vpop.f32.mrb[0].mxu0
      %v3749 = vadd.f32 0.0, %v3748
      %v3750 = vpop.f32.mrb[0].mxu0
      %v3751 = vpop.f32.mrb[0].mxu0
      %v3752 = vadd.f32 0.0, %v3751
      %v3753 = vpop.f32.mrb[0].mxu0
      %3754 = vmatprep.mubr.bf16.mxu0 0
      %3755 = vmatmul.mubr.bf16.gmra.mrb[0].mxu0 %v3565
      %v3756 = vpop.f32.mrb[0].mxu0
      %v3757 = vadd.f32 0.0, %v3756
      %v3758 = vpop.f32.mrb[0].mxu0
      %v3759 = vpop.f32.mrb[0].mxu0
      %v3760 = vadd.f32 0.0, %v3759
      %v3761 = vpop.f32.mrb[0].mxu0
      %3762 = vmatprep.mubr.bf16.mxu0 0
      %3763 = vmatmul.mubr.bf16.gmra.mrb[0].mxu0 %v3566
      %v3764 = vpop.f32.mrb[0].mxu0
      %v3765 = vadd.f32 0.0, %v3764
      %v3766 = vpop.f32.mrb[0].mxu0
      %v3767 = vpop.f32.mrb[0].mxu0
      %v3768 = vadd.f32 0.0, %v3767
      %v3769 = vpop.f32.mrb[0].mxu0
      %3770 = vmatprep.mubr.bf16.mxu0 0
      %3771 = vmatmul.mubr.bf16.gmra.mrb[0].mxu0 %v3567
      %v3772 = vpop.f32.mrb[0].mxu0
      %v3773 = vadd.f32 0.0, %v3772
      %v3774 = vpop.f32.mrb[0].mxu0
      %v3775 = vpop.f32.mrb[0].mxu0
      %v3776 = vadd.f32 0.0, %v3775
      %v3777 = vpop.f32.mrb[0].mxu0
      %3778 = vmatprep.mubr.bf16.mxu0 0
      %3779 = vmatmul.mubr.bf16.gmra.mrb[0].mxu0 %v3568
      %v3780 = vpop.f32.mrb[0].mxu0
      %v3781 = vadd.f32 0.0, %v3780
      %v3782 = vpop.f32.mrb[0].mxu0
      %v3783 = vpop.f32.mrb[0].mxu0
      %v3784 = vadd.f32 0.0, %v3783
      %v3785 = vpop.f32.mrb[0].mxu0
      %3786 = vmatprep.mubr.bf16.mxu0 0
      %3787 = vmatmul.mubr.bf16.gmra.mrb[0].mxu0 %v3569
      %v3788 = vpop.f32.mrb[0].mxu0
      %v3789 = vadd.f32 0.0, %v3788
      %v3790 = vpop.f32.mrb[0].mxu0
      %v3791 = vpop.f32.mrb[0].mxu0
      %v3792 = vadd.f32 0.0, %v3791
      %v3793 = vpop.f32.mrb[0].mxu0
      %3794 = vdwg.mxu0
      %v3795 = vadd.f32 %v3408, %v3669
      %v3796 = vadd.f32 %v3409, %v3672
      %v3797 = vadd.f32 %v3410, %v3677
      %v3798 = vadd.f32 %v3411, %v3680
      %v3799 = vadd.f32 %v3412, %v3685
      %v3800 = vadd.f32 %v3413, %v3688
      %v3801 = vadd.f32 %v3414, %v3693
      %v3802 = vadd.f32 %v3415, %v3696
      %v3803 = vadd.f32 %v3416, %v3701
      %v3804 = vadd.f32 %v3417, %v3704
      %v3805 = vadd.f32 %v3418, %v3709
      %v3806 = vadd.f32 %v3419, %v3712
      %v3807 = vadd.f32 %v3420, %v3717
      %v3808 = vadd.f32 %v3421, %v3720
      %v3809 = vadd.f32 %v3422, %v3725
      %v3810 = vadd.f32 %v3423, %v3728
      %v3811 = vadd.f32 %v3424, %v3733
      %v3812 = vadd.f32 %v3425, %v3736
      %v3813 = vadd.f32 %v3426, %v3741
      %v3814 = vadd.f32 %v3427, %v3744
      %v3815 = vadd.f32 %v3428, %v3749
      %v3816 = vadd.f32 %v3429, %v3752
      %v3817 = vadd.f32 %v3430, %v3757
      %v3818 = vadd.f32 %v3431, %v3760
      %v3819 = vadd.f32 %v3432, %v3765
      %v3820 = vadd.f32 %v3433, %v3768
      %v3821 = vadd.f32 %v3434, %v3773
      %v3822 = vadd.f32 %v3435, %v3776
      %v3823 = vadd.f32 %v3436, %v3781
      %v3824 = vadd.f32 %v3437, %v3784
      %v3825 = vadd.f32 %v3438, %v3789
      %v3826 = vadd.f32 %v3439, %v3792
      %v3827 = vld [vmem:[%s3440] sm:$0xf]
      %v3828 = vld [vmem:[%s3440 + $0x4] sm:$0xf]
      %v3829 = vld [vmem:[%s3440 + $0x8] sm:$0x1]
      %v3830 = vld [vmem:[%s3440 + $0xc] sm:$0xf]
      %v3831 = vld [vmem:[%s3440 + $0x10] sm:$0xf]
      %v3832 = vld [vmem:[%s3440 + $0x14] sm:$0x1]
      %v3833 = vld [vmem:[%s3440 + $0x18] sm:$0xf]
      %v3834 = vld [vmem:[%s3440 + $0x1c] sm:$0xf]
      %v3835 = vld [vmem:[%s3440 + $0x20] sm:$0x1]
      %v3836 = vld [vmem:[%s3440 + $0x24] sm:$0xf]
      %v3837 = vld [vmem:[%s3440 + $0x28] sm:$0xf]
      %v3838 = vld [vmem:[%s3440 + $0x2c] sm:$0x1]
      %v3839 = vld [vmem:[%s3440 + $0x30] sm:$0xf]
      %v3840 = vld [vmem:[%s3440 + $0x34] sm:$0xf]
      %v3841 = vld [vmem:[%s3440 + $0x38] sm:$0x1]
      %v3842 = vld [vmem:[%s3440 + $0x3c] sm:$0xf]
      %v3843 = vld [vmem:[%s3440 + $0x40] sm:$0xf]
      %v3844 = vld [vmem:[%s3440 + $0x44] sm:$0x1]
      %v3845 = vld [vmem:[%s3440 + $0x48] sm:$0xf]
      %v3846 = vld [vmem:[%s3440 + $0x4c] sm:$0xf]
      %v3847 = vld [vmem:[%s3440 + $0x50] sm:$0x1]
      %v3848 = vld [vmem:[%s3440 + $0x54] sm:$0xf]
      %v3849 = vld [vmem:[%s3440 + $0x58] sm:$0xf]
      %v3850 = vld [vmem:[%s3440 + $0x5c] sm:$0x1]
      %v3851 = vld [vmem:[%s3440 + $0x60] sm:$0xf]
      %v3852 = vld [vmem:[%s3440 + $0x64] sm:$0xf]
      %v3853 = vld [vmem:[%s3440 + $0x68] sm:$0x1]
      %v3854 = vld [vmem:[%s3440 + $0x6c] sm:$0xf]
      %v3855 = vld [vmem:[%s3440 + $0x70] sm:$0xf]
      %v3856 = vld [vmem:[%s3440 + $0x74] sm:$0x1]
      %v3857 = vld [vmem:[%s3440 + $0x78] sm:$0xf]
      %v3858 = vld [vmem:[%s3440 + $0x7c] sm:$0xf]
      %v3859 = vld [vmem:[%s3440 + $0x80] sm:$0x1]
      %v3860 = vld [vmem:[%s3440 + $0x84] sm:$0xf]
      %v3861 = vld [vmem:[%s3440 + $0x88] sm:$0xf]
      %v3862 = vld [vmem:[%s3440 + $0x8c] sm:$0x1]
      %v3863 = vld [vmem:[%s3440 + $0x90] sm:$0xf]
      %v3864 = vld [vmem:[%s3440 + $0x94] sm:$0xf]
      %v3865 = vld [vmem:[%s3440 + $0x98] sm:$0x1]
      %v3866 = vld [vmem:[%s3440 + $0x9c] sm:$0xf]
      %v3867 = vld [vmem:[%s3440 + $0xa0] sm:$0xf]
      %v3868 = vld [vmem:[%s3440 + $0xa4] sm:$0x1]
      %v3869 = vld [vmem:[%s3440 + $0xa8] sm:$0xf]
      %v3870 = vld [vmem:[%s3440 + $0xac] sm:$0xf]
      %v3871 = vld [vmem:[%s3440 + $0xb0] sm:$0x1]
      %v3872 = vld [vmem:[%s3440 + $0xb4] sm:$0xf]
      %v3873 = vld [vmem:[%s3440 + $0xb8] sm:$0xf]
      %v3874 = vld [vmem:[%s3440 + $0xbc] sm:$0x1]
      %v3876 = vshrl.u32 %v3827, 16
      %v3878 = vrot.slane %v3876, 4
      %v3879 = vshll.u32 %v3827, 16
      %v3881 = vrot.slane %v3879, 5
      %v3882 = vor.u32 %v3878, %v3881
      %v3883 = vrot.slane %v3882, 4
      %v3885 = vshll.u32 %v3828, 16
      %v3887 = vrot.slane %v3885, 5
      %v3888 = vsel %vm336, %v3883, %v3887
      %v3889 = vshrl.u32 %v3828, 16
      %v3891 = vrot.slane %v3889, 4
      %v3892 = vor.u32 %v3891, %v3887
      %v3893 = vrot.slane %v3892, 4
      %v3895 = vshll.u32 %v3829, 16
      %v3897 = vrot.slane %v3895, 5
      %v3898 = vsel %vm336, %v3893, %v3897
      %v3900 = vshrl.u32 %v3830, 16
      %v3902 = vrot.slane %v3900, 4
      %v3903 = vshll.u32 %v3830, 16
      %v3905 = vrot.slane %v3903, 5
      %v3906 = vor.u32 %v3902, %v3905
      %v3907 = vrot.slane %v3906, 4
      %v3909 = vshll.u32 %v3831, 16
      %v3911 = vrot.slane %v3909, 5
      %v3912 = vsel %vm336, %v3907, %v3911
      %v3913 = vshrl.u32 %v3831, 16
      %v3915 = vrot.slane %v3913, 4
      %v3916 = vor.u32 %v3915, %v3911
      %v3917 = vrot.slane %v3916, 4
      %v3919 = vshll.u32 %v3832, 16
      %v3921 = vrot.slane %v3919, 5
      %v3922 = vsel %vm336, %v3917, %v3921
      %v3924 = vshrl.u32 %v3833, 16
      %v3926 = vrot.slane %v3924, 4
      %v3927 = vshll.u32 %v3833, 16
      %v3929 = vrot.slane %v3927, 5
      %v3930 = vor.u32 %v3926, %v3929
      %v3931 = vrot.slane %v3930, 4
      %v3933 = vshll.u32 %v3834, 16
      %v3935 = vrot.slane %v3933, 5
      %v3936 = vsel %vm336, %v3931, %v3935
      %v3937 = vshrl.u32 %v3834, 16
      %v3939 = vrot.slane %v3937, 4
      %v3940 = vor.u32 %v3939, %v3935
      %v3941 = vrot.slane %v3940, 4
      %v3943 = vshll.u32 %v3835, 16
      %v3945 = vrot.slane %v3943, 5
      %v3946 = vsel %vm336, %v3941, %v3945
      %v3948 = vshrl.u32 %v3836, 16
      %v3950 = vrot.slane %v3948, 4
      %v3951 = vshll.u32 %v3836, 16
      %v3953 = vrot.slane %v3951, 5
      %v3954 = vor.u32 %v3950, %v3953
      %v3955 = vrot.slane %v3954, 4
      %v3957 = vshll.u32 %v3837, 16
      %v3959 = vrot.slane %v3957, 5
      %v3960 = vsel %vm336, %v3955, %v3959
      %v3961 = vshrl.u32 %v3837, 16
      %v3963 = vrot.slane %v3961, 4
      %v3964 = vor.u32 %v3963, %v3959
      %v3965 = vrot.slane %v3964, 4
      %v3967 = vshll.u32 %v3838, 16
      %v3969 = vrot.slane %v3967, 5
      %v3970 = vsel %vm336, %v3965, %v3969
      %v3972 = vshrl.u32 %v3839, 16
      %v3974 = vrot.slane %v3972, 4
      %v3975 = vshll.u32 %v3839, 16
      %v3977 = vrot.slane %v3975, 5
      %v3978 = vor.u32 %v3974, %v3977
      %v3979 = vrot.slane %v3978, 4
      %v3981 = vshll.u32 %v3840, 16
      %v3983 = vrot.slane %v3981, 5
      %v3984 = vsel %vm336, %v3979, %v3983
      %v3985 = vshrl.u32 %v3840, 16
      %v3987 = vrot.slane %v3985, 4
      %v3988 = vor.u32 %v3987, %v3983
      %v3989 = vrot.slane %v3988, 4
      %v3991 = vshll.u32 %v3841, 16
      %v3993 = vrot.slane %v3991, 5
      %v3994 = vsel %vm336, %v3989, %v3993
      %v3996 = vshrl.u32 %v3842, 16
      %v3998 = vrot.slane %v3996, 4
      %v3999 = vshll.u32 %v3842, 16
      %v4001 = vrot.slane %v3999, 5
      %v4002 = vor.u32 %v3998, %v4001
      %v4003 = vrot.slane %v4002, 4
      %v4005 = vshll.u32 %v3843, 16
      %v4007 = vrot.slane %v4005, 5
      %v4008 = vsel %vm336, %v4003, %v4007
      %v4009 = vshrl.u32 %v3843, 16
      %v4011 = vrot.slane %v4009, 4
      %v4012 = vor.u32 %v4011, %v4007
      %v4013 = vrot.slane %v4012, 4
      %v4015 = vshll.u32 %v3844, 16
      %v4017 = vrot.slane %v4015, 5
      %v4018 = vsel %vm336, %v4013, %v4017
      %v4020 = vshrl.u32 %v3845, 16
      %v4022 = vrot.slane %v4020, 4
      %v4023 = vshll.u32 %v3845, 16
      %v4025 = vrot.slane %v4023, 5
      %v4026 = vor.u32 %v4022, %v4025
      %v4027 = vrot.slane %v4026, 4
      %v4029 = vshll.u32 %v3846, 16
      %v4031 = vrot.slane %v4029, 5
      %v4032 = vsel %vm336, %v4027, %v4031
      %v4033 = vshrl.u32 %v3846, 16
      %v4035 = vrot.slane %v4033, 4
      %v4036 = vor.u32 %v4035, %v4031
      %v4037 = vrot.slane %v4036, 4
      %v4039 = vshll.u32 %v3847, 16
      %v4041 = vrot.slane %v4039, 5
      %v4042 = vsel %vm336, %v4037, %v4041
      %v4044 = vshrl.u32 %v3848, 16
      %v4046 = vrot.slane %v4044, 4
      %v4047 = vshll.u32 %v3848, 16
      %v4049 = vrot.slane %v4047, 5
      %v4050 = vor.u32 %v4046, %v4049
      %v4051 = vrot.slane %v4050, 4
      %v4053 = vshll.u32 %v3849, 16
      %v4055 = vrot.slane %v4053, 5
      %v4056 = vsel %vm336, %v4051, %v4055
      %v4057 = vshrl.u32 %v3849, 16
      %v4059 = vrot.slane %v4057, 4
      %v4060 = vor.u32 %v4059, %v4055
      %v4061 = vrot.slane %v4060, 4
      %v4063 = vshll.u32 %v3850, 16
      %v4065 = vrot.slane %v4063, 5
      %v4066 = vsel %vm336, %v4061, %v4065
      %v4068 = vshrl.u32 %v3851, 16
      %v4070 = vrot.slane %v4068, 4
      %v4071 = vshll.u32 %v3851, 16
      %v4073 = vrot.slane %v4071, 5
      %v4074 = vor.u32 %v4070, %v4073
      %v4075 = vrot.slane %v4074, 4
      %v4077 = vshll.u32 %v3852, 16
      %v4079 = vrot.slane %v4077, 5
      %v4080 = vsel %vm336, %v4075, %v4079
      %v4081 = vshrl.u32 %v3852, 16
      %v4083 = vrot.slane %v4081, 4
      %v4084 = vor.u32 %v4083, %v4079
      %v4085 = vrot.slane %v4084, 4
      %v4087 = vshll.u32 %v3853, 16
      %v4089 = vrot.slane %v4087, 5
      %v4090 = vsel %vm336, %v4085, %v4089
      %v4092 = vshrl.u32 %v3854, 16
      %v4094 = vrot.slane %v4092, 4
      %v4095 = vshll.u32 %v3854, 16
      %v4097 = vrot.slane %v4095, 5
      %v4098 = vor.u32 %v4094, %v4097
      %v4099 = vrot.slane %v4098, 4
      %v4101 = vshll.u32 %v3855, 16
      %v4103 = vrot.slane %v4101, 5
      %v4104 = vsel %vm336, %v4099, %v4103
      %v4105 = vshrl.u32 %v3855, 16
      %v4107 = vrot.slane %v4105, 4
      %v4108 = vor.u32 %v4107, %v4103
      %v4109 = vrot.slane %v4108, 4
      %v4111 = vshll.u32 %v3856, 16
      %v4113 = vrot.slane %v4111, 5
      %v4114 = vsel %vm336, %v4109, %v4113
      %v4116 = vshrl.u32 %v3857, 16
      %v4118 = vrot.slane %v4116, 4
      %v4119 = vshll.u32 %v3857, 16
      %v4121 = vrot.slane %v4119, 5
      %v4122 = vor.u32 %v4118, %v4121
      %v4123 = vrot.slane %v4122, 4
      %v4125 = vshll.u32 %v3858, 16
      %v4127 = vrot.slane %v4125, 5
      %v4128 = vsel %vm336, %v4123, %v4127
      %v4129 = vshrl.u32 %v3858, 16
      %v4131 = vrot.slane %v4129, 4
      %v4132 = vor.u32 %v4131, %v4127
      %v4133 = vrot.slane %v4132, 4
      %v4135 = vshll.u32 %v3859, 16
      %v4137 = vrot.slane %v4135, 5
      %v4138 = vsel %vm336, %v4133, %v4137
      %v4140 = vshrl.u32 %v3860, 16
      %v4142 = vrot.slane %v4140, 4
      %v4143 = vshll.u32 %v3860, 16
      %v4145 = vrot.slane %v4143, 5
      %v4146 = vor.u32 %v4142, %v4145
      %v4147 = vrot.slane %v4146, 4
      %v4149 = vshll.u32 %v3861, 16
      %v4151 = vrot.slane %v4149, 5
      %v4152 = vsel %vm336, %v4147, %v4151
      %v4153 = vshrl.u32 %v3861, 16
      %v4155 = vrot.slane %v4153, 4
      %v4156 = vor.u32 %v4155, %v4151
      %v4157 = vrot.slane %v4156, 4
      %v4159 = vshll.u32 %v3862, 16
      %v4161 = vrot.slane %v4159, 5
      %v4162 = vsel %vm336, %v4157, %v4161
      %v4164 = vshrl.u32 %v3863, 16
      %v4166 = vrot.slane %v4164, 4
      %v4167 = vshll.u32 %v3863, 16
      %v4169 = vrot.slane %v4167, 5
      %v4170 = vor.u32 %v4166, %v4169
      %v4171 = vrot.slane %v4170, 4
      %v4173 = vshll.u32 %v3864, 16
      %v4175 = vrot.slane %v4173, 5
      %v4176 = vsel %vm336, %v4171, %v4175
      %v4177 = vshrl.u32 %v3864, 16
      %v4179 = vrot.slane %v4177, 4
      %v4180 = vor.u32 %v4179, %v4175
      %v4181 = vrot.slane %v4180, 4
      %v4183 = vshll.u32 %v3865, 16
      %v4185 = vrot.slane %v4183, 5
      %v4186 = vsel %vm336, %v4181, %v4185
      %v4188 = vshrl.u32 %v3866, 16
      %v4190 = vrot.slane %v4188, 4
      %v4191 = vshll.u32 %v3866, 16
      %v4193 = vrot.slane %v4191, 5
      %v4194 = vor.u32 %v4190, %v4193
      %v4195 = vrot.slane %v4194, 4
      %v4197 = vshll.u32 %v3867, 16
      %v4199 = vrot.slane %v4197, 5
      %v4200 = vsel %vm336, %v4195, %v4199
      %v4201 = vshrl.u32 %v3867, 16
      %v4203 = vrot.slane %v4201, 4
      %v4204 = vor.u32 %v4203, %v4199
      %v4205 = vrot.slane %v4204, 4
      %v4207 = vshll.u32 %v3868, 16
      %v4209 = vrot.slane %v4207, 5
      %v4210 = vsel %vm336, %v4205, %v4209
      %v4212 = vshrl.u32 %v3869, 16
      %v4214 = vrot.slane %v4212, 4
      %v4215 = vshll.u32 %v3869, 16
      %v4217 = vrot.slane %v4215, 5
      %v4218 = vor.u32 %v4214, %v4217
      %v4219 = vrot.slane %v4218, 4
      %v4221 = vshll.u32 %v3870, 16
      %v4223 = vrot.slane %v4221, 5
      %v4224 = vsel %vm336, %v4219, %v4223
      %v4225 = vshrl.u32 %v3870, 16
      %v4227 = vrot.slane %v4225, 4
      %v4228 = vor.u32 %v4227, %v4223
      %v4229 = vrot.slane %v4228, 4
      %v4231 = vshll.u32 %v3871, 16
      %v4233 = vrot.slane %v4231, 5
      %v4234 = vsel %vm336, %v4229, %v4233
      %v4236 = vshrl.u32 %v3872, 16
      %v4238 = vrot.slane %v4236, 4
      %v4239 = vshll.u32 %v3872, 16
      %v4241 = vrot.slane %v4239, 5
      %v4242 = vor.u32 %v4238, %v4241
      %v4243 = vrot.slane %v4242, 4
      %v4245 = vshll.u32 %v3873, 16
      %v4247 = vrot.slane %v4245, 5
      %v4248 = vsel %vm336, %v4243, %v4247
      %v4249 = vshrl.u32 %v3873, 16
      %v4251 = vrot.slane %v4249, 4
      %v4252 = vor.u32 %v4251, %v4247
      %v4253 = vrot.slane %v4252, 4
      %v4255 = vshll.u32 %v3874, 16
      %v4257 = vrot.slane %v4255, 5
      %v4258 = vsel %vm336, %v4253, %v4257
      %s4259 = scalar_lea.vmem %s247, 448
      %v4260 = vld [vmem:[%s4259] sm:$0xf]
      %v4261 = vld [vmem:[%s4259 + $0x4] sm:$0xf]
      %v4262 = vld [vmem:[%s4259 + $0x8] sm:$0xf]
      %v4263 = vld [vmem:[%s4259 + $0xc] sm:$0xf]
      %v4264 = vld [vmem:[%s4259 + $0x10] sm:$0xf]
      %v4265 = vld [vmem:[%s4259 + $0x14] sm:$0xf]
      %v4266 = vld [vmem:[%s4259 + $0x18] sm:$0xf]
      %v4267 = vld [vmem:[%s4259 + $0x1c] sm:$0xf]
      %v4268 = vld [vmem:[%s4259 + $0x20] sm:$0xf]
      %v4269 = vld [vmem:[%s4259 + $0x24] sm:$0xf]
      %v4270 = vld [vmem:[%s4259 + $0x28] sm:$0xf]
      %v4271 = vld [vmem:[%s4259 + $0x2c] sm:$0xf]
      %v4272 = vld [vmem:[%s4259 + $0x30] sm:$0xf]
      %v4273 = vld [vmem:[%s4259 + $0x34] sm:$0xf]
      %v4274 = vld [vmem:[%s4259 + $0x38] sm:$0xf]
      %v4275 = vld [vmem:[%s4259 + $0x3c] sm:$0xf]
      %v4276 = vunpack.c.l.b16 %v3888
      %v4277 = vunpack.c.l.b16 %v3898
      %v4278 = vunpack.c.l.b16 %v3912
      %v4279 = vunpack.c.l.b16 %v3922
      %v4280 = vunpack.c.l.b16 %v3936
      %v4281 = vunpack.c.l.b16 %v3946
      %v4282 = vunpack.c.l.b16 %v3960
      %v4283 = vunpack.c.l.b16 %v3970
      %v4284 = vunpack.c.l.b16 %v3984
      %v4285 = vunpack.c.l.b16 %v3994
      %v4286 = vunpack.c.l.b16 %v4008
      %v4287 = vunpack.c.l.b16 %v4018
      %v4288 = vunpack.c.l.b16 %v4032
      %v4289 = vunpack.c.l.b16 %v4042
      %v4290 = vunpack.c.l.b16 %v4056
      %v4291 = vunpack.c.l.b16 %v4066
      %v4292 = vunpack.c.l.b16 %v4080
      %v4293 = vunpack.c.l.b16 %v4090
      %v4294 = vunpack.c.l.b16 %v4104
      %v4295 = vunpack.c.l.b16 %v4114
      %v4296 = vunpack.c.l.b16 %v4128
      %v4297 = vunpack.c.l.b16 %v4138
      %v4298 = vunpack.c.l.b16 %v4152
      %v4299 = vunpack.c.l.b16 %v4162
      %v4300 = vunpack.c.l.b16 %v4176
      %v4301 = vunpack.c.l.b16 %v4186
      %v4302 = vunpack.c.l.b16 %v4200
      %v4303 = vunpack.c.l.b16 %v4210
      %v4304 = vunpack.c.l.b16 %v4224
      %v4305 = vunpack.c.l.b16 %v4234
      %v4306 = vunpack.c.l.b16 %v4248
      %v4307 = vunpack.c.l.b16 %v4258
      %v4308 = vpack.c.b16 %v4277, %v4276
      %v4309 = vpack.c.b16 %v4279, %v4278
      %v4310 = vpack.c.b16 %v4281, %v4280
      %v4311 = vpack.c.b16 %v4283, %v4282
      %v4312 = vpack.c.b16 %v4285, %v4284
      %v4313 = vpack.c.b16 %v4287, %v4286
      %v4314 = vpack.c.b16 %v4289, %v4288
      %v4315 = vpack.c.b16 %v4291, %v4290
      %v4316 = vpack.c.b16 %v4293, %v4292
      %v4317 = vpack.c.b16 %v4295, %v4294
      %v4318 = vpack.c.b16 %v4297, %v4296
      %v4319 = vpack.c.b16 %v4299, %v4298
      %v4320 = vpack.c.b16 %v4301, %v4300
      %v4321 = vpack.c.b16 %v4303, %v4302
      %v4322 = vpack.c.b16 %v4305, %v4304
      %v4323 = vpack.c.b16 %v4307, %v4306
      %v4356 = vunpack.c.l.b16 %v4260
      %v4357 = vunpack.c.l.b16 %v4261
      %v4358 = vunpack.c.l.b16 %v4262
      %v4359 = vunpack.c.l.b16 %v4263
      %v4360 = vunpack.c.l.b16 %v4264
      %v4361 = vunpack.c.l.b16 %v4265
      %v4362 = vunpack.c.l.b16 %v4266
      %v4363 = vunpack.c.l.b16 %v4267
      %v4364 = vunpack.c.l.b16 %v4268
      %v4365 = vunpack.c.l.b16 %v4269
      %v4366 = vunpack.c.l.b16 %v4270
      %v4367 = vunpack.c.l.b16 %v4271
      %v4368 = vunpack.c.l.b16 %v4272
      %v4369 = vunpack.c.l.b16 %v4273
      %v4370 = vunpack.c.l.b16 %v4274
      %v4371 = vunpack.c.l.b16 %v4275
      %v4372 = vpack.c.b16 %v4357, %v4356
      %v4373 = vpack.c.b16 %v4359, %v4358
      %v4374 = vpack.c.b16 %v4361, %v4360
      %v4375 = vpack.c.b16 %v4363, %v4362
      %v4376 = vpack.c.b16 %v4365, %v4364
      %v4377 = vpack.c.b16 %v4367, %v4366
      %v4378 = vpack.c.b16 %v4369, %v4368
      %v4379 = vpack.c.b16 %v4371, %v4370
      %4388 = vmatprep.subr.bf16.mxu0 0
      %4389 = vmatpush1.bf16.msra.mxu0 %v4372
      %4390 = vmatprep.subr.bf16.mxu0 0
      %4391 = vmatpush1.bf16.msra.mxu0 %v4373
      %4392 = vmatprep.subr.bf16.mxu0 0
      %4393 = vmatpush1.bf16.msra.mxu0 %v4374
      %4394 = vmatprep.subr.bf16.mxu0 0
      %4395 = vmatpush1.bf16.msra.mxu0 %v4375
      %4396 = vmatprep.subr.bf16.mxu0 0
      %4397 = vmatpush1.bf16.msra.mxu0 %v4376
      %4398 = vmatprep.subr.bf16.mxu0 0
      %4399 = vmatpush1.bf16.msra.mxu0 %v4377
      %4400 = vmatprep.subr.bf16.mxu0 0
      %4401 = vmatpush1.bf16.msra.mxu0 %v4378
      %4402 = vmatprep.subr.bf16.mxu0 0
      %4403 = vmatpush1.bf16.msra.mxu0 %v4379
      %4404 = vmatprep.subr.bf16.mxu0 0
      %4405 = vmatpush1.bf16.msra.mxu0 0
      %4406 = vmatprep.subr.bf16.mxu0 0
      %4407 = vmatpush1.bf16.msra.mxu0 0
      %4408 = vmatprep.subr.bf16.mxu0 0
      %4409 = vmatpush1.bf16.msra.mxu0 0
      %4410 = vmatprep.subr.bf16.mxu0 0
      %4411 = vmatpush1.bf16.msra.mxu0 0
      %4412 = vmatprep.subr.bf16.mxu0 0
      %4413 = vmatpush1.bf16.msra.mxu0 0
      %4414 = vmatprep.subr.bf16.mxu0 0
      %4415 = vmatpush1.bf16.msra.mxu0 0
      %4416 = vmatprep.subr.bf16.mxu0 0
      %4417 = vmatpush1.bf16.msra.mxu0 0
      %4418 = vmatprep.subr.bf16.mxu0 0
      %4419 = vmatpush1.bf16.msra.mxu0 0
      %4420 = vmatprep.mubr.bf16.mxu0 0
      %4421 = vmatmul.mubr.bf16.gmra.mrb[0].mxu0 %v4308
      %v4422 = vpop.f32.mrb[0].mxu0
      %v4423 = vadd.f32 0.0, %v4422
      %v4424 = vpop.f32.mrb[0].mxu0
      %v4425 = vpop.f32.mrb[0].mxu0
      %v4426 = vadd.f32 0.0, %v4425
      %v4427 = vpop.f32.mrb[0].mxu0
      %4428 = vmatprep.mubr.bf16.mxu0 0
      %4429 = vmatmul.mubr.bf16.gmra.mrb[0].mxu0 %v4309
      %v4430 = vpop.f32.mrb[0].mxu0
      %v4431 = vadd.f32 0.0, %v4430
      %v4432 = vpop.f32.mrb[0].mxu0
      %v4433 = vpop.f32.mrb[0].mxu0
      %v4434 = vadd.f32 0.0, %v4433
      %v4435 = vpop.f32.mrb[0].mxu0
      %4436 = vmatprep.mubr.bf16.mxu0 0
      %4437 = vmatmul.mubr.bf16.gmra.mrb[0].mxu0 %v4310
      %v4438 = vpop.f32.mrb[0].mxu0
      %v4439 = vadd.f32 0.0, %v4438
      %v4440 = vpop.f32.mrb[0].mxu0
      %v4441 = vpop.f32.mrb[0].mxu0
      %v4442 = vadd.f32 0.0, %v4441
      %v4443 = vpop.f32.mrb[0].mxu0
      %4444 = vmatprep.mubr.bf16.mxu0 0
      %4445 = vmatmul.mubr.bf16.gmra.mrb[0].mxu0 %v4311
      %v4446 = vpop.f32.mrb[0].mxu0
      %v4447 = vadd.f32 0.0, %v4446
      %v4448 = vpop.f32.mrb[0].mxu0
      %v4449 = vpop.f32.mrb[0].mxu0
      %v4450 = vadd.f32 0.0, %v4449
      %v4451 = vpop.f32.mrb[0].mxu0
      %4452 = vmatprep.mubr.bf16.mxu0 0
      %4453 = vmatmul.mubr.bf16.gmra.mrb[0].mxu0 %v4312
      %v4454 = vpop.f32.mrb[0].mxu0
      %v4455 = vadd.f32 0.0, %v4454
      %v4456 = vpop.f32.mrb[0].mxu0
      %v4457 = vpop.f32.mrb[0].mxu0
      %v4458 = vadd.f32 0.0, %v4457
      %v4459 = vpop.f32.mrb[0].mxu0
      %4460 = vmatprep.mubr.bf16.mxu0 0
      %4461 = vmatmul.mubr.bf16.gmra.mrb[0].mxu0 %v4313
      %v4462 = vpop.f32.mrb[0].mxu0
      %v4463 = vadd.f32 0.0, %v4462
      %v4464 = vpop.f32.mrb[0].mxu0
      %v4465 = vpop.f32.mrb[0].mxu0
      %v4466 = vadd.f32 0.0, %v4465
      %v4467 = vpop.f32.mrb[0].mxu0
      %4468 = vmatprep.mubr.bf16.mxu0 0
      %4469 = vmatmul.mubr.bf16.gmra.mrb[0].mxu0 %v4314
      %v4470 = vpop.f32.mrb[0].mxu0
      %v4471 = vadd.f32 0.0, %v4470
      %v4472 = vpop.f32.mrb[0].mxu0
      %v4473 = vpop.f32.mrb[0].mxu0
      %v4474 = vadd.f32 0.0, %v4473
      %v4475 = vpop.f32.mrb[0].mxu0
      %4476 = vmatprep.mubr.bf16.mxu0 0
      %4477 = vmatmul.mubr.bf16.gmra.mrb[0].mxu0 %v4315
      %v4478 = vpop.f32.mrb[0].mxu0
      %v4479 = vadd.f32 0.0, %v4478
      %v4480 = vpop.f32.mrb[0].mxu0
      %v4481 = vpop.f32.mrb[0].mxu0
      %v4482 = vadd.f32 0.0, %v4481
      %v4483 = vpop.f32.mrb[0].mxu0
      %4484 = vmatprep.mubr.bf16.mxu0 0
      %4485 = vmatmul.mubr.bf16.gmra.mrb[0].mxu0 %v4316
      %v4486 = vpop.f32.mrb[0].mxu0
      %v4487 = vadd.f32 0.0, %v4486
      %v4488 = vpop.f32.mrb[0].mxu0
      %v4489 = vpop.f32.mrb[0].mxu0
      %v4490 = vadd.f32 0.0, %v4489
      %v4491 = vpop.f32.mrb[0].mxu0
      %4492 = vmatprep.mubr.bf16.mxu0 0
      %4493 = vmatmul.mubr.bf16.gmra.mrb[0].mxu0 %v4317
      %v4494 = vpop.f32.mrb[0].mxu0
      %v4495 = vadd.f32 0.0, %v4494
      %v4496 = vpop.f32.mrb[0].mxu0
      %v4497 = vpop.f32.mrb[0].mxu0
      %v4498 = vadd.f32 0.0, %v4497
      %v4499 = vpop.f32.mrb[0].mxu0
      %4500 = vmatprep.mubr.bf16.mxu0 0
      %4501 = vmatmul.mubr.bf16.gmra.mrb[0].mxu0 %v4318
      %v4502 = vpop.f32.mrb[0].mxu0
      %v4503 = vadd.f32 0.0, %v4502
      %v4504 = vpop.f32.mrb[0].mxu0
      %v4505 = vpop.f32.mrb[0].mxu0
      %v4506 = vadd.f32 0.0, %v4505
      %v4507 = vpop.f32.mrb[0].mxu0
      %4508 = vmatprep.mubr.bf16.mxu0 0
      %4509 = vmatmul.mubr.bf16.gmra.mrb[0].mxu0 %v4319
      %v4510 = vpop.f32.mrb[0].mxu0
      %v4511 = vadd.f32 0.0, %v4510
      %v4512 = vpop.f32.mrb[0].mxu0
      %v4513 = vpop.f32.mrb[0].mxu0
      %v4514 = vadd.f32 0.0, %v4513
      %v4515 = vpop.f32.mrb[0].mxu0
      %4516 = vmatprep.mubr.bf16.mxu0 0
      %4517 = vmatmul.mubr.bf16.gmra.mrb[0].mxu0 %v4320
      %v4518 = vpop.f32.mrb[0].mxu0
      %v4519 = vadd.f32 0.0, %v4518
      %v4520 = vpop.f32.mrb[0].mxu0
      %v4521 = vpop.f32.mrb[0].mxu0
      %v4522 = vadd.f32 0.0, %v4521
      %v4523 = vpop.f32.mrb[0].mxu0
      %4524 = vmatprep.mubr.bf16.mxu0 0
      %4525 = vmatmul.mubr.bf16.gmra.mrb[0].mxu0 %v4321
      %v4526 = vpop.f32.mrb[0].mxu0
      %v4527 = vadd.f32 0.0, %v4526
      %v4528 = vpop.f32.mrb[0].mxu0
      %v4529 = vpop.f32.mrb[0].mxu0
      %v4530 = vadd.f32 0.0, %v4529
      %v4531 = vpop.f32.mrb[0].mxu0
      %4532 = vmatprep.mubr.bf16.mxu0 0
      %4533 = vmatmul.mubr.bf16.gmra.mrb[0].mxu0 %v4322
      %v4534 = vpop.f32.mrb[0].mxu0
      %v4535 = vadd.f32 0.0, %v4534
      %v4536 = vpop.f32.mrb[0].mxu0
      %v4537 = vpop.f32.mrb[0].mxu0
      %v4538 = vadd.f32 0.0, %v4537
      %v4539 = vpop.f32.mrb[0].mxu0
      %4540 = vmatprep.mubr.bf16.mxu0 0
      %4541 = vmatmul.mubr.bf16.gmra.mrb[0].mxu0 %v4323
      %v4542 = vpop.f32.mrb[0].mxu0
      %v4543 = vadd.f32 0.0, %v4542
      %v4544 = vpop.f32.mrb[0].mxu0
      %v4545 = vpop.f32.mrb[0].mxu0
      %v4546 = vadd.f32 0.0, %v4545
      %v4547 = vpop.f32.mrb[0].mxu0
      %4548 = vdwg.mxu0
      %v4549 = vadd.f32 %v3795, %v4423
      %v4550 = vadd.f32 %v3796, %v4426
      %v4551 = vadd.f32 %v3797, %v4431
      %v4552 = vadd.f32 %v3798, %v4434
      %v4553 = vadd.f32 %v3799, %v4439
      %v4554 = vadd.f32 %v3800, %v4442
      %v4555 = vadd.f32 %v3801, %v4447
      %v4556 = vadd.f32 %v3802, %v4450
      %v4557 = vadd.f32 %v3803, %v4455
      %v4558 = vadd.f32 %v3804, %v4458
      %v4559 = vadd.f32 %v3805, %v4463
      %v4560 = vadd.f32 %v3806, %v4466
      %v4561 = vadd.f32 %v3807, %v4471
      %v4562 = vadd.f32 %v3808, %v4474
      %v4563 = vadd.f32 %v3809, %v4479
      %v4564 = vadd.f32 %v3810, %v4482
      %v4565 = vadd.f32 %v3811, %v4487
      %v4566 = vadd.f32 %v3812, %v4490
      %v4567 = vadd.f32 %v3813, %v4495
      %v4568 = vadd.f32 %v3814, %v4498
      %v4569 = vadd.f32 %v3815, %v4503
      %v4570 = vadd.f32 %v3816, %v4506
      %v4571 = vadd.f32 %v3817, %v4511
      %v4572 = vadd.f32 %v3818, %v4514
      %v4573 = vadd.f32 %v3819, %v4519
      %v4574 = vadd.f32 %v3820, %v4522
      %v4575 = vadd.f32 %v3821, %v4527
      %v4576 = vadd.f32 %v3822, %v4530
      %v4577 = vadd.f32 %v3823, %v4535
      %v4578 = vadd.f32 %v3824, %v4538
      %v4579 = vadd.f32 %v3825, %v4543
      %v4580 = vadd.f32 %v3826, %v4546
      %v4581 = vld [vmem:[%s3440] sm:$0xe]
      %v4582 = vld [vmem:[%s3440 + $0xc] sm:$0xe]
      %v4583 = vld [vmem:[%s3440 + $0x18] sm:$0xe]
      %v4584 = vld [vmem:[%s3440 + $0x24] sm:$0xe]
      %v4585 = vld [vmem:[%s3440 + $0x30] sm:$0xe]
      %v4586 = vld [vmem:[%s3440 + $0x3c] sm:$0xe]
      %v4587 = vld [vmem:[%s3440 + $0x48] sm:$0xe]
      %v4588 = vld [vmem:[%s3440 + $0x54] sm:$0xe]
      %v4589 = vld [vmem:[%s3440 + $0x60] sm:$0xe]
      %v4590 = vld [vmem:[%s3440 + $0x6c] sm:$0xe]
      %v4591 = vld [vmem:[%s3440 + $0x78] sm:$0xe]
      %v4592 = vld [vmem:[%s3440 + $0x84] sm:$0xe]
      %v4593 = vld [vmem:[%s3440 + $0x90] sm:$0xe]
      %v4594 = vld [vmem:[%s3440 + $0x9c] sm:$0xe]
      %v4595 = vld [vmem:[%s3440 + $0xa8] sm:$0xe]
      %v4596 = vld [vmem:[%s3440 + $0xb4] sm:$0xe]
      %v4645 = vrot.slane %v4581, 5
      %v4646 = vrot.slane %v4645, 4
      %v4647 = vrot.slane %v3828, 5
      %v4648 = vsel %vm1366, %v4646, %v4647
      %v4649 = vrot.slane %v4647, 4
      %v4650 = vrot.slane %v3829, 5
      %v4651 = vsel %vm1366, %v4649, %v4650
      %v4652 = vrot.slane %v4582, 5
      %v4653 = vrot.slane %v4652, 4
      %v4654 = vrot.slane %v3831, 5
      %v4655 = vsel %vm1366, %v4653, %v4654
      %v4656 = vrot.slane %v4654, 4
      %v4657 = vrot.slane %v3832, 5
      %v4658 = vsel %vm1366, %v4656, %v4657
      %v4659 = vrot.slane %v4583, 5
      %v4660 = vrot.slane %v4659, 4
      %v4661 = vrot.slane %v3834, 5
      %v4662 = vsel %vm1366, %v4660, %v4661
      %v4663 = vrot.slane %v4661, 4
      %v4664 = vrot.slane %v3835, 5
      %v4665 = vsel %vm1366, %v4663, %v4664
      %v4666 = vrot.slane %v4584, 5
      %v4667 = vrot.slane %v4666, 4
      %v4668 = vrot.slane %v3837, 5
      %v4669 = vsel %vm1366, %v4667, %v4668
      %v4670 = vrot.slane %v4668, 4
      %v4671 = vrot.slane %v3838, 5
      %v4672 = vsel %vm1366, %v4670, %v4671
      %v4673 = vrot.slane %v4585, 5
      %v4674 = vrot.slane %v4673, 4
      %v4675 = vrot.slane %v3840, 5
      %v4676 = vsel %vm1366, %v4674, %v4675
      %v4677 = vrot.slane %v4675, 4
      %v4678 = vrot.slane %v3841, 5
      %v4679 = vsel %vm1366, %v4677, %v4678
      %v4680 = vrot.slane %v4586, 5
      %v4681 = vrot.slane %v4680, 4
      %v4682 = vrot.slane %v3843, 5
      %v4683 = vsel %vm1366, %v4681, %v4682
      %v4684 = vrot.slane %v4682, 4
      %v4685 = vrot.slane %v3844, 5
      %v4686 = vsel %vm1366, %v4684, %v4685
      %v4687 = vrot.slane %v4587, 5
      %v4688 = vrot.slane %v4687, 4
      %v4689 = vrot.slane %v3846, 5
      %v4690 = vsel %vm1366, %v4688, %v4689
      %v4691 = vrot.slane %v4689, 4
      %v4692 = vrot.slane %v3847, 5
      %v4693 = vsel %vm1366, %v4691, %v4692
      %v4694 = vrot.slane %v4588, 5
      %v4695 = vrot.slane %v4694, 4
      %v4696 = vrot.slane %v3849, 5
      %v4697 = vsel %vm1366, %v4695, %v4696
      %v4698 = vrot.slane %v4696, 4
      %v4699 = vrot.slane %v3850, 5
      %v4700 = vsel %vm1366, %v4698, %v4699
      %v4701 = vrot.slane %v4589, 5
      %v4702 = vrot.slane %v4701, 4
      %v4703 = vrot.slane %v3852, 5
      %v4704 = vsel %vm1366, %v4702, %v4703
      %v4705 = vrot.slane %v4703, 4
      %v4706 = vrot.slane %v3853, 5
      %v4707 = vsel %vm1366, %v4705, %v4706
      %v4708 = vrot.slane %v4590, 5
      %v4709 = vrot.slane %v4708, 4
      %v4710 = vrot.slane %v3855, 5
      %v4711 = vsel %vm1366, %v4709, %v4710
      %v4712 = vrot.slane %v4710, 4
      %v4713 = vrot.slane %v3856, 5
      %v4714 = vsel %vm1366, %v4712, %v4713
      %v4715 = vrot.slane %v4591, 5
      %v4716 = vrot.slane %v4715, 4
      %v4717 = vrot.slane %v3858, 5
      %v4718 = vsel %vm1366, %v4716, %v4717
      %v4719 = vrot.slane %v4717, 4
      %v4720 = vrot.slane %v3859, 5
      %v4721 = vsel %vm1366, %v4719, %v4720
      %v4722 = vrot.slane %v4592, 5
      %v4723 = vrot.slane %v4722, 4
      %v4724 = vrot.slane %v3861, 5
      %v4725 = vsel %vm1366, %v4723, %v4724
      %v4726 = vrot.slane %v4724, 4
      %v4727 = vrot.slane %v3862, 5
      %v4728 = vsel %vm1366, %v4726, %v4727
      %v4729 = vrot.slane %v4593, 5
      %v4730 = vrot.slane %v4729, 4
      %v4731 = vrot.slane %v3864, 5
      %v4732 = vsel %vm1366, %v4730, %v4731
      %v4733 = vrot.slane %v4731, 4
      %v4734 = vrot.slane %v3865, 5
      %v4735 = vsel %vm1366, %v4733, %v4734
      %v4736 = vrot.slane %v4594, 5
      %v4737 = vrot.slane %v4736, 4
      %v4738 = vrot.slane %v3867, 5
      %v4739 = vsel %vm1366, %v4737, %v4738
      %v4740 = vrot.slane %v4738, 4
      %v4741 = vrot.slane %v3868, 5
      %v4742 = vsel %vm1366, %v4740, %v4741
      %v4743 = vrot.slane %v4595, 5
      %v4744 = vrot.slane %v4743, 4
      %v4745 = vrot.slane %v3870, 5
      %v4746 = vsel %vm1366, %v4744, %v4745
      %v4747 = vrot.slane %v4745, 4
      %v4748 = vrot.slane %v3871, 5
      %v4749 = vsel %vm1366, %v4747, %v4748
      %v4750 = vrot.slane %v4596, 5
      %v4751 = vrot.slane %v4750, 4
      %v4752 = vrot.slane %v3873, 5
      %v4753 = vsel %vm1366, %v4751, %v4752
      %v4754 = vrot.slane %v4752, 4
      %v4755 = vrot.slane %v3874, 5
      %v4756 = vsel %vm1366, %v4754, %v4755
      %s4757 = scalar_lea.vmem %s247, 512
      %v4758 = vld [vmem:[%s4757] sm:$0xf]
      %v4759 = vld [vmem:[%s4757 + $0x4] sm:$0xf]
      %v4760 = vld [vmem:[%s4757 + $0x8] sm:$0xf]
      %v4761 = vld [vmem:[%s4757 + $0xc] sm:$0xf]
      %v4762 = vld [vmem:[%s4757 + $0x10] sm:$0xf]
      %v4763 = vld [vmem:[%s4757 + $0x14] sm:$0xf]
      %v4764 = vld [vmem:[%s4757 + $0x18] sm:$0xf]
      %v4765 = vld [vmem:[%s4757 + $0x1c] sm:$0xf]
      %v4766 = vld [vmem:[%s4757 + $0x20] sm:$0xf]
      %v4767 = vld [vmem:[%s4757 + $0x24] sm:$0xf]
      %v4768 = vld [vmem:[%s4757 + $0x28] sm:$0xf]
      %v4769 = vld [vmem:[%s4757 + $0x2c] sm:$0xf]
      %v4770 = vld [vmem:[%s4757 + $0x30] sm:$0xf]
      %v4771 = vld [vmem:[%s4757 + $0x34] sm:$0xf]
      %v4772 = vld [vmem:[%s4757 + $0x38] sm:$0xf]
      %v4773 = vld [vmem:[%s4757 + $0x3c] sm:$0xf]
      %v4774 = vunpack.c.l.b16 %v4648
      %v4775 = vunpack.c.l.b16 %v4651
      %v4776 = vunpack.c.l.b16 %v4655
      %v4777 = vunpack.c.l.b16 %v4658
      %v4778 = vunpack.c.l.b16 %v4662
      %v4779 = vunpack.c.l.b16 %v4665
      %v4780 = vunpack.c.l.b16 %v4669
      %v4781 = vunpack.c.l.b16 %v4672
      %v4782 = vunpack.c.l.b16 %v4676
      %v4783 = vunpack.c.l.b16 %v4679
      %v4784 = vunpack.c.l.b16 %v4683
      %v4785 = vunpack.c.l.b16 %v4686
      %v4786 = vunpack.c.l.b16 %v4690
      %v4787 = vunpack.c.l.b16 %v4693
      %v4788 = vunpack.c.l.b16 %v4697
      %v4789 = vunpack.c.l.b16 %v4700
      %v4790 = vunpack.c.l.b16 %v4704
      %v4791 = vunpack.c.l.b16 %v4707
      %v4792 = vunpack.c.l.b16 %v4711
      %v4793 = vunpack.c.l.b16 %v4714
      %v4794 = vunpack.c.l.b16 %v4718
      %v4795 = vunpack.c.l.b16 %v4721
      %v4796 = vunpack.c.l.b16 %v4725
      %v4797 = vunpack.c.l.b16 %v4728
      %v4798 = vunpack.c.l.b16 %v4732
      %v4799 = vunpack.c.l.b16 %v4735
      %v4800 = vunpack.c.l.b16 %v4739
      %v4801 = vunpack.c.l.b16 %v4742
      %v4802 = vunpack.c.l.b16 %v4746
      %v4803 = vunpack.c.l.b16 %v4749
      %v4804 = vunpack.c.l.b16 %v4753
      %v4805 = vunpack.c.l.b16 %v4756
      %v4806 = vpack.c.b16 %v4775, %v4774
      %v4807 = vpack.c.b16 %v4777, %v4776
      %v4808 = vpack.c.b16 %v4779, %v4778
      %v4809 = vpack.c.b16 %v4781, %v4780
      %v4810 = vpack.c.b16 %v4783, %v4782
      %v4811 = vpack.c.b16 %v4785, %v4784
      %v4812 = vpack.c.b16 %v4787, %v4786
      %v4813 = vpack.c.b16 %v4789, %v4788
      %v4814 = vpack.c.b16 %v4791, %v4790
      %v4815 = vpack.c.b16 %v4793, %v4792
      %v4816 = vpack.c.b16 %v4795, %v4794
      %v4817 = vpack.c.b16 %v4797, %v4796
      %v4818 = vpack.c.b16 %v4799, %v4798
      %v4819 = vpack.c.b16 %v4801, %v4800
      %v4820 = vpack.c.b16 %v4803, %v4802
      %v4821 = vpack.c.b16 %v4805, %v4804
      %v4854 = vunpack.c.l.b16 %v4758
      %v4855 = vunpack.c.l.b16 %v4759
      %v4856 = vunpack.c.l.b16 %v4760
      %v4857 = vunpack.c.l.b16 %v4761
      %v4858 = vunpack.c.l.b16 %v4762
      %v4859 = vunpack.c.l.b16 %v4763
      %v4860 = vunpack.c.l.b16 %v4764
      %v4861 = vunpack.c.l.b16 %v4765
      %v4862 = vunpack.c.l.b16 %v4766
      %v4863 = vunpack.c.l.b16 %v4767
      %v4864 = vunpack.c.l.b16 %v4768
      %v4865 = vunpack.c.l.b16 %v4769
      %v4866 = vunpack.c.l.b16 %v4770
      %v4867 = vunpack.c.l.b16 %v4771
      %v4868 = vunpack.c.l.b16 %v4772
      %v4869 = vunpack.c.l.b16 %v4773
      %v4870 = vpack.c.b16 %v4855, %v4854
      %v4871 = vpack.c.b16 %v4857, %v4856
      %v4872 = vpack.c.b16 %v4859, %v4858
      %v4873 = vpack.c.b16 %v4861, %v4860
      %v4874 = vpack.c.b16 %v4863, %v4862
      %v4875 = vpack.c.b16 %v4865, %v4864
      %v4876 = vpack.c.b16 %v4867, %v4866
      %v4877 = vpack.c.b16 %v4869, %v4868
      %4886 = vmatprep.subr.bf16.mxu0 0
      %4887 = vmatpush1.bf16.msra.mxu0 %v4870
      %4888 = vmatprep.subr.bf16.mxu0 0
      %4889 = vmatpush1.bf16.msra.mxu0 %v4871
      %4890 = vmatprep.subr.bf16.mxu0 0
      %4891 = vmatpush1.bf16.msra.mxu0 %v4872
      %4892 = vmatprep.subr.bf16.mxu0 0
      %4893 = vmatpush1.bf16.msra.mxu0 %v4873
      %4894 = vmatprep.subr.bf16.mxu0 0
      %4895 = vmatpush1.bf16.msra.mxu0 %v4874
      %4896 = vmatprep.subr.bf16.mxu0 0
      %4897 = vmatpush1.bf16.msra.mxu0 %v4875
      %4898 = vmatprep.subr.bf16.mxu0 0
      %4899 = vmatpush1.bf16.msra.mxu0 %v4876
      %4900 = vmatprep.subr.bf16.mxu0 0
      %4901 = vmatpush1.bf16.msra.mxu0 %v4877
      %4902 = vmatprep.subr.bf16.mxu0 0
      %4903 = vmatpush1.bf16.msra.mxu0 0
      %4904 = vmatprep.subr.bf16.mxu0 0
      %4905 = vmatpush1.bf16.msra.mxu0 0
      %4906 = vmatprep.subr.bf16.mxu0 0
      %4907 = vmatpush1.bf16.msra.mxu0 0
      %4908 = vmatprep.subr.bf16.mxu0 0
      %4909 = vmatpush1.bf16.msra.mxu0 0
      %4910 = vmatprep.subr.bf16.mxu0 0
      %4911 = vmatpush1.bf16.msra.mxu0 0
      %4912 = vmatprep.subr.bf16.mxu0 0
      %4913 = vmatpush1.bf16.msra.mxu0 0
      %4914 = vmatprep.subr.bf16.mxu0 0
      %4915 = vmatpush1.bf16.msra.mxu0 0
      %4916 = vmatprep.subr.bf16.mxu0 0
      %4917 = vmatpush1.bf16.msra.mxu0 0
      %4918 = vmatprep.mubr.bf16.mxu0 0
      %4919 = vmatmul.mubr.bf16.gmra.mrb[0].mxu0 %v4806
      %v4920 = vpop.f32.mrb[0].mxu0
      %v4921 = vadd.f32 0.0, %v4920
      %v4922 = vpop.f32.mrb[0].mxu0
      %v4923 = vpop.f32.mrb[0].mxu0
      %v4924 = vadd.f32 0.0, %v4923
      %v4925 = vpop.f32.mrb[0].mxu0
      %4926 = vmatprep.mubr.bf16.mxu0 0
      %4927 = vmatmul.mubr.bf16.gmra.mrb[0].mxu0 %v4807
      %v4928 = vpop.f32.mrb[0].mxu0
      %v4929 = vadd.f32 0.0, %v4928
      %v4930 = vpop.f32.mrb[0].mxu0
      %v4931 = vpop.f32.mrb[0].mxu0
      %v4932 = vadd.f32 0.0, %v4931
      %v4933 = vpop.f32.mrb[0].mxu0
      %4934 = vmatprep.mubr.bf16.mxu0 0
      %4935 = vmatmul.mubr.bf16.gmra.mrb[0].mxu0 %v4808
      %v4936 = vpop.f32.mrb[0].mxu0
      %v4937 = vadd.f32 0.0, %v4936
      %v4938 = vpop.f32.mrb[0].mxu0
      %v4939 = vpop.f32.mrb[0].mxu0
      %v4940 = vadd.f32 0.0, %v4939
      %v4941 = vpop.f32.mrb[0].mxu0
      %4942 = vmatprep.mubr.bf16.mxu0 0
      %4943 = vmatmul.mubr.bf16.gmra.mrb[0].mxu0 %v4809
      %v4944 = vpop.f32.mrb[0].mxu0
      %v4945 = vadd.f32 0.0, %v4944
      %v4946 = vpop.f32.mrb[0].mxu0
      %v4947 = vpop.f32.mrb[0].mxu0
      %v4948 = vadd.f32 0.0, %v4947
      %v4949 = vpop.f32.mrb[0].mxu0
      %4950 = vmatprep.mubr.bf16.mxu0 0
      %4951 = vmatmul.mubr.bf16.gmra.mrb[0].mxu0 %v4810
      %v4952 = vpop.f32.mrb[0].mxu0
      %v4953 = vadd.f32 0.0, %v4952
      %v4954 = vpop.f32.mrb[0].mxu0
      %v4955 = vpop.f32.mrb[0].mxu0
      %v4956 = vadd.f32 0.0, %v4955
      %v4957 = vpop.f32.mrb[0].mxu0
      %4958 = vmatprep.mubr.bf16.mxu0 0
      %4959 = vmatmul.mubr.bf16.gmra.mrb[0].mxu0 %v4811
      %v4960 = vpop.f32.mrb[0].mxu0
      %v4961 = vadd.f32 0.0, %v4960
      %v4962 = vpop.f32.mrb[0].mxu0
      %v4963 = vpop.f32.mrb[0].mxu0
      %v4964 = vadd.f32 0.0, %v4963
      %v4965 = vpop.f32.mrb[0].mxu0
      %4966 = vmatprep.mubr.bf16.mxu0 0
      %4967 = vmatmul.mubr.bf16.gmra.mrb[0].mxu0 %v4812
      %v4968 = vpop.f32.mrb[0].mxu0
      %v4969 = vadd.f32 0.0, %v4968
      %v4970 = vpop.f32.mrb[0].mxu0
      %v4971 = vpop.f32.mrb[0].mxu0
      %v4972 = vadd.f32 0.0, %v4971
      %v4973 = vpop.f32.mrb[0].mxu0
      %4974 = vmatprep.mubr.bf16.mxu0 0
      %4975 = vmatmul.mubr.bf16.gmra.mrb[0].mxu0 %v4813
      %v4976 = vpop.f32.mrb[0].mxu0
      %v4977 = vadd.f32 0.0, %v4976
      %v4978 = vpop.f32.mrb[0].mxu0
      %v4979 = vpop.f32.mrb[0].mxu0
      %v4980 = vadd.f32 0.0, %v4979
      %v4981 = vpop.f32.mrb[0].mxu0
      %4982 = vmatprep.mubr.bf16.mxu0 0
      %4983 = vmatmul.mubr.bf16.gmra.mrb[0].mxu0 %v4814
      %v4984 = vpop.f32.mrb[0].mxu0
      %v4985 = vadd.f32 0.0, %v4984
      %v4986 = vpop.f32.mrb[0].mxu0
      %v4987 = vpop.f32.mrb[0].mxu0
      %v4988 = vadd.f32 0.0, %v4987
      %v4989 = vpop.f32.mrb[0].mxu0
      %4990 = vmatprep.mubr.bf16.mxu0 0
      %4991 = vmatmul.mubr.bf16.gmra.mrb[0].mxu0 %v4815
      %v4992 = vpop.f32.mrb[0].mxu0
      %v4993 = vadd.f32 0.0, %v4992
      %v4994 = vpop.f32.mrb[0].mxu0
      %v4995 = vpop.f32.mrb[0].mxu0
      %v4996 = vadd.f32 0.0, %v4995
      %v4997 = vpop.f32.mrb[0].mxu0
      %4998 = vmatprep.mubr.bf16.mxu0 0
      %4999 = vmatmul.mubr.bf16.gmra.mrb[0].mxu0 %v4816
      %v5000 = vpop.f32.mrb[0].mxu0
      %v5001 = vadd.f32 0.0, %v5000
      %v5002 = vpop.f32.mrb[0].mxu0
      %v5003 = vpop.f32.mrb[0].mxu0
      %v5004 = vadd.f32 0.0, %v5003
      %v5005 = vpop.f32.mrb[0].mxu0
      %5006 = vmatprep.mubr.bf16.mxu0 0
      %5007 = vmatmul.mubr.bf16.gmra.mrb[0].mxu0 %v4817
      %v5008 = vpop.f32.mrb[0].mxu0
      %v5009 = vadd.f32 0.0, %v5008
      %v5010 = vpop.f32.mrb[0].mxu0
      %v5011 = vpop.f32.mrb[0].mxu0
      %v5012 = vadd.f32 0.0, %v5011
      %v5013 = vpop.f32.mrb[0].mxu0
      %5014 = vmatprep.mubr.bf16.mxu0 0
      %5015 = vmatmul.mubr.bf16.gmra.mrb[0].mxu0 %v4818
      %v5016 = vpop.f32.mrb[0].mxu0
      %v5017 = vadd.f32 0.0, %v5016
      %v5018 = vpop.f32.mrb[0].mxu0
      %v5019 = vpop.f32.mrb[0].mxu0
      %v5020 = vadd.f32 0.0, %v5019
      %v5021 = vpop.f32.mrb[0].mxu0
      %5022 = vmatprep.mubr.bf16.mxu0 0
      %5023 = vmatmul.mubr.bf16.gmra.mrb[0].mxu0 %v4819
      %v5024 = vpop.f32.mrb[0].mxu0
      %v5025 = vadd.f32 0.0, %v5024
      %v5026 = vpop.f32.mrb[0].mxu0
      %v5027 = vpop.f32.mrb[0].mxu0
      %v5028 = vadd.f32 0.0, %v5027
      %v5029 = vpop.f32.mrb[0].mxu0
      %5030 = vmatprep.mubr.bf16.mxu0 0
      %5031 = vmatmul.mubr.bf16.gmra.mrb[0].mxu0 %v4820
      %v5032 = vpop.f32.mrb[0].mxu0
      %v5033 = vadd.f32 0.0, %v5032
      %v5034 = vpop.f32.mrb[0].mxu0
      %v5035 = vpop.f32.mrb[0].mxu0
      %v5036 = vadd.f32 0.0, %v5035
      %v5037 = vpop.f32.mrb[0].mxu0
      %5038 = vmatprep.mubr.bf16.mxu0 0
      %5039 = vmatmul.mubr.bf16.gmra.mrb[0].mxu0 %v4821
      %v5040 = vpop.f32.mrb[0].mxu0
      %v5041 = vadd.f32 0.0, %v5040
      %v5042 = vpop.f32.mrb[0].mxu0
      %v5043 = vpop.f32.mrb[0].mxu0
      %v5044 = vadd.f32 0.0, %v5043
      %v5045 = vpop.f32.mrb[0].mxu0
      %5046 = vdwg.mxu0
      %v5047 = vadd.f32 %v4549, %v4921
      %v5048 = vadd.f32 %v4550, %v4924
      %v5049 = vadd.f32 %v4551, %v4929
      %v5050 = vadd.f32 %v4552, %v4932
      %v5051 = vadd.f32 %v4553, %v4937
      %v5052 = vadd.f32 %v4554, %v4940
      %v5053 = vadd.f32 %v4555, %v4945
      %v5054 = vadd.f32 %v4556, %v4948
      %v5055 = vadd.f32 %v4557, %v4953
      %v5056 = vadd.f32 %v4558, %v4956
      %v5057 = vadd.f32 %v4559, %v4961
      %v5058 = vadd.f32 %v4560, %v4964
      %v5059 = vadd.f32 %v4561, %v4969
      %v5060 = vadd.f32 %v4562, %v4972
      %v5061 = vadd.f32 %v4563, %v4977
      %v5062 = vadd.f32 %v4564, %v4980
      %v5063 = vadd.f32 %v4565, %v4985
      %v5064 = vadd.f32 %v4566, %v4988
      %v5065 = vadd.f32 %v4567, %v4993
      %v5066 = vadd.f32 %v4568, %v4996
      %v5067 = vadd.f32 %v4569, %v5001
      %v5068 = vadd.f32 %v4570, %v5004
      %v5069 = vadd.f32 %v4571, %v5009
      %v5070 = vadd.f32 %v4572, %v5012
      %v5071 = vadd.f32 %v4573, %v5017
      %v5072 = vadd.f32 %v4574, %v5020
      %v5073 = vadd.f32 %v4575, %v5025
      %v5074 = vadd.f32 %v4576, %v5028
      %v5075 = vadd.f32 %v4577, %v5033
      %v5076 = vadd.f32 %v4578, %v5036
      %v5077 = vadd.f32 %v4579, %v5041
      %v5078 = vadd.f32 %v4580, %v5044
      %5079 = vst [vmem:[%s255] sm:$0xff] %v5047
      %5080 = vst [vmem:[%s255 + $0x8] sm:$0xff] %v5048
      %5081 = vst [vmem:[%s255 + $0x10] sm:$0xff] %v5049
      %5082 = vst [vmem:[%s255 + $0x18] sm:$0xff] %v5050
      %5083 = vst [vmem:[%s255 + $0x20] sm:$0xff] %v5051
      %5084 = vst [vmem:[%s255 + $0x28] sm:$0xff] %v5052
      %5085 = vst [vmem:[%s255 + $0x30] sm:$0xff] %v5053
      %5086 = vst [vmem:[%s255 + $0x38] sm:$0xff] %v5054
      %5087 = vst [vmem:[%s255 + $0x40] sm:$0xff] %v5055
      %5088 = vst [vmem:[%s255 + $0x48] sm:$0xff] %v5056
      %5089 = vst [vmem:[%s255 + $0x50] sm:$0xff] %v5057
      %5090 = vst [vmem:[%s255 + $0x58] sm:$0xff] %v5058
      %5091 = vst [vmem:[%s255 + $0x60] sm:$0xff] %v5059
      %5092 = vst [vmem:[%s255 + $0x68] sm:$0xff] %v5060
      %5093 = vst [vmem:[%s255 + $0x70] sm:$0xff] %v5061
      %5094 = vst [vmem:[%s255 + $0x78] sm:$0xff] %v5062
      %5095 = vst [vmem:[%s255 + $0x80] sm:$0xff] %v5063
      %5096 = vst [vmem:[%s255 + $0x88] sm:$0xff] %v5064
      %5097 = vst [vmem:[%s255 + $0x90] sm:$0xff] %v5065
      %5098 = vst [vmem:[%s255 + $0x98] sm:$0xff] %v5066
      %5099 = vst [vmem:[%s255 + $0xa0] sm:$0xff] %v5067
      %5100 = vst [vmem:[%s255 + $0xa8] sm:$0xff] %v5068
      %5101 = vst [vmem:[%s255 + $0xb0] sm:$0xff] %v5069
      %5102 = vst [vmem:[%s255 + $0xb8] sm:$0xff] %v5070
      %5103 = vst [vmem:[%s255 + $0xc0] sm:$0xff] %v5071
      %5104 = vst [vmem:[%s255 + $0xc8] sm:$0xff] %v5072
      %5105 = vst [vmem:[%s255 + $0xd0] sm:$0xff] %v5073
      %5106 = vst [vmem:[%s255 + $0xd8] sm:$0xff] %v5074
      %5107 = vst [vmem:[%s255 + $0xe0] sm:$0xff] %v5075
      %5108 = vst [vmem:[%s255 + $0xe8] sm:$0xff] %v5076
      %5109 = vst [vmem:[%s255 + $0xf0] sm:$0xff] %v5077
      %5110 = vst [vmem:[%s255 + $0xf8] sm:$0xff] %v5078
      %v5111 = vadd.f32 %v5047, %v5048
      %v5112 = vadd.f32 %v5111, %v5049
      %v5113 = vadd.f32 %v5112, %v5050
      %v5114 = vadd.f32 %v5113, %v5051
      %v5115 = vadd.f32 %v5114, %v5052
      %v5116 = vadd.f32 %v5115, %v5053
      %v5117 = vadd.f32 %v5116, %v5054
      %v5118 = vadd.f32 %v5117, %v5055
      %v5119 = vadd.f32 %v5118, %v5056
      %v5120 = vadd.f32 %v5119, %v5057
      %v5121 = vadd.f32 %v5120, %v5058
      %v5122 = vadd.f32 %v5121, %v5059
      %v5123 = vadd.f32 %v5122, %v5060
      %v5124 = vadd.f32 %v5123, %v5061
      %v5125 = vadd.f32 %v5124, %v5062
      %v5126 = vadd.f32 %v5125, %v5063
      %v5127 = vadd.f32 %v5126, %v5064
      %v5128 = vadd.f32 %v5127, %v5065
      %v5129 = vadd.f32 %v5128, %v5066
      %v5130 = vadd.f32 %v5129, %v5067
      %v5131 = vadd.f32 %v5130, %v5068
      %v5132 = vadd.f32 %v5131, %v5069
      %v5133 = vadd.f32 %v5132, %v5070
      %v5134 = vadd.f32 %v5133, %v5071
      %v5135 = vadd.f32 %v5134, %v5072
      %v5136 = vadd.f32 %v5135, %v5073
      %v5137 = vadd.f32 %v5136, %v5074
      %v5138 = vadd.f32 %v5137, %v5075
      %v5139 = vadd.f32 %v5138, %v5076
      %v5140 = vadd.f32 %v5139, %v5077
      %v5141 = vadd.f32 %v5140, %v5078
      %v5142 = vrot.slane %v5141, 4
      %v5143 = vadd.f32 %v5141, %v5142
      %v5144 = vrot.slane %v5143, 2
      %v5145 = vadd.f32 %v5143, %v5144
      %v5146 = vrot.slane %v5145, 1
      %v5147 = vadd.f32 %v5145, %v5146
      %5148 = vst [vmem:[%s262] sm:$0x1] %v5147
      %v5149 = vmul.f32 %v5047, %v5047
      %v5150 = vmul.f32 %v5048, %v5048
      %v5151 = vmul.f32 %v5049, %v5049
      %v5152 = vmul.f32 %v5050, %v5050
      %v5153 = vmul.f32 %v5051, %v5051
      %v5154 = vmul.f32 %v5052, %v5052
      %v5155 = vmul.f32 %v5053, %v5053
      %v5156 = vmul.f32 %v5054, %v5054
      %v5157 = vmul.f32 %v5055, %v5055
      %v5158 = vmul.f32 %v5056, %v5056
      %v5159 = vmul.f32 %v5057, %v5057
      %v5160 = vmul.f32 %v5058, %v5058
      %v5161 = vmul.f32 %v5059, %v5059
      %v5162 = vmul.f32 %v5060, %v5060
      %v5163 = vmul.f32 %v5061, %v5061
      %v5164 = vmul.f32 %v5062, %v5062
      %v5165 = vmul.f32 %v5063, %v5063
      %v5166 = vmul.f32 %v5064, %v5064
      %v5167 = vmul.f32 %v5065, %v5065
      %v5168 = vmul.f32 %v5066, %v5066
      %v5169 = vmul.f32 %v5067, %v5067
      %v5170 = vmul.f32 %v5068, %v5068
      %v5171 = vmul.f32 %v5069, %v5069
      %v5172 = vmul.f32 %v5070, %v5070
      %v5173 = vmul.f32 %v5071, %v5071
      %v5174 = vmul.f32 %v5072, %v5072
      %v5175 = vmul.f32 %v5073, %v5073
      %v5176 = vmul.f32 %v5074, %v5074
      %v5177 = vmul.f32 %v5075, %v5075
      %v5178 = vmul.f32 %v5076, %v5076
      %v5179 = vmul.f32 %v5077, %v5077
      %v5180 = vmul.f32 %v5078, %v5078
      %v5181 = vadd.f32 %v5149, %v5150
      %v5182 = vadd.f32 %v5181, %v5151
      %v5183 = vadd.f32 %v5182, %v5152
      %v5184 = vadd.f32 %v5183, %v5153
      %v5185 = vadd.f32 %v5184, %v5154
      %v5186 = vadd.f32 %v5185, %v5155
      %v5187 = vadd.f32 %v5186, %v5156
      %v5188 = vadd.f32 %v5187, %v5157
      %v5189 = vadd.f32 %v5188, %v5158
      %v5190 = vadd.f32 %v5189, %v5159
      %v5191 = vadd.f32 %v5190, %v5160
      %v5192 = vadd.f32 %v5191, %v5161
      %v5193 = vadd.f32 %v5192, %v5162
      %v5194 = vadd.f32 %v5193, %v5163
      %v5195 = vadd.f32 %v5194, %v5164
      %v5196 = vadd.f32 %v5195, %v5165
      %v5197 = vadd.f32 %v5196, %v5166
      %v5198 = vadd.f32 %v5197, %v5167
      %v5199 = vadd.f32 %v5198, %v5168
      %v5200 = vadd.f32 %v5199, %v5169
      %v5201 = vadd.f32 %v5200, %v5170
      %v5202 = vadd.f32 %v5201, %v5171
      %v5203 = vadd.f32 %v5202, %v5172
      %v5204 = vadd.f32 %v5203, %v5173
      %v5205 = vadd.f32 %v5204, %v5174
      %v5206 = vadd.f32 %v5205, %v5175
      %v5207 = vadd.f32 %v5206, %v5176
      %v5208 = vadd.f32 %v5207, %v5177
      %v5209 = vadd.f32 %v5208, %v5178
      %v5210 = vadd.f32 %v5209, %v5179
      %v5211 = vadd.f32 %v5210, %v5180
      %v5212 = vrot.slane %v5211, 4
      %v5213 = vadd.f32 %v5211, %v5212
      %v5214 = vrot.slane %v5213, 2
      %v5215 = vadd.f32 %v5213, %v5214
      %v5216 = vrot.slane %v5215, 1
      %v5217 = vadd.f32 %v5215, %v5216
      %5218 = vst [vmem:[%s268] sm:$0x1] %v5217
      %s5219 = smul.u32 32, %s20
      %p5220 = scmp.lt.s32.totalorder %s5219, 63
      %s5221 = scalar_select %p5220, %s5219, 63
      %p5222 = scmp.lt.s32.totalorder %s21, 0
      %s5223 = scalar_select %p5222, %s21, 0
      %s5224 = sadd.s32 %s5223, %s5221
      %s5225 = smul.addr %s5224, 8
      %s5226 = scalar_lea.vmem %s2, %s5225
      %p5227 = scmp.lt.s32.totalorder %s20, 1
      %s5228 = scalar_select %p5227, %s20, 1
      %p5229 = scmp.lt.s32.totalorder %s21, 0
      %s5230 = scalar_select %p5229, %s21, 0
      %s5231 = sadd.s32 %s5230, %s5228
      %s5232 = scalar_lea.vmem %s3, %s5231
      %p5233 = scmp.lt.s32.totalorder %s20, 1
      %s5234 = scalar_select %p5233, %s20, 1
      %p5235 = scmp.lt.s32.totalorder %s21, 0
      %s5236 = scalar_select %p5235, %s21, 0
      %s5237 = sadd.s32 %s5236, %s5234
      %s5238 = scalar_lea.vmem %s4, %s5237
      // Predicated region
      $region29: #{residual_forward.4} parent=27 // pred_check
        %p5239 = pneg %p100
      $region30: #{residual_forward.4} parent=27 // pred_check_branch
        %5241 = sbr.rel (%p5239) target = $region32
      $region31: #{residual_forward.4} parent=27 // pred_region
        %s5242 = smul.u32 32, %s20
      $region32: #{residual_forward.4} parent=27 // pred_fallthru
        _
      // Predicated region
      $region33: #{residual_forward.4} parent=27 // pred_check
        %p5243 = pneg %p128
      $region34: #{residual_forward.4} parent=27 // pred_check_branch
        %5245 = sbr.rel (%p5243) target = $region36
      $region35: #{residual_forward.4} parent=27 // pred_region
        _
      $region36: #{residual_forward.4} parent=27 // pred_fallthru
        _
      // Predicated region
      $region37: #{residual_forward.4} parent=27 // pred_check
        %p5246 = pneg %p156
      $region38: #{residual_forward.4} parent=27 // pred_check_branch
        %5248 = sbr.rel (%p5246) target = $region40
      $region39: #{residual_forward.4} parent=27 // pred_region
        _
      $region40: #{residual_forward.4} parent=27 // pred_fallthru
        _
    $region28: #{residual_forward.4} parent=5 // pred_fallthru
      _
    %p5249 = scmp.le.s32.totalorder 2, %s11
    // Predicated region
    $region41: #{residual_forward.4} parent=5 // pred_check
      %p5250 = pneg %p5249
    $region42: #{residual_forward.4} parent=5 // pred_check_branch
      %5252 = sbr.rel (%p5250) target = $region44
    $region43: #{residual_forward.4} parent=5 // pred_region
      %s5253 = ssub.s32 %s11, 2
      // Predicated region
      $region45: #{residual_forward.4} parent=43 // pred_check
        %p5254 = pneg %p106
      $region46: #{residual_forward.4} parent=43 // pred_check_branch
        %5256 = sbr.rel (%p5254) target = $region48
      $region47: #{residual_forward.4} parent=43 // pred_region
        %s5257 = smul.u32 32, %s22
        %p5258 = scmp.lt.s32.totalorder %s5257, 63
        %s5259 = scalar_select %p5258, %s5257, 63
        %p5260 = scmp.lt.s32.totalorder %s23, 0
        %s5261 = scalar_select %p5260, %s23, 0
        %s5262 = sadd.s32 %s5261, %s5259
        %s5263 = smul.addr %s5262, 8
        %s5264 = scalar_lea.vmem %s2, %s5263
      $region48: #{residual_forward.4} parent=43 // pred_fallthru
        _
      // Predicated region
      $region49: #{residual_forward.4} parent=43 // pred_check
        %p5265 = pneg %p134
      $region50: #{residual_forward.4} parent=43 // pred_check_branch
        %5267 = sbr.rel (%p5265) target = $region52
      $region51: #{residual_forward.4} parent=43 // pred_region
        %p5268 = scmp.lt.s32.totalorder %s22, 1
        %s5269 = scalar_select %p5268, %s22, 1
        %p5270 = scmp.lt.s32.totalorder %s23, 0
        %s5271 = scalar_select %p5270, %s23, 0
        %s5272 = sadd.s32 %s5271, %s5269
        %s5273 = scalar_lea.vmem %s3, %s5272
      $region52: #{residual_forward.4} parent=43 // pred_fallthru
        _
      // Predicated region
      $region53: #{residual_forward.4} parent=43 // pred_check
        %p5274 = pneg %p162
      $region54: #{residual_forward.4} parent=43 // pred_check_branch
        %5276 = sbr.rel (%p5274) target = $region56
      $region55: #{residual_forward.4} parent=43 // pred_region
        %p5277 = scmp.lt.s32.totalorder %s22, 1
        %s5278 = scalar_select %p5277, %s22, 1
        %p5279 = scmp.lt.s32.totalorder %s23, 0
        %s5280 = scalar_select %p5279, %s23, 0
        %s5281 = sadd.s32 %s5280, %s5278
        %s5282 = scalar_lea.vmem %s4, %s5281
      $region56: #{residual_forward.4} parent=43 // pred_fallthru
        _
    $region44: #{residual_forward.4} parent=5 // pred_fallthru
      _
  $region6: #{residual_forward.4} parent=0 // loop_footer
    %s15 = sadd.s32 1, %s11
  $region7: #{residual_forward.4} parent=0 // loop_footer_branch
    %10 = sbr.rel target = $region3
  $region8: #{residual_forward.4} parent=0 // loop_exit
    _

</llo_original>
